<compile_context>
chip_gen: v7x
topology: tpu7x:2x2x1
jax: 0.10.0
libtpu: 0.0.40
codegen_flags: <defaults>
</compile_context>

<pallas_src>
import math

import jax
import jax.numpy as jnp
from jax import lax
from jax.experimental import pallas as pl

# ---- module hyper-parameters (small shapes implied by the spec) ---------------
INPUT_DIM = 16
D_MODEL = 32
NHEAD = 4
NUM_LAYERS = 2
DIM_FF = 64
SEQ = 8
BATCH = 2
HEAD_DIM = D_MODEL // NHEAD

N = BATCH * SEQ           # flattened tokens (16)
HN = NHEAD * N            # heads-in-lanes score width (64)
LANES = 128
MASK_BIAS = -1e30

# ---- packed-slab row layout (shared by host packing and kernel carving) -------
# per-layer weight slab: (NUM_LAYERS, W_ROWS, 128)
WQ_R, WK_R, WV_R, WO_R = 0, 32, 64, 96
W1_R, W2_R = 128, 160
W_ROWS = 224

# constants slab: (C_ROWS, 128)
PE_R = 0                        # (N, D_MODEL)   pe + embedding bias (folded)
BIAS_R = PE_R + N               # (N, HN)        additive attention bias, final shape
HMV_R = BIAS_R + N              # (HN, D_MODEL)  head block mask
REP_R = HMV_R + HN              # (HN, N)        [I;I;I;I] sublane replicator
WEMB_R = REP_R + HN             # (INPUT_DIM, D_MODEL)
HW1_R = WEMB_R + INPUT_DIM      # (D_MODEL, 2*DIM_FF) fused head hidden weights
HW2_R = HW1_R + D_MODEL         # (2*DIM_FF, 2)       fused head output weights
GATH_R = HW2_R + 2 * DIM_FF     # (BATCH, N)          one-hot "last token" gather
C_ROWS = ((GATH_R + BATCH + 7) // 8) * 8

# bias/LN slab: (B_ROWS, 128), one vector per row
BIAS_ROWS_PER_LAYER = 10        # bq bk bv bo b1 b2 ln1g ln1b ln2g ln2b
HB1_ROW = NUM_LAYERS * BIAS_ROWS_PER_LAYER
HB2_ROW = HB1_ROW + 1
B_ROWS = ((HB2_ROW + 1 + 7) // 8) * 8


def _layer_norm(x, g, b, eps=1e-5):
    mu = jnp.mean(x, axis=-1, keepdims=True)
    xc = x - mu
    var = jnp.mean(xc * xc, axis=-1, keepdims=True)
    return xc * lax.rsqrt(var + eps) * g + b


def vehicle_transformer_kernel(src_ref, c_ref, w_ref, b_ref, out_ref):
    # ---- hoisted constant carves (static slices of the packed slabs) ----
    peb = c_ref[PE_R:PE_R + N, 0:D_MODEL]             # pe + embedding bias
    abias = c_ref[BIAS_R:BIAS_R + N, 0:HN]            # additive attn bias (N, H*N)
    hmv = c_ref[HMV_R:HMV_R + HN, 0:D_MODEL]          # head block mask (H*N, d)
    rep = c_ref[REP_R:REP_R + HN, 0:N]                # sublane replicator (H*N, N)
    wemb = c_ref[WEMB_R:WEMB_R + INPUT_DIM, 0:D_MODEL]

    # embedding + positional encoding (embedding bias pre-folded into peb)
    x = jnp.dot(src_ref[...], wemb, preferred_element_type=jnp.float32) + peb

    scale = 1.0 / math.sqrt(HEAD_DIM)
    nt = (((1,), (1,)), ((), ()))                     # contract last dims: A @ B^T

    for l in range(NUM_LAYERS):                       # 2 layers -> keep static unroll
        b0 = l * BIAS_ROWS_PER_LAYER

        def wmat(r0, rows, cols, _l=l):
            return w_ref[_l, r0:r0 + rows, 0:cols]

        def bvec(r, cols, _b0=b0):
            return b_ref[_b0 + r:_b0 + r + 1, 0:cols]

        # ---- multi-head self attention, heads-in-lanes (post-norm, eval) ----
        q = jnp.dot(x, wmat(WQ_R, D_MODEL, D_MODEL),
                    preferred_element_type=jnp.float32) + bvec(0, D_MODEL)
        k = jnp.dot(x, wmat(WK_R, D_MODEL, D_MODEL),
                    preferred_element_type=jnp.float32) + bvec(1, D_MODEL)
        v = jnp.dot(x, wmat(WV_R, D_MODEL, D_MODEL),
                    preferred_element_type=jnp.float32) + bvec(2, D_MODEL)

        # Replicate the N key/value rows once per head along sublanes and zero the
        # lanes outside each head's d-slice: row h*N+k of kx/vx == K[k]/V[k]
        # restricted to head h's dims.
        kx = jnp.dot(rep, k, preferred_element_type=jnp.float32) * hmv   # (HN, d)
        vx = jnp.dot(rep, v, preferred_element_type=jnp.float32) * hmv   # (HN, d)

        # scores[q, h*N + k] = <Q_h[q], K_h[k]> ; lane-dense (N, H*N) tile
        s = lax.dot_general(q, kx, nt,
                            preferred_element_type=jnp.float32) * scale + abias
        # Row-wide max is constant within every N-lane head block, so the per-head
        # softmax is unchanged; avoids a segmented lane reduction.
        m = jnp.max(s, axis=-1, keepdims=True)
        p = jnp.exp(s - m)                                               # (N, HN)
        num = jnp.dot(p, vx, preferred_element_type=jnp.float32)        # (N, d)
        den = jnp.dot(p, hmv, preferred_element_type=jnp.float32)       # per-head sums
        ctx = num / den            # exact division (parity with torch softmax)

        attn = jnp.dot(ctx, wmat(WO_R, D_MODEL, D_MODEL),
                       preferred_element_type=jnp.float32) + bvec(3, D_MODEL)
        x = _layer_norm(x + attn, bvec(6, D_MODEL), bvec(7, D_MODEL))

        # ---- feed forward ----
        ffh = jnp.maximum(
            jnp.dot(x, wmat(W1_R, D_MODEL, DIM_FF),
                    preferred_element_type=jnp.float32) + bvec(4, DIM_FF), 0.0)
        ff = jnp.dot(ffh, wmat(W2_R, DIM_FF, D_MODEL),
                     preferred_element_type=jnp.float32) + bvec(5, D_MODEL)
        x = _layer_norm(x + ff, bvec(8, D_MODEL), bvec(9, D_MODEL))

    # ---- "last real token" gather (one-hot matmul) + fused prediction heads ----
    gather = c_ref[GATH_R:GATH_R + BATCH, 0:N]
    hw1 = c_ref[HW1_R:HW1_R + D_MODEL, 0:2 * DIM_FF]
    hw2 = c_ref[HW2_R:HW2_R + 2 * DIM_FF, 0:2]
    hb1 = b_ref[HB1_ROW:HB1_ROW + 1, 0:2 * DIM_FF]
    hb2 = b_ref[HB2_ROW:HB2_ROW + 1, 0:2]

    hs = jnp.dot(gather, x, preferred_element_type=jnp.float32)          # (B, d)
    hh = jnp.maximum(
        jnp.dot(hs, hw1, preferred_element_type=jnp.float32) + hb1, 0.0)  # (B, 128)
    raw = jnp.dot(hh, hw2, preferred_element_type=jnp.float32) + hb2      # (B, 2)

    col = lax.broadcasted_iota(jnp.int32, raw.shape, 1)  # col 0 mileage, col 1 scrapped
    mileage = jnp.clip(raw, -1000000.0, 1000000.0)
    scrapped = jnp.clip(1.0 / (1.0 + jnp.exp(-raw)), 0.0, 1.0)
    out_ref[...] = jnp.where(col == 0, mileage, scrapped)


@jax.jit
def vehicle_transformer(src, src_key_padding_mask, params):
    B, S, F = src.shape
    assert (B, S, F) == (BATCH, SEQ, INPUT_DIM)

    # torch: transformer_mask = ~src_key_padding_mask.bool()  (True => key ignored)
    tm = (src_key_padding_mask == 0)
    key_ignore = tm.reshape(N)
    batch_id = jnp.repeat(jnp.arange(B), S)
    same_batch = batch_id[:, None] == batch_id[None, :]
    valid = same_batch & jnp.logical_not(key_ignore)[None, :]
    bias_nn = jnp.where(valid, 0.0, MASK_BIAS).astype(jnp.float32)        # (N, N)
    attn_bias = jnp.tile(bias_nn, (1, NHEAD))                             # (N, H*N)

    # "Last" token per batch exactly as the module computes it:
    # idx = transformer_mask.sum(dim=1) - 1 (torch wrap-around via modulo).
    counts = jnp.sum(tm.astype(jnp.int32), axis=1)
    idx = jnp.mod(counts - 1, S)
    flat_idx = jnp.arange(B) * S + idx
    gather = jax.nn.one_hot(flat_idx, N, dtype=jnp.float32)               # (B, N)

    # structural constants for heads-in-lanes attention
    head_of_dim = jnp.arange(D_MODEL) // HEAD_DIM
    head_of_row = jnp.arange(HN) // N
    hmask_v = (head_of_row[:, None] == head_of_dim[None, :]).astype(jnp.float32)
    rep_sub = jnp.tile(jnp.eye(N, dtype=jnp.float32), (NHEAD, 1))         # (HN, N)

    pe_plus = jnp.tile(params["pe"][:S], (B, 1)) + params["emb_b"]        # (N, d)

    # fused mileage/scrapped heads
    hw1 = jnp.concatenate([params["mw1"], params["sw1"]], axis=1)         # (32, 128)
    hb1 = jnp.concatenate([params["mb1"], params["sb1"]], axis=1)         # (1, 128)
    hw2 = jnp.zeros((2 * DIM_FF, 2), jnp.float32)
    hw2 = hw2.at[:DIM_FF, 0:1].set(params["mw2"])
    hw2 = hw2.at[DIM_FF:, 1:2].set(params["sw2"])                         # (128, 2)
    hb2 = jnp.concatenate([params["mb2"], params["sb2"]], axis=1)         # (1, 2)

    # ---- constants slab ----
    cslab = jnp.zeros((C_ROWS, LANES), jnp.float32)
    cslab = cslab.at[PE_R:PE_R + N, :D_MODEL].set(pe_plus)
    cslab = cslab.at[BIAS_R:BIAS_R + N, :HN].set(attn_bias)
    cslab = cslab.at[HMV_R:HMV_R + HN, :D_MODEL].set(hmask_v)
    cslab = cslab.at[REP_R:REP_R + HN, :N].set(rep_sub)
    cslab = cslab.at[WEMB_R:WEMB_R + INPUT_DIM, :D_MODEL].set(params["emb_w"])
    cslab = cslab.at[HW1_R:HW1_R + D_MODEL, :2 * DIM_FF].set(hw1)
    cslab = cslab.at[HW2_R:HW2_R + 2 * DIM_FF, :2].set(hw2)
    cslab = cslab.at[GATH_R:GATH_R + B, :N].set(gather)

    # ---- per-layer weight slab ----
    wqkv = params["wqkv"]                                                 # (L, 32, 96)
    wslab = jnp.zeros((NUM_LAYERS, W_ROWS, LANES), jnp.float32)
    wslab = wslab.at[:, WQ_R:WQ_R + D_MODEL, :D_MODEL].set(wqkv[:, :, 0:D_MODEL])
    wslab = wslab.at[:, WK_R:WK_R + D_MODEL, :D_MODEL].set(wqkv[:, :, D_MODEL:2 * D_MODEL])
    wslab = wslab.at[:, WV_R:WV_R + D_MODEL, :D_MODEL].set(wqkv[:, :, 2 * D_MODEL:])
    wslab = wslab.at[:, WO_R:WO_R + D_MODEL, :D_MODEL].set(params["wo"])
    wslab = wslab.at[:, W1_R:W1_R + D_MODEL, :DIM_FF].set(params["w1"])
    wslab = wslab.at[:, W2_R:W2_R + DIM_FF, :D_MODEL].set(params["w2"])

    # ---- bias / LayerNorm slab ----
    bqkv = params["bqkv"]                                                 # (L, 1, 96)
    bslab = jnp.zeros((B_ROWS, LANES), jnp.float32)
    for l in range(NUM_LAYERS):
        b0 = l * BIAS_ROWS_PER_LAYER
        bslab = bslab.at[b0 + 0, :D_MODEL].set(bqkv[l, 0, 0:D_MODEL])
        bslab = bslab.at[b0 + 1, :D_MODEL].set(bqkv[l, 0, D_MODEL:2 * D_MODEL])
        bslab = bslab.at[b0 + 2, :D_MODEL].set(bqkv[l, 0, 2 * D_MODEL:])
        bslab = bslab.at[b0 + 3, :D_MODEL].set(params["bo"][l, 0])
        bslab = bslab.at[b0 + 4, :DIM_FF].set(params["b1"][l, 0])
        bslab = bslab.at[b0 + 5, :D_MODEL].set(params["b2"][l, 0])
        bslab = bslab.at[b0 + 6, :D_MODEL].set(params["ln1g"][l, 0])
        bslab = bslab.at[b0 + 7, :D_MODEL].set(params["ln1b"][l, 0])
        bslab = bslab.at[b0 + 8, :D_MODEL].set(params["ln2g"][l, 0])
        bslab = bslab.at[b0 + 9, :D_MODEL].set(params["ln2b"][l, 0])
    bslab = bslab.at[HB1_ROW, :2 * DIM_FF].set(hb1[0])
    bslab = bslab.at[HB2_ROW, :2].set(hb2[0])

    out = pl.pallas_call(
        vehicle_transformer_kernel,
        out_shape=jax.ShapeDtypeStruct((B, 2), jnp.float32),
    )(src.reshape(N, F), cslab, wslab, bslab)

    return out[:, 0:1], out[:, 1:2]


def make_positional_encoding(d_model, max_len=25):
    pos = jnp.arange(max_len, dtype=jnp.float32)[:, None]
    div = jnp.exp(jnp.arange(0, d_model, 2, dtype=jnp.float32)
                  * (-math.log(10000.0) / d_model))
    pe = jnp.zeros((max_len, d_model), dtype=jnp.float32)
    pe = pe.at[:, 0::2].set(jnp.sin(pos * div))
    pe = pe.at[:, 1::2].set(jnp.cos(pos * div))
    return pe


def init_params(key):
    keys = jax.random.split(key, 20)

    def w(k, shape, scale=0.05):
        return (scale * jax.random.normal(k, shape)).astype(jnp.float32)

    p = {}
    p["pe"] = make_positional_encoding(D_MODEL)
    p["emb_w"] = w(keys[0], (INPUT_DIM, D_MODEL))
    p["emb_b"] = w(keys[1], (1, D_MODEL))
    p["wqkv"] = w(keys[2], (NUM_LAYERS, D_MODEL, 3 * D_MODEL))
    p["bqkv"] = w(keys[3], (NUM_LAYERS, 1, 3 * D_MODEL))
    p["wo"] = w(keys[4], (NUM_LAYERS, D_MODEL, D_MODEL))
    p["bo"] = w(keys[5], (NUM_LAYERS, 1, D_MODEL))
    p["ln1g"] = jnp.ones((NUM_LAYERS, 1, D_MODEL), jnp.float32)
    p["ln1b"] = jnp.zeros((NUM_LAYERS, 1, D_MODEL), jnp.float32)
    p["w1"] = w(keys[6], (NUM_LAYERS, D_MODEL, DIM_FF))
    p["b1"] = w(keys[7], (NUM_LAYERS, 1, DIM_FF))
    p["w2"] = w(keys[8], (NUM_LAYERS, DIM_FF, D_MODEL))
    p["b2"] = w(keys[9], (NUM_LAYERS, 1, D_MODEL))
    p["ln2g"] = jnp.ones((NUM_LAYERS, 1, D_MODEL), jnp.float32)
    p["ln2b"] = jnp.zeros((NUM_LAYERS, 1, D_MODEL), jnp.float32)
    p["mw1"] = w(keys[10], (D_MODEL, DIM_FF))
    p["mb1"] = w(keys[11], (1, DIM_FF))
    p["mw2"] = w(keys[12], (DIM_FF, 1))
    p["mb2"] = w(keys[13], (1, 1))
    p["sw1"] = w(keys[14], (D_MODEL, DIM_FF))
    p["sb1"] = w(keys[15], (1, DIM_FF))
    p["sw2"] = w(keys[16], (DIM_FF, 1))
    p["sb2"] = w(keys[17], (1, 1))
    return p


if __name__ == "__main__":
    key = jax.random.PRNGKey(0)
    kp, kx = jax.random.split(key)
    params = init_params(kp)

    src = jax.random.normal(kx, (BATCH, SEQ, INPUT_DIM), dtype=jnp.float32)
    # src_key_padding_mask (module convention): 0 for the first few positions,
    # 1 for the rest; every query row has >= 1 attended key.
    src_key_padding_mask = jnp.array(
        [[0] * 3 + [1] * (SEQ - 3),
         [0] * 5 + [1] * (SEQ - 5)], dtype=jnp.float32)

    mileage, scrapped = vehicle_transformer(src, src_key_padding_mask, params)
    jax.block_until_ready((mileage, scrapped))

    assert mileage.shape == (BATCH, 1) and scrapped.shape == (BATCH, 1)
    assert bool(jnp.all(jnp.isfinite(mileage)))
    assert bool(jnp.all(jnp.isfinite(scrapped)))
    assert bool(jnp.all((scrapped >= 0.0) & (scrapped <= 1.0)))
    print("KERNEL_OK")
</pallas_src>

<mosaic_0001>
module attributes {stable_mosaic.version = 11 : i64} {
  func.func @vehicle_transformer_kernel(%arg0: memref<16x16xf32, #tpu.memory_space<vmem>>, %arg1: memref<344x128xf32, #tpu.memory_space<vmem>>, %arg2: memref<2x224x128xf32, #tpu.memory_space<vmem>>, %arg3: memref<24x128xf32, #tpu.memory_space<vmem>>, %arg4: memref<2x2xf32, #tpu.memory_space<vmem>>) attributes {dimension_semantics = [], scalar_prefetch = 0 : i64, scratch_operands = 0 : i64, tpu.core_type = #tpu.core_type<tc>} {
    %c0 = arith.constant 0 : index
    %c0_0 = arith.constant 0 : index
    %0 = vector.load %arg1[%c0, %c0_0] : memref<344x128xf32, #tpu.memory_space<vmem>>, vector<16x32xf32>
    %c16 = arith.constant 16 : index
    %c0_1 = arith.constant 0 : index
    %1 = vector.load %arg1[%c16, %c0_1] : memref<344x128xf32, #tpu.memory_space<vmem>>, vector<16x64xf32>
    %c32 = arith.constant 32 : index
    %c0_2 = arith.constant 0 : index
    %2 = vector.load %arg1[%c32, %c0_2] : memref<344x128xf32, #tpu.memory_space<vmem>>, vector<64x32xf32>
    %c96 = arith.constant 96 : index
    %c0_3 = arith.constant 0 : index
    %3 = vector.load %arg1[%c96, %c0_3] : memref<344x128xf32, #tpu.memory_space<vmem>>, vector<64x16xf32>
    %c160 = arith.constant 160 : index
    %c0_4 = arith.constant 0 : index
    %4 = vector.load %arg1[%c160, %c0_4] : memref<344x128xf32, #tpu.memory_space<vmem>>, vector<16x32xf32>
    %c0_5 = arith.constant 0 : index
    %c0_6 = arith.constant 0 : index
    %5 = vector.load %arg0[%c0_5, %c0_6] : memref<16x16xf32, #tpu.memory_space<vmem>>, vector<16x16xf32>
    %cst = arith.constant dense<0.000000e+00> : vector<16x32xf32>
    %6 = tpu.matmul %5, %4, %cst {dimension_numbers = #tpu.dot_dimension_numbers<[1], [0], [0], [1], [0, 0, 1, 1], [], []>} : vector<16x16xf32>, vector<16x32xf32>, vector<16x32xf32> -> vector<16x32xf32>
    %7 = arith.addf %6, %0 : vector<16x32xf32>
    %c0_7 = arith.constant 0 : index
    %c0_8 = arith.constant 0 : index
    %c0_9 = arith.constant 0 : index
    %8 = vector.load %arg2[%c0_7, %c0_8, %c0_9] : memref<2x224x128xf32, #tpu.memory_space<vmem>>, vector<1x32x32xf32>
    %9 = vector.shape_cast %8 : vector<1x32x32xf32> to vector<32x32xf32>
    %cst_10 = arith.constant dense<0.000000e+00> : vector<16x32xf32>
    %10 = tpu.matmul %7, %9, %cst_10 {dimension_numbers = #tpu.dot_dimension_numbers<[1], [0], [0], [1], [0, 0, 1, 1], [], []>} : vector<16x32xf32>, vector<32x32xf32>, vector<16x32xf32> -> vector<16x32xf32>
    %c0_11 = arith.constant 0 : index
    %c0_12 = arith.constant 0 : index
    %11 = vector.load %arg3[%c0_11, %c0_12] : memref<24x128xf32, #tpu.memory_space<vmem>>, vector<1x32xf32>
    %12 = vector.broadcast %11 : vector<1x32xf32> to vector<16x32xf32>
    %13 = arith.addf %10, %12 : vector<16x32xf32>
    %c0_13 = arith.constant 0 : index
    %c32_14 = arith.constant 32 : index
    %c0_15 = arith.constant 0 : index
    %14 = vector.load %arg2[%c0_13, %c32_14, %c0_15] : memref<2x224x128xf32, #tpu.memory_space<vmem>>, vector<1x32x32xf32>
    %15 = vector.shape_cast %14 : vector<1x32x32xf32> to vector<32x32xf32>
    %cst_16 = arith.constant dense<0.000000e+00> : vector<16x32xf32>
    %16 = tpu.matmul %7, %15, %cst_16 {dimension_numbers = #tpu.dot_dimension_numbers<[1], [0], [0], [1], [0, 0, 1, 1], [], []>} : vector<16x32xf32>, vector<32x32xf32>, vector<16x32xf32> -> vector<16x32xf32>
    %c1 = arith.constant 1 : index
    %c0_17 = arith.constant 0 : index
    %17 = vector.load %arg3[%c1, %c0_17] : memref<24x128xf32, #tpu.memory_space<vmem>>, vector<1x32xf32>
    %18 = vector.broadcast %17 : vector<1x32xf32> to vector<16x32xf32>
    %19 = arith.addf %16, %18 : vector<16x32xf32>
    %c0_18 = arith.constant 0 : index
    %c64 = arith.constant 64 : index
    %c0_19 = arith.constant 0 : index
    %20 = vector.load %arg2[%c0_18, %c64, %c0_19] : memref<2x224x128xf32, #tpu.memory_space<vmem>>, vector<1x32x32xf32>
    %21 = vector.shape_cast %20 : vector<1x32x32xf32> to vector<32x32xf32>
    %cst_20 = arith.constant dense<0.000000e+00> : vector<16x32xf32>
    %22 = tpu.matmul %7, %21, %cst_20 {dimension_numbers = #tpu.dot_dimension_numbers<[1], [0], [0], [1], [0, 0, 1, 1], [], []>} : vector<16x32xf32>, vector<32x32xf32>, vector<16x32xf32> -> vector<16x32xf32>
    %c2 = arith.constant 2 : index
    %c0_21 = arith.constant 0 : index
    %23 = vector.load %arg3[%c2, %c0_21] : memref<24x128xf32, #tpu.memory_space<vmem>>, vector<1x32xf32>
    %24 = vector.broadcast %23 : vector<1x32xf32> to vector<16x32xf32>
    %25 = arith.addf %22, %24 : vector<16x32xf32>
    %cst_22 = arith.constant dense<0.000000e+00> : vector<64x32xf32>
    %26 = tpu.matmul %3, %19, %cst_22 {dimension_numbers = #tpu.dot_dimension_numbers<[1], [0], [0], [1], [0, 0, 1, 1], [], []>} : vector<64x16xf32>, vector<16x32xf32>, vector<64x32xf32> -> vector<64x32xf32>
    %27 = arith.mulf %26, %2 : vector<64x32xf32>
    %cst_23 = arith.constant dense<0.000000e+00> : vector<64x32xf32>
    %28 = tpu.matmul %3, %25, %cst_23 {dimension_numbers = #tpu.dot_dimension_numbers<[1], [0], [0], [1], [0, 0, 1, 1], [], []>} : vector<64x16xf32>, vector<16x32xf32>, vector<64x32xf32> -> vector<64x32xf32>
    %29 = arith.mulf %28, %2 : vector<64x32xf32>
    %cst_24 = arith.constant dense<0.000000e+00> : vector<16x64xf32>
    %30 = tpu.matmul %13, %27, %cst_24 {dimension_numbers = #tpu.dot_dimension_numbers<[1], [1], [0], [0], [0, 0, 1, 0], [], []>} : vector<16x32xf32>, vector<64x32xf32>, vector<16x64xf32> -> vector<16x64xf32>
    %cst_25 = arith.constant 0.353553385 : f32
    %31 = vector.broadcast %cst_25 : f32 to vector<16x64xf32>
    %32 = arith.mulf %30, %31 : vector<16x64xf32>
    %33 = arith.addf %32, %1 : vector<16x64xf32>
    %cst_26 = arith.constant dense<0xFF800000> : vector<16xf32>
    %34 = vector.multi_reduction <maximumf>, %33, %cst_26 [1] : vector<16x64xf32> to vector<16xf32>
    %35 = vector.shape_cast %34 : vector<16xf32> to vector<16x1xf32>
    %36 = vector.broadcast %35 : vector<16x1xf32> to vector<16x64xf32>
    %37 = arith.subf %33, %36 : vector<16x64xf32>
    %38 = math.exp %37 : vector<16x64xf32>
    %cst_27 = arith.constant dense<0.000000e+00> : vector<16x32xf32>
    %39 = tpu.matmul %38, %29, %cst_27 {dimension_numbers = #tpu.dot_dimension_numbers<[1], [0], [0], [1], [0, 0, 1, 1], [], []>} : vector<16x64xf32>, vector<64x32xf32>, vector<16x32xf32> -> vector<16x32xf32>
    %cst_28 = arith.constant dense<0.000000e+00> : vector<16x32xf32>
    %40 = tpu.matmul %38, %2, %cst_28 {dimension_numbers = #tpu.dot_dimension_numbers<[1], [0], [0], [1], [0, 0, 1, 1], [], []>} : vector<16x64xf32>, vector<64x32xf32>, vector<16x32xf32> -> vector<16x32xf32>
    %41 = arith.divf %39, %40 : vector<16x32xf32>
    %c0_29 = arith.constant 0 : index
    %c96_30 = arith.constant 96 : index
    %c0_31 = arith.constant 0 : index
    %42 = vector.load %arg2[%c0_29, %c96_30, %c0_31] : memref<2x224x128xf32, #tpu.memory_space<vmem>>, vector<1x32x32xf32>
    %43 = vector.shape_cast %42 : vector<1x32x32xf32> to vector<32x32xf32>
    %cst_32 = arith.constant dense<0.000000e+00> : vector<16x32xf32>
    %44 = tpu.matmul %41, %43, %cst_32 {dimension_numbers = #tpu.dot_dimension_numbers<[1], [0], [0], [1], [0, 0, 1, 1], [], []>} : vector<16x32xf32>, vector<32x32xf32>, vector<16x32xf32> -> vector<16x32xf32>
    %c3 = arith.constant 3 : index
    %c0_33 = arith.constant 0 : index
    %45 = vector.load %arg3[%c3, %c0_33] : memref<24x128xf32, #tpu.memory_space<vmem>>, vector<1x32xf32>
    %46 = vector.broadcast %45 : vector<1x32xf32> to vector<16x32xf32>
    %47 = arith.addf %44, %46 : vector<16x32xf32>
    %48 = arith.addf %7, %47 : vector<16x32xf32>
    %c6 = arith.constant 6 : index
    %c0_34 = arith.constant 0 : index
    %49 = vector.load %arg3[%c6, %c0_34] : memref<24x128xf32, #tpu.memory_space<vmem>>, vector<1x32xf32>
    %c7 = arith.constant 7 : index
    %c0_35 = arith.constant 0 : index
    %50 = vector.load %arg3[%c7, %c0_35] : memref<24x128xf32, #tpu.memory_space<vmem>>, vector<1x32xf32>
    %cst_36 = arith.constant dense<0.000000e+00> : vector<16xf32>
    %51 = vector.multi_reduction <add>, %48, %cst_36 [1] : vector<16x32xf32> to vector<16xf32>
    %52 = vector.shape_cast %51 : vector<16xf32> to vector<16x1xf32>
    %cst_37 = arith.constant 3.200000e+01 : f32
    %53 = vector.broadcast %cst_37 : f32 to vector<16x1xf32>
    %54 = arith.divf %52, %53 : vector<16x1xf32>
    %55 = vector.broadcast %54 : vector<16x1xf32> to vector<16x32xf32>
    %56 = arith.subf %48, %55 : vector<16x32xf32>
    %57 = arith.mulf %56, %56 : vector<16x32xf32>
    %cst_38 = arith.constant dense<0.000000e+00> : vector<16xf32>
    %58 = vector.multi_reduction <add>, %57, %cst_38 [1] : vector<16x32xf32> to vector<16xf32>
    %59 = vector.shape_cast %58 : vector<16xf32> to vector<16x1xf32>
    %cst_39 = arith.constant 3.200000e+01 : f32
    %60 = vector.broadcast %cst_39 : f32 to vector<16x1xf32>
    %61 = arith.divf %59, %60 : vector<16x1xf32>
    %cst_40 = arith.constant 9.99999974E-6 : f32
    %62 = vector.broadcast %cst_40 : f32 to vector<16x1xf32>
    %63 = arith.addf %61, %62 : vector<16x1xf32>
    %64 = math.rsqrt %63 : vector<16x1xf32>
    %65 = vector.broadcast %64 : vector<16x1xf32> to vector<16x32xf32>
    %66 = arith.mulf %56, %65 : vector<16x32xf32>
    %67 = vector.broadcast %49 : vector<1x32xf32> to vector<16x32xf32>
    %68 = arith.mulf %66, %67 : vector<16x32xf32>
    %69 = vector.broadcast %50 : vector<1x32xf32> to vector<16x32xf32>
    %70 = arith.addf %68, %69 : vector<16x32xf32>
    %c0_41 = arith.constant 0 : index
    %c128 = arith.constant 128 : index
    %c0_42 = arith.constant 0 : index
    %71 = vector.load %arg2[%c0_41, %c128, %c0_42] : memref<2x224x128xf32, #tpu.memory_space<vmem>>, vector<1x32x64xf32>
    %72 = vector.shape_cast %71 : vector<1x32x64xf32> to vector<32x64xf32>
    %cst_43 = arith.constant dense<0.000000e+00> : vector<16x64xf32>
    %73 = tpu.matmul %70, %72, %cst_43 {dimension_numbers = #tpu.dot_dimension_numbers<[1], [0], [0], [1], [0, 0, 1, 1], [], []>} : vector<16x32xf32>, vector<32x64xf32>, vector<16x64xf32> -> vector<16x64xf32>
    %c4 = arith.constant 4 : index
    %c0_44 = arith.constant 0 : index
    %74 = vector.load %arg3[%c4, %c0_44] : memref<24x128xf32, #tpu.memory_space<vmem>>, vector<1x64xf32>
    %75 = vector.broadcast %74 : vector<1x64xf32> to vector<16x64xf32>
    %76 = arith.addf %73, %75 : vector<16x64xf32>
    %cst_45 = arith.constant 0.000000e+00 : f32
    %77 = vector.broadcast %cst_45 : f32 to vector<16x64xf32>
    %78 = arith.maximumf %76, %77 : vector<16x64xf32>
    %c0_46 = arith.constant 0 : index
    %c160_47 = arith.constant 160 : index
    %c0_48 = arith.constant 0 : index
    %79 = vector.load %arg2[%c0_46, %c160_47, %c0_48] : memref<2x224x128xf32, #tpu.memory_space<vmem>>, vector<1x64x32xf32>
    %80 = vector.shape_cast %79 : vector<1x64x32xf32> to vector<64x32xf32>
    %cst_49 = arith.constant dense<0.000000e+00> : vector<16x32xf32>
    %81 = tpu.matmul %78, %80, %cst_49 {dimension_numbers = #tpu.dot_dimension_numbers<[1], [0], [0], [1], [0, 0, 1, 1], [], []>} : vector<16x64xf32>, vector<64x32xf32>, vector<16x32xf32> -> vector<16x32xf32>
    %c5 = arith.constant 5 : index
    %c0_50 = arith.constant 0 : index
    %82 = vector.load %arg3[%c5, %c0_50] : memref<24x128xf32, #tpu.memory_space<vmem>>, vector<1x32xf32>
    %83 = vector.broadcast %82 : vector<1x32xf32> to vector<16x32xf32>
    %84 = arith.addf %81, %83 : vector<16x32xf32>
    %85 = arith.addf %70, %84 : vector<16x32xf32>
    %c8 = arith.constant 8 : index
    %c0_51 = arith.constant 0 : index
    %86 = vector.load %arg3[%c8, %c0_51] : memref<24x128xf32, #tpu.memory_space<vmem>>, vector<1x32xf32>
    %c9 = arith.constant 9 : index
    %c0_52 = arith.constant 0 : index
    %87 = vector.load %arg3[%c9, %c0_52] : memref<24x128xf32, #tpu.memory_space<vmem>>, vector<1x32xf32>
    %cst_53 = arith.constant dense<0.000000e+00> : vector<16xf32>
    %88 = vector.multi_reduction <add>, %85, %cst_53 [1] : vector<16x32xf32> to vector<16xf32>
    %89 = vector.shape_cast %88 : vector<16xf32> to vector<16x1xf32>
    %cst_54 = arith.constant 3.200000e+01 : f32
    %90 = vector.broadcast %cst_54 : f32 to vector<16x1xf32>
    %91 = arith.divf %89, %90 : vector<16x1xf32>
    %92 = vector.broadcast %91 : vector<16x1xf32> to vector<16x32xf32>
    %93 = arith.subf %85, %92 : vector<16x32xf32>
    %94 = arith.mulf %93, %93 : vector<16x32xf32>
    %cst_55 = arith.constant dense<0.000000e+00> : vector<16xf32>
    %95 = vector.multi_reduction <add>, %94, %cst_55 [1] : vector<16x32xf32> to vector<16xf32>
    %96 = vector.shape_cast %95 : vector<16xf32> to vector<16x1xf32>
    %cst_56 = arith.constant 3.200000e+01 : f32
    %97 = vector.broadcast %cst_56 : f32 to vector<16x1xf32>
    %98 = arith.divf %96, %97 : vector<16x1xf32>
    %cst_57 = arith.constant 9.99999974E-6 : f32
    %99 = vector.broadcast %cst_57 : f32 to vector<16x1xf32>
    %100 = arith.addf %98, %99 : vector<16x1xf32>
    %101 = math.rsqrt %100 : vector<16x1xf32>
    %102 = vector.broadcast %101 : vector<16x1xf32> to vector<16x32xf32>
    %103 = arith.mulf %93, %102 : vector<16x32xf32>
    %104 = vector.broadcast %86 : vector<1x32xf32> to vector<16x32xf32>
    %105 = arith.mulf %103, %104 : vector<16x32xf32>
    %106 = vector.broadcast %87 : vector<1x32xf32> to vector<16x32xf32>
    %107 = arith.addf %105, %106 : vector<16x32xf32>
    %c1_58 = arith.constant 1 : index
    %c0_59 = arith.constant 0 : index
    %c0_60 = arith.constant 0 : index
    %108 = vector.load %arg2[%c1_58, %c0_59, %c0_60] : memref<2x224x128xf32, #tpu.memory_space<vmem>>, vector<1x32x32xf32>
    %109 = vector.shape_cast %108 : vector<1x32x32xf32> to vector<32x32xf32>
    %cst_61 = arith.constant dense<0.000000e+00> : vector<16x32xf32>
    %110 = tpu.matmul %107, %109, %cst_61 {dimension_numbers = #tpu.dot_dimension_numbers<[1], [0], [0], [1], [0, 0, 1, 1], [], []>} : vector<16x32xf32>, vector<32x32xf32>, vector<16x32xf32> -> vector<16x32xf32>
    %c10 = arith.constant 10 : index
    %c0_62 = arith.constant 0 : index
    %111 = vector.load %arg3[%c10, %c0_62] : memref<24x128xf32, #tpu.memory_space<vmem>>, vector<1x32xf32>
    %112 = vector.broadcast %111 : vector<1x32xf32> to vector<16x32xf32>
    %113 = arith.addf %110, %112 : vector<16x32xf32>
    %c1_63 = arith.constant 1 : index
    %c32_64 = arith.constant 32 : index
    %c0_65 = arith.constant 0 : index
    %114 = vector.load %arg2[%c1_63, %c32_64, %c0_65] : memref<2x224x128xf32, #tpu.memory_space<vmem>>, vector<1x32x32xf32>
    %115 = vector.shape_cast %114 : vector<1x32x32xf32> to vector<32x32xf32>
    %cst_66 = arith.constant dense<0.000000e+00> : vector<16x32xf32>
    %116 = tpu.matmul %107, %115, %cst_66 {dimension_numbers = #tpu.dot_dimension_numbers<[1], [0], [0], [1], [0, 0, 1, 1], [], []>} : vector<16x32xf32>, vector<32x32xf32>, vector<16x32xf32> -> vector<16x32xf32>
    %c11 = arith.constant 11 : index
    %c0_67 = arith.constant 0 : index
    %117 = vector.load %arg3[%c11, %c0_67] : memref<24x128xf32, #tpu.memory_space<vmem>>, vector<1x32xf32>
    %118 = vector.broadcast %117 : vector<1x32xf32> to vector<16x32xf32>
    %119 = arith.addf %116, %118 : vector<16x32xf32>
    %c1_68 = arith.constant 1 : index
    %c64_69 = arith.constant 64 : index
    %c0_70 = arith.constant 0 : index
    %120 = vector.load %arg2[%c1_68, %c64_69, %c0_70] : memref<2x224x128xf32, #tpu.memory_space<vmem>>, vector<1x32x32xf32>
    %121 = vector.shape_cast %120 : vector<1x32x32xf32> to vector<32x32xf32>
    %cst_71 = arith.constant dense<0.000000e+00> : vector<16x32xf32>
    %122 = tpu.matmul %107, %121, %cst_71 {dimension_numbers = #tpu.dot_dimension_numbers<[1], [0], [0], [1], [0, 0, 1, 1], [], []>} : vector<16x32xf32>, vector<32x32xf32>, vector<16x32xf32> -> vector<16x32xf32>
    %c12 = arith.constant 12 : index
    %c0_72 = arith.constant 0 : index
    %123 = vector.load %arg3[%c12, %c0_72] : memref<24x128xf32, #tpu.memory_space<vmem>>, vector<1x32xf32>
    %124 = vector.broadcast %123 : vector<1x32xf32> to vector<16x32xf32>
    %125 = arith.addf %122, %124 : vector<16x32xf32>
    %cst_73 = arith.constant dense<0.000000e+00> : vector<64x32xf32>
    %126 = tpu.matmul %3, %119, %cst_73 {dimension_numbers = #tpu.dot_dimension_numbers<[1], [0], [0], [1], [0, 0, 1, 1], [], []>} : vector<64x16xf32>, vector<16x32xf32>, vector<64x32xf32> -> vector<64x32xf32>
    %127 = arith.mulf %126, %2 : vector<64x32xf32>
    %cst_74 = arith.constant dense<0.000000e+00> : vector<64x32xf32>
    %128 = tpu.matmul %3, %125, %cst_74 {dimension_numbers = #tpu.dot_dimension_numbers<[1], [0], [0], [1], [0, 0, 1, 1], [], []>} : vector<64x16xf32>, vector<16x32xf32>, vector<64x32xf32> -> vector<64x32xf32>
    %129 = arith.mulf %128, %2 : vector<64x32xf32>
    %cst_75 = arith.constant dense<0.000000e+00> : vector<16x64xf32>
    %130 = tpu.matmul %113, %127, %cst_75 {dimension_numbers = #tpu.dot_dimension_numbers<[1], [1], [0], [0], [0, 0, 1, 0], [], []>} : vector<16x32xf32>, vector<64x32xf32>, vector<16x64xf32> -> vector<16x64xf32>
    %cst_76 = arith.constant 0.353553385 : f32
    %131 = vector.broadcast %cst_76 : f32 to vector<16x64xf32>
    %132 = arith.mulf %130, %131 : vector<16x64xf32>
    %133 = arith.addf %132, %1 : vector<16x64xf32>
    %cst_77 = arith.constant dense<0xFF800000> : vector<16xf32>
    %134 = vector.multi_reduction <maximumf>, %133, %cst_77 [1] : vector<16x64xf32> to vector<16xf32>
    %135 = vector.shape_cast %134 : vector<16xf32> to vector<16x1xf32>
    %136 = vector.broadcast %135 : vector<16x1xf32> to vector<16x64xf32>
    %137 = arith.subf %133, %136 : vector<16x64xf32>
    %138 = math.exp %137 : vector<16x64xf32>
    %cst_78 = arith.constant dense<0.000000e+00> : vector<16x32xf32>
    %139 = tpu.matmul %138, %129, %cst_78 {dimension_numbers = #tpu.dot_dimension_numbers<[1], [0], [0], [1], [0, 0, 1, 1], [], []>} : vector<16x64xf32>, vector<64x32xf32>, vector<16x32xf32> -> vector<16x32xf32>
    %cst_79 = arith.constant dense<0.000000e+00> : vector<16x32xf32>
    %140 = tpu.matmul %138, %2, %cst_79 {dimension_numbers = #tpu.dot_dimension_numbers<[1], [0], [0], [1], [0, 0, 1, 1], [], []>} : vector<16x64xf32>, vector<64x32xf32>, vector<16x32xf32> -> vector<16x32xf32>
    %141 = arith.divf %139, %140 : vector<16x32xf32>
    %c1_80 = arith.constant 1 : index
    %c96_81 = arith.constant 96 : index
    %c0_82 = arith.constant 0 : index
    %142 = vector.load %arg2[%c1_80, %c96_81, %c0_82] : memref<2x224x128xf32, #tpu.memory_space<vmem>>, vector<1x32x32xf32>
    %143 = vector.shape_cast %142 : vector<1x32x32xf32> to vector<32x32xf32>
    %cst_83 = arith.constant dense<0.000000e+00> : vector<16x32xf32>
    %144 = tpu.matmul %141, %143, %cst_83 {dimension_numbers = #tpu.dot_dimension_numbers<[1], [0], [0], [1], [0, 0, 1, 1], [], []>} : vector<16x32xf32>, vector<32x32xf32>, vector<16x32xf32> -> vector<16x32xf32>
    %c13 = arith.constant 13 : index
    %c0_84 = arith.constant 0 : index
    %145 = vector.load %arg3[%c13, %c0_84] : memref<24x128xf32, #tpu.memory_space<vmem>>, vector<1x32xf32>
    %146 = vector.broadcast %145 : vector<1x32xf32> to vector<16x32xf32>
    %147 = arith.addf %144, %146 : vector<16x32xf32>
    %148 = arith.addf %107, %147 : vector<16x32xf32>
    %c16_85 = arith.constant 16 : index
    %c0_86 = arith.constant 0 : index
    %149 = vector.load %arg3[%c16_85, %c0_86] : memref<24x128xf32, #tpu.memory_space<vmem>>, vector<1x32xf32>
    %c17 = arith.constant 17 : index
    %c0_87 = arith.constant 0 : index
    %150 = vector.load %arg3[%c17, %c0_87] : memref<24x128xf32, #tpu.memory_space<vmem>>, vector<1x32xf32>
    %cst_88 = arith.constant dense<0.000000e+00> : vector<16xf32>
    %151 = vector.multi_reduction <add>, %148, %cst_88 [1] : vector<16x32xf32> to vector<16xf32>
    %152 = vector.shape_cast %151 : vector<16xf32> to vector<16x1xf32>
    %cst_89 = arith.constant 3.200000e+01 : f32
    %153 = vector.broadcast %cst_89 : f32 to vector<16x1xf32>
    %154 = arith.divf %152, %153 : vector<16x1xf32>
    %155 = vector.broadcast %154 : vector<16x1xf32> to vector<16x32xf32>
    %156 = arith.subf %148, %155 : vector<16x32xf32>
    %157 = arith.mulf %156, %156 : vector<16x32xf32>
    %cst_90 = arith.constant dense<0.000000e+00> : vector<16xf32>
    %158 = vector.multi_reduction <add>, %157, %cst_90 [1] : vector<16x32xf32> to vector<16xf32>
    %159 = vector.shape_cast %158 : vector<16xf32> to vector<16x1xf32>
    %cst_91 = arith.constant 3.200000e+01 : f32
    %160 = vector.broadcast %cst_91 : f32 to vector<16x1xf32>
    %161 = arith.divf %159, %160 : vector<16x1xf32>
    %cst_92 = arith.constant 9.99999974E-6 : f32
    %162 = vector.broadcast %cst_92 : f32 to vector<16x1xf32>
    %163 = arith.addf %161, %162 : vector<16x1xf32>
    %164 = math.rsqrt %163 : vector<16x1xf32>
    %165 = vector.broadcast %164 : vector<16x1xf32> to vector<16x32xf32>
    %166 = arith.mulf %156, %165 : vector<16x32xf32>
    %167 = vector.broadcast %149 : vector<1x32xf32> to vector<16x32xf32>
    %168 = arith.mulf %166, %167 : vector<16x32xf32>
    %169 = vector.broadcast %150 : vector<1x32xf32> to vector<16x32xf32>
    %170 = arith.addf %168, %169 : vector<16x32xf32>
    %c1_93 = arith.constant 1 : index
    %c128_94 = arith.constant 128 : index
    %c0_95 = arith.constant 0 : index
    %171 = vector.load %arg2[%c1_93, %c128_94, %c0_95] : memref<2x224x128xf32, #tpu.memory_space<vmem>>, vector<1x32x64xf32>
    %172 = vector.shape_cast %171 : vector<1x32x64xf32> to vector<32x64xf32>
    %cst_96 = arith.constant dense<0.000000e+00> : vector<16x64xf32>
    %173 = tpu.matmul %170, %172, %cst_96 {dimension_numbers = #tpu.dot_dimension_numbers<[1], [0], [0], [1], [0, 0, 1, 1], [], []>} : vector<16x32xf32>, vector<32x64xf32>, vector<16x64xf32> -> vector<16x64xf32>
    %c14 = arith.constant 14 : index
    %c0_97 = arith.constant 0 : index
    %174 = vector.load %arg3[%c14, %c0_97] : memref<24x128xf32, #tpu.memory_space<vmem>>, vector<1x64xf32>
    %175 = vector.broadcast %174 : vector<1x64xf32> to vector<16x64xf32>
    %176 = arith.addf %173, %175 : vector<16x64xf32>
    %cst_98 = arith.constant 0.000000e+00 : f32
    %177 = vector.broadcast %cst_98 : f32 to vector<16x64xf32>
    %178 = arith.maximumf %176, %177 : vector<16x64xf32>
    %c1_99 = arith.constant 1 : index
    %c160_100 = arith.constant 160 : index
    %c0_101 = arith.constant 0 : index
    %179 = vector.load %arg2[%c1_99, %c160_100, %c0_101] : memref<2x224x128xf32, #tpu.memory_space<vmem>>, vector<1x64x32xf32>
    %180 = vector.shape_cast %179 : vector<1x64x32xf32> to vector<64x32xf32>
    %cst_102 = arith.constant dense<0.000000e+00> : vector<16x32xf32>
    %181 = tpu.matmul %178, %180, %cst_102 {dimension_numbers = #tpu.dot_dimension_numbers<[1], [0], [0], [1], [0, 0, 1, 1], [], []>} : vector<16x64xf32>, vector<64x32xf32>, vector<16x32xf32> -> vector<16x32xf32>
    %c15 = arith.constant 15 : index
    %c0_103 = arith.constant 0 : index
    %182 = vector.load %arg3[%c15, %c0_103] : memref<24x128xf32, #tpu.memory_space<vmem>>, vector<1x32xf32>
    %183 = vector.broadcast %182 : vector<1x32xf32> to vector<16x32xf32>
    %184 = arith.addf %181, %183 : vector<16x32xf32>
    %185 = arith.addf %170, %184 : vector<16x32xf32>
    %c18 = arith.constant 18 : index
    %c0_104 = arith.constant 0 : index
    %186 = vector.load %arg3[%c18, %c0_104] : memref<24x128xf32, #tpu.memory_space<vmem>>, vector<1x32xf32>
    %c19 = arith.constant 19 : index
    %c0_105 = arith.constant 0 : index
    %187 = vector.load %arg3[%c19, %c0_105] : memref<24x128xf32, #tpu.memory_space<vmem>>, vector<1x32xf32>
    %cst_106 = arith.constant dense<0.000000e+00> : vector<16xf32>
    %188 = vector.multi_reduction <add>, %185, %cst_106 [1] : vector<16x32xf32> to vector<16xf32>
    %189 = vector.shape_cast %188 : vector<16xf32> to vector<16x1xf32>
    %cst_107 = arith.constant 3.200000e+01 : f32
    %190 = vector.broadcast %cst_107 : f32 to vector<16x1xf32>
    %191 = arith.divf %189, %190 : vector<16x1xf32>
    %192 = vector.broadcast %191 : vector<16x1xf32> to vector<16x32xf32>
    %193 = arith.subf %185, %192 : vector<16x32xf32>
    %194 = arith.mulf %193, %193 : vector<16x32xf32>
    %cst_108 = arith.constant dense<0.000000e+00> : vector<16xf32>
    %195 = vector.multi_reduction <add>, %194, %cst_108 [1] : vector<16x32xf32> to vector<16xf32>
    %196 = vector.shape_cast %195 : vector<16xf32> to vector<16x1xf32>
    %cst_109 = arith.constant 3.200000e+01 : f32
    %197 = vector.broadcast %cst_109 : f32 to vector<16x1xf32>
    %198 = arith.divf %196, %197 : vector<16x1xf32>
    %cst_110 = arith.constant 9.99999974E-6 : f32
    %199 = vector.broadcast %cst_110 : f32 to vector<16x1xf32>
    %200 = arith.addf %198, %199 : vector<16x1xf32>
    %201 = math.rsqrt %200 : vector<16x1xf32>
    %202 = vector.broadcast %201 : vector<16x1xf32> to vector<16x32xf32>
    %203 = arith.mulf %193, %202 : vector<16x32xf32>
    %204 = vector.broadcast %186 : vector<1x32xf32> to vector<16x32xf32>
    %205 = arith.mulf %203, %204 : vector<16x32xf32>
    %206 = vector.broadcast %187 : vector<1x32xf32> to vector<16x32xf32>
    %207 = arith.addf %205, %206 : vector<16x32xf32>
    %c336 = arith.constant 336 : index
    %c0_111 = arith.constant 0 : index
    %208 = vector.load %arg1[%c336, %c0_111] : memref<344x128xf32, #tpu.memory_space<vmem>>, vector<2x16xf32>
    %c176 = arith.constant 176 : index
    %c0_112 = arith.constant 0 : index
    %209 = vector.load %arg1[%c176, %c0_112] : memref<344x128xf32, #tpu.memory_space<vmem>>, vector<32x128xf32>
    %c208 = arith.constant 208 : index
    %c0_113 = arith.constant 0 : index
    %210 = vector.load %arg1[%c208, %c0_113] : memref<344x128xf32, #tpu.memory_space<vmem>>, vector<128x2xf32>
    %c20 = arith.constant 20 : index
    %c0_114 = arith.constant 0 : index
    %211 = vector.load %arg3[%c20, %c0_114] : memref<24x128xf32, #tpu.memory_space<vmem>>, vector<1x128xf32>
    %c21 = arith.constant 21 : index
    %c0_115 = arith.constant 0 : index
    %212 = vector.load %arg3[%c21, %c0_115] : memref<24x128xf32, #tpu.memory_space<vmem>>, vector<1x2xf32>
    %cst_116 = arith.constant dense<0.000000e+00> : vector<2x32xf32>
    %213 = tpu.matmul %208, %207, %cst_116 {dimension_numbers = #tpu.dot_dimension_numbers<[1], [0], [0], [1], [0, 0, 1, 1], [], []>} : vector<2x16xf32>, vector<16x32xf32>, vector<2x32xf32> -> vector<2x32xf32>
    %cst_117 = arith.constant dense<0.000000e+00> : vector<2x128xf32>
    %214 = tpu.matmul %213, %209, %cst_117 {dimension_numbers = #tpu.dot_dimension_numbers<[1], [0], [0], [1], [0, 0, 1, 1], [], []>} : vector<2x32xf32>, vector<32x128xf32>, vector<2x128xf32> -> vector<2x128xf32>
    %215 = vector.broadcast %211 : vector<1x128xf32> to vector<2x128xf32>
    %216 = arith.addf %214, %215 : vector<2x128xf32>
    %cst_118 = arith.constant 0.000000e+00 : f32
    %217 = vector.broadcast %cst_118 : f32 to vector<2x128xf32>
    %218 = arith.maximumf %216, %217 : vector<2x128xf32>
    %cst_119 = arith.constant dense<0.000000e+00> : vector<2x2xf32>
    %219 = tpu.matmul %218, %210, %cst_119 {dimension_numbers = #tpu.dot_dimension_numbers<[1], [0], [0], [1], [0, 0, 1, 1], [], []>} : vector<2x128xf32>, vector<128x2xf32>, vector<2x2xf32> -> vector<2x2xf32>
    %220 = vector.broadcast %212 : vector<1x2xf32> to vector<2x2xf32>
    %221 = arith.addf %219, %220 : vector<2x2xf32>
    %222 = tpu.iota {dimensions = array<i32: 1>} : vector<2x2xi32>
    %cst_120 = arith.constant -1.000000e+06 : f32
    %cst_121 = arith.constant 1.000000e+06 : f32
    %223 = vector.broadcast %cst_120 : f32 to vector<2x2xf32>
    %224 = arith.maximumf %223, %221 : vector<2x2xf32>
    %225 = vector.broadcast %cst_121 : f32 to vector<2x2xf32>
    %226 = arith.minimumf %225, %224 : vector<2x2xf32>
    %cst_122 = arith.constant 0.000000e+00 : f32
    %227 = vector.broadcast %cst_122 : f32 to vector<2x2xf32>
    %228 = arith.subf %227, %221 : vector<2x2xf32>
    %229 = math.exp %228 : vector<2x2xf32>
    %cst_123 = arith.constant 1.000000e+00 : f32
    %230 = vector.broadcast %cst_123 : f32 to vector<2x2xf32>
    %231 = arith.addf %230, %229 : vector<2x2xf32>
    %cst_124 = arith.constant 1.000000e+00 : f32
    %232 = vector.broadcast %cst_124 : f32 to vector<2x2xf32>
    %233 = arith.divf %232, %231 : vector<2x2xf32>
    %cst_125 = arith.constant 0.000000e+00 : f32
    %cst_126 = arith.constant 1.000000e+00 : f32
    %234 = vector.broadcast %cst_125 : f32 to vector<2x2xf32>
    %235 = arith.maximumf %234, %233 : vector<2x2xf32>
    %236 = vector.broadcast %cst_126 : f32 to vector<2x2xf32>
    %237 = arith.minimumf %236, %235 : vector<2x2xf32>
    %c0_i32 = arith.constant 0 : i32
    %238 = vector.broadcast %c0_i32 : i32 to vector<2x2xi32>
    %239 = arith.cmpi eq, %222, %238 : vector<2x2xi32>
    %240 = arith.select %239, %226, %237 : vector<2x2xi1>, vector<2x2xf32>
    %c0_127 = arith.constant 0 : index
    %c0_128 = arith.constant 0 : index
    %241 = vector.load %arg4[%c0_127, %c0_128] : memref<2x2xf32, #tpu.memory_space<vmem>>, vector<2x2xf32>
    tpu.vector_store %arg4[%c0_127, %c0_128], %240 {strides = array<i32>} : memref<2x2xf32, #tpu.memory_space<vmem>>, vector<2x2xf32>,
    return
  }
}

</mosaic_0001>

<llo_original>
// kernel: vehicle_transformer.1
$region0: #{vehicle_transformer.1}
  #allocation0 [shape = 'u32[]', space=smem, size = 0x4, offset = 0x4, fixed_abs, tag = 'smem constant byte address 0x4 - core index']
  #allocation1 [shape = 'u32[144,128]{1,0:T(1,128)}', space=vmem, size = 0x12000, scoped, tag = 'internal scratch']
  %s0 = inlined_call_operand.vmem [shape: f32[16,16], index: 0, kind: input, shape index: {}]
  %s1 = inlined_call_operand.vmem [shape: f32[344,128], index: 1, kind: input, shape index: {}]
  %s2 = inlined_call_operand.vmem [shape: f32[2,224,128], index: 2, kind: input, shape index: {}]
  %s3 = inlined_call_operand.vmem [shape: f32[24,128], index: 3, kind: input, shape index: {}]
  %s4 = inlined_call_operand.vmem [shape: f32[2,2], index: 4, kind: output, shape index: {}]
  %s5 = sld [smem:[#allocation0]]
  $region26: #{vehicle_transformer.1} parent=0
    _
  %s7 = ssub.s32 1, %s5
  %s8 = scalar_select 0, %s7, %s5
  // Predicated region
  $region2: #{vehicle_transformer.1} parent=0 // pred_check
    _
  $region3: #{vehicle_transformer.1} parent=0 // pred_check_branch
    %10 = sbr.rel (0) target = $region5
  $region4: #{vehicle_transformer.1} parent=0 // pred_region
    _
  $region5: #{vehicle_transformer.1} parent=0 // pred_fallthru
    _
  // Predicated region
  $region6: #{vehicle_transformer.1} parent=0 // pred_check
    _
  $region7: #{vehicle_transformer.1} parent=0 // pred_check_branch
    %12 = sbr.rel (0) target = $region9
  $region8: #{vehicle_transformer.1} parent=0 // pred_region
    _
  $region9: #{vehicle_transformer.1} parent=0 // pred_fallthru
    _
  // Predicated region
  $region10: #{vehicle_transformer.1} parent=0 // pred_check
    _
  $region11: #{vehicle_transformer.1} parent=0 // pred_check_branch
    %14 = sbr.rel (0) target = $region13
  $region12: #{vehicle_transformer.1} parent=0 // pred_region
    _
  $region13: #{vehicle_transformer.1} parent=0 // pred_fallthru
    _
  // Predicated region
  $region14: #{vehicle_transformer.1} parent=0 // pred_check
    _
  $region15: #{vehicle_transformer.1} parent=0 // pred_check_branch
    %16 = sbr.rel (0) target = $region17
  $region16: #{vehicle_transformer.1} parent=0 // pred_region
    _
  $region17: #{vehicle_transformer.1} parent=0 // pred_fallthru
    _
  %v17 = vld [vmem:[%s1] sm:$0xff]
  %v18 = vld [vmem:[%s1 + $0x8] sm:$0xff]
  %v19 = vld [vmem:[%s1 + $0x10] sm:$0xff]
  %v20 = vld [vmem:[%s1 + $0x18] sm:$0xff]
  %v21 = vld [vmem:[%s1 + $0x20] sm:$0xff]
  %v22 = vld [vmem:[%s1 + $0x28] sm:$0xff]
  %v23 = vld [vmem:[%s1 + $0x30] sm:$0xff]
  %v24 = vld [vmem:[%s1 + $0x38] sm:$0xff]
  %v25 = vld [vmem:[%s1 + $0x40] sm:$0xff]
  %v26 = vld [vmem:[%s1 + $0x48] sm:$0xff]
  %v27 = vld [vmem:[%s1 + $0x50] sm:$0xff]
  %v28 = vld [vmem:[%s1 + $0x58] sm:$0xff]
  %v29 = vld [vmem:[%s1 + $0x60] sm:$0xff]
  %v30 = vld [vmem:[%s1 + $0x68] sm:$0xff]
  %v31 = vld [vmem:[%s1 + $0x70] sm:$0xff]
  %v32 = vld [vmem:[%s1 + $0x78] sm:$0xff]
  %v33 = vld [vmem:[%s1 + $0x80] sm:$0xff]
  %v34 = vld [vmem:[%s1 + $0x88] sm:$0xff]
  %v35 = vld [vmem:[%s1 + $0x90] sm:$0xff]
  %v36 = vld [vmem:[%s1 + $0x98] sm:$0xff]
  %v37 = vld [vmem:[%s1 + $0xa0] sm:$0xff]
  %v38 = vld [vmem:[%s1 + $0xa8] sm:$0xff]
  %v39 = vld [vmem:[%s0] sm:$0xff]
  %v40 = vld [vmem:[%s0 + $0x8] sm:$0xff]
  %vm41 = vcmask 130048
  %v43 = vsel %vm41, %v39, 0
  %v46 = vsel %vm41, %v40, 0
  %48 = vmatprep.subr.mxu0 0.0
  %49 = vmatpush1.msra.mxu0 %v37
  %50 = vmatprep.subr.mxu0 0.0
  %51 = vmatpush1.msra.mxu0 %v38
  %52 = vmatprep.subr.mxu0 0.0
  %53 = vmatpush1.msra.mxu0 0.0
  %54 = vmatprep.subr.mxu0 0.0
  %55 = vmatpush1.msra.mxu0 0.0
  %56 = vmatprep.subr.mxu0 0.0
  %57 = vmatpush1.msra.mxu0 0.0
  %58 = vmatprep.subr.mxu0 0.0
  %59 = vmatpush1.msra.mxu0 0.0
  %60 = vmatprep.subr.mxu0 0.0
  %61 = vmatpush1.msra.mxu0 0.0
  %62 = vmatprep.subr.mxu0 0.0
  %63 = vmatpush1.msra.mxu0 0.0
  %64 = vmatprep.subr.mxu0 0.0
  %65 = vmatpush1.msra.mxu0 0.0
  %66 = vmatprep.subr.mxu0 0.0
  %67 = vmatpush1.msra.mxu0 0.0
  %68 = vmatprep.subr.mxu0 0.0
  %69 = vmatpush1.msra.mxu0 0.0
  %70 = vmatprep.subr.mxu0 0.0
  %71 = vmatpush1.msra.mxu0 0.0
  %72 = vmatprep.subr.mxu0 0.0
  %73 = vmatpush1.msra.mxu0 0.0
  %74 = vmatprep.subr.mxu0 0.0
  %75 = vmatpush1.msra.mxu0 0.0
  %76 = vmatprep.subr.mxu0 0.0
  %77 = vmatpush1.msra.mxu0 0.0
  %78 = vmatprep.subr.mxu0 0.0
  %79 = vmatpush1.msra.mxu0 0.0
  %80 = vmatprep.subr.mxu0 0.0
  %81 = vmatpush1.msra.mxu0 0.0
  %82 = vmatprep.subr.mxu0 0.0
  %83 = vmatpush1.msra.mxu0 0.0
  %84 = vmatprep.subr.mxu0 0.0
  %85 = vmatpush1.msra.mxu0 0.0
  %86 = vmatprep.subr.mxu0 0.0
  %87 = vmatpush1.msra.mxu0 0.0
  %88 = vmatprep.subr.mxu0 0.0
  %89 = vmatpush1.msra.mxu0 0.0
  %90 = vmatprep.subr.mxu0 0.0
  %91 = vmatpush1.msra.mxu0 0.0
  %92 = vmatprep.subr.mxu0 0.0
  %93 = vmatpush1.msra.mxu0 0.0
  %94 = vmatprep.subr.mxu0 0.0
  %95 = vmatpush1.msra.mxu0 0.0
  %96 = vmatprep.subr.mxu0 0.0
  %97 = vmatpush1.msra.mxu0 0.0
  %98 = vmatprep.subr.mxu0 0.0
  %99 = vmatpush1.msra.mxu0 0.0
  %100 = vmatprep.subr.mxu0 0.0
  %101 = vmatpush1.msra.mxu0 0.0
  %102 = vmatprep.subr.mxu0 0.0
  %103 = vmatpush1.msra.mxu0 0.0
  %104 = vmatprep.subr.mxu0 0.0
  %105 = vmatpush1.msra.mxu0 0.0
  %106 = vmatprep.subr.mxu0 0.0
  %107 = vmatpush1.msra.mxu0 0.0
  %108 = vmatprep.subr.mxu0 0.0
  %109 = vmatpush1.msra.mxu0 0.0
  %110 = vmatprep.subr.mxu0 0.0
  %111 = vmatpush1.msra.mxu0 0.0
  %112 = vmatprep.mubr.f32.mxu0 0.0
  %113 = vmatmul.mubr.f32.gmra.mrb[0].mxu0 %v43
  %v114 = vpop.f32.mrb[0].mxu0
  %v115 = vadd.f32 %v17, %v114
  %v116 = vpop.f32.mrb[0].mxu0
  %117 = vmatprep.mubr.f32.mxu0 0.0
  %118 = vmatmul.mubr.f32.gmra.mrb[0].mxu0 %v46
  %v119 = vpop.f32.mrb[0].mxu0
  %v120 = vadd.f32 %v18, %v119
  %v121 = vpop.f32.mrb[0].mxu0
  %122 = vdwg.mxu0
  %v123 = vld [vmem:[%s2] sm:$0xff]
  %v124 = vld [vmem:[%s2 + $0x8] sm:$0xff]
  %v125 = vld [vmem:[%s2 + $0x10] sm:$0xff]
  %v126 = vld [vmem:[%s2 + $0x18] sm:$0xff]
  %v127 = vld [vmem:[%s3] sm:$0x1]
  %v128 = vlaneseq
  %v129 = vshrl.u32 %v128, 7
  %v130 = vsub.s32 0, %v129
  %v131 = vrot.slane %v127, %v130
  %vm132 = vcmask 261120
  %v134 = vsel %vm132, %v115, 0
  %v137 = vsel %vm132, %v120, 0
  %139 = vmatprep.subr.mxu0 0.0
  %140 = vmatpush1.msra.mxu0 %v123
  %141 = vmatprep.subr.mxu0 0.0
  %142 = vmatpush1.msra.mxu0 %v124
  %143 = vmatprep.subr.mxu0 0.0
  %144 = vmatpush1.msra.mxu0 %v125
  %145 = vmatprep.subr.mxu0 0.0
  %146 = vmatpush1.msra.mxu0 %v126
  %147 = vmatprep.subr.mxu0 0.0
  %148 = vmatpush1.msra.mxu0 0.0
  %149 = vmatprep.subr.mxu0 0.0
  %150 = vmatpush1.msra.mxu0 0.0
  %151 = vmatprep.subr.mxu0 0.0
  %152 = vmatpush1.msra.mxu0 0.0
  %153 = vmatprep.subr.mxu0 0.0
  %154 = vmatpush1.msra.mxu0 0.0
  %155 = vmatprep.subr.mxu0 0.0
  %156 = vmatpush1.msra.mxu0 0.0
  %157 = vmatprep.subr.mxu0 0.0
  %158 = vmatpush1.msra.mxu0 0.0
  %159 = vmatprep.subr.mxu0 0.0
  %160 = vmatpush1.msra.mxu0 0.0
  %161 = vmatprep.subr.mxu0 0.0
  %162 = vmatpush1.msra.mxu0 0.0
  %163 = vmatprep.subr.mxu0 0.0
  %164 = vmatpush1.msra.mxu0 0.0
  %165 = vmatprep.subr.mxu0 0.0
  %166 = vmatpush1.msra.mxu0 0.0
  %167 = vmatprep.subr.mxu0 0.0
  %168 = vmatpush1.msra.mxu0 0.0
  %169 = vmatprep.subr.mxu0 0.0
  %170 = vmatpush1.msra.mxu0 0.0
  %171 = vmatprep.subr.mxu0 0.0
  %172 = vmatpush1.msra.mxu0 0.0
  %173 = vmatprep.subr.mxu0 0.0
  %174 = vmatpush1.msra.mxu0 0.0
  %175 = vmatprep.subr.mxu0 0.0
  %176 = vmatpush1.msra.mxu0 0.0
  %177 = vmatprep.subr.mxu0 0.0
  %178 = vmatpush1.msra.mxu0 0.0
  %179 = vmatprep.subr.mxu0 0.0
  %180 = vmatpush1.msra.mxu0 0.0
  %181 = vmatprep.subr.mxu0 0.0
  %182 = vmatpush1.msra.mxu0 0.0
  %183 = vmatprep.subr.mxu0 0.0
  %184 = vmatpush1.msra.mxu0 0.0
  %185 = vmatprep.subr.mxu0 0.0
  %186 = vmatpush1.msra.mxu0 0.0
  %187 = vmatprep.subr.mxu0 0.0
  %188 = vmatpush1.msra.mxu0 0.0
  %189 = vmatprep.subr.mxu0 0.0
  %190 = vmatpush1.msra.mxu0 0.0
  %191 = vmatprep.subr.mxu0 0.0
  %192 = vmatpush1.msra.mxu0 0.0
  %193 = vmatprep.subr.mxu0 0.0
  %194 = vmatpush1.msra.mxu0 0.0
  %195 = vmatprep.subr.mxu0 0.0
  %196 = vmatpush1.msra.mxu0 0.0
  %197 = vmatprep.subr.mxu0 0.0
  %198 = vmatpush1.msra.mxu0 0.0
  %199 = vmatprep.subr.mxu0 0.0
  %200 = vmatpush1.msra.mxu0 0.0
  %201 = vmatprep.subr.mxu0 0.0
  %202 = vmatpush1.msra.mxu0 0.0
  %203 = vmatprep.mubr.f32.mxu0 0.0
  %204 = vmatmul.mubr.f32.gmra.mrb[0].mxu0 %v134
  %v205 = vpop.f32.mrb[0].mxu0
  %v206 = vadd.f32 %v131, %v205
  %v207 = vpop.f32.mrb[0].mxu0
  %208 = vmatprep.mubr.f32.mxu0 0.0
  %209 = vmatmul.mubr.f32.gmra.mrb[0].mxu0 %v137
  %v210 = vpop.f32.mrb[0].mxu0
  %v211 = vadd.f32 %v131, %v210
  %v212 = vpop.f32.mrb[0].mxu0
  %213 = vdwg.mxu0
  %v214 = vld [vmem:[%s2 + $0x20] sm:$0xff]
  %v215 = vld [vmem:[%s2 + $0x28] sm:$0xff]
  %v216 = vld [vmem:[%s2 + $0x30] sm:$0xff]
  %v217 = vld [vmem:[%s2 + $0x38] sm:$0xff]
  %v218 = vld [vmem:[%s3 + $0x1] sm:$0x1]
  %v219 = vlaneseq
  %v220 = vshrl.u32 %v219, 7
  %v221 = vsub.s32 0, %v220
  %v222 = vrot.slane %v218, %v221
  %223 = vmatprep.subr.mxu0 0.0
  %224 = vmatpush1.msra.mxu0 %v214
  %225 = vmatprep.subr.mxu0 0.0
  %226 = vmatpush1.msra.mxu0 %v215
  %227 = vmatprep.subr.mxu0 0.0
  %228 = vmatpush1.msra.mxu0 %v216
  %229 = vmatprep.subr.mxu0 0.0
  %230 = vmatpush1.msra.mxu0 %v217
  %231 = vmatprep.subr.mxu0 0.0
  %232 = vmatpush1.msra.mxu0 0.0
  %233 = vmatprep.subr.mxu0 0.0
  %234 = vmatpush1.msra.mxu0 0.0
  %235 = vmatprep.subr.mxu0 0.0
  %236 = vmatpush1.msra.mxu0 0.0
  %237 = vmatprep.subr.mxu0 0.0
  %238 = vmatpush1.msra.mxu0 0.0
  %239 = vmatprep.subr.mxu0 0.0
  %240 = vmatpush1.msra.mxu0 0.0
  %241 = vmatprep.subr.mxu0 0.0
  %242 = vmatpush1.msra.mxu0 0.0
  %243 = vmatprep.subr.mxu0 0.0
  %244 = vmatpush1.msra.mxu0 0.0
  %245 = vmatprep.subr.mxu0 0.0
  %246 = vmatpush1.msra.mxu0 0.0
  %247 = vmatprep.subr.mxu0 0.0
  %248 = vmatpush1.msra.mxu0 0.0
  %249 = vmatprep.subr.mxu0 0.0
  %250 = vmatpush1.msra.mxu0 0.0
  %251 = vmatprep.subr.mxu0 0.0
  %252 = vmatpush1.msra.mxu0 0.0
  %253 = vmatprep.subr.mxu0 0.0
  %254 = vmatpush1.msra.mxu0 0.0
  %255 = vmatprep.subr.mxu0 0.0
  %256 = vmatpush1.msra.mxu0 0.0
  %257 = vmatprep.subr.mxu0 0.0
  %258 = vmatpush1.msra.mxu0 0.0
  %259 = vmatprep.subr.mxu0 0.0
  %260 = vmatpush1.msra.mxu0 0.0
  %261 = vmatprep.subr.mxu0 0.0
  %262 = vmatpush1.msra.mxu0 0.0
  %263 = vmatprep.subr.mxu0 0.0
  %264 = vmatpush1.msra.mxu0 0.0
  %265 = vmatprep.subr.mxu0 0.0
  %266 = vmatpush1.msra.mxu0 0.0
  %267 = vmatprep.subr.mxu0 0.0
  %268 = vmatpush1.msra.mxu0 0.0
  %269 = vmatprep.subr.mxu0 0.0
  %270 = vmatpush1.msra.mxu0 0.0
  %271 = vmatprep.subr.mxu0 0.0
  %272 = vmatpush1.msra.mxu0 0.0
  %273 = vmatprep.subr.mxu0 0.0
  %274 = vmatpush1.msra.mxu0 0.0
  %275 = vmatprep.subr.mxu0 0.0
  %276 = vmatpush1.msra.mxu0 0.0
  %277 = vmatprep.subr.mxu0 0.0
  %278 = vmatpush1.msra.mxu0 0.0
  %279 = vmatprep.subr.mxu0 0.0
  %280 = vmatpush1.msra.mxu0 0.0
  %281 = vmatprep.subr.mxu0 0.0
  %282 = vmatpush1.msra.mxu0 0.0
  %283 = vmatprep.subr.mxu0 0.0
  %284 = vmatpush1.msra.mxu0 0.0
  %285 = vmatprep.subr.mxu0 0.0
  %286 = vmatpush1.msra.mxu0 0.0
  %287 = vmatprep.mubr.f32.mxu0 0.0
  %288 = vmatmul.mubr.f32.gmra.mrb[0].mxu0 %v134
  %v289 = vpop.f32.mrb[0].mxu0
  %v290 = vadd.f32 %v222, %v289
  %v291 = vpop.f32.mrb[0].mxu0
  %292 = vmatprep.mubr.f32.mxu0 0.0
  %293 = vmatmul.mubr.f32.gmra.mrb[0].mxu0 %v137
  %v294 = vpop.f32.mrb[0].mxu0
  %v295 = vadd.f32 %v222, %v294
  %v296 = vpop.f32.mrb[0].mxu0
  %297 = vdwg.mxu0
  %v298 = vld [vmem:[%s2 + $0x40] sm:$0xff]
  %v299 = vld [vmem:[%s2 + $0x48] sm:$0xff]
  %v300 = vld [vmem:[%s2 + $0x50] sm:$0xff]
  %v301 = vld [vmem:[%s2 + $0x58] sm:$0xff]
  %v302 = vld [vmem:[%s3 + $0x2] sm:$0x1]
  %v303 = vlaneseq
  %v304 = vshrl.u32 %v303, 7
  %v305 = vsub.s32 0, %v304
  %v306 = vrot.slane %v302, %v305
  %307 = vmatprep.subr.mxu0 0.0
  %308 = vmatpush1.msra.mxu0 %v298
  %309 = vmatprep.subr.mxu0 0.0
  %310 = vmatpush1.msra.mxu0 %v299
  %311 = vmatprep.subr.mxu0 0.0
  %312 = vmatpush1.msra.mxu0 %v300
  %313 = vmatprep.subr.mxu0 0.0
  %314 = vmatpush1.msra.mxu0 %v301
  %315 = vmatprep.subr.mxu0 0.0
  %316 = vmatpush1.msra.mxu0 0.0
  %317 = vmatprep.subr.mxu0 0.0
  %318 = vmatpush1.msra.mxu0 0.0
  %319 = vmatprep.subr.mxu0 0.0
  %320 = vmatpush1.msra.mxu0 0.0
  %321 = vmatprep.subr.mxu0 0.0
  %322 = vmatpush1.msra.mxu0 0.0
  %323 = vmatprep.subr.mxu0 0.0
  %324 = vmatpush1.msra.mxu0 0.0
  %325 = vmatprep.subr.mxu0 0.0
  %326 = vmatpush1.msra.mxu0 0.0
  %327 = vmatprep.subr.mxu0 0.0
  %328 = vmatpush1.msra.mxu0 0.0
  %329 = vmatprep.subr.mxu0 0.0
  %330 = vmatpush1.msra.mxu0 0.0
  %331 = vmatprep.subr.mxu0 0.0
  %332 = vmatpush1.msra.mxu0 0.0
  %333 = vmatprep.subr.mxu0 0.0
  %334 = vmatpush1.msra.mxu0 0.0
  %335 = vmatprep.subr.mxu0 0.0
  %336 = vmatpush1.msra.mxu0 0.0
  %337 = vmatprep.subr.mxu0 0.0
  %338 = vmatpush1.msra.mxu0 0.0
  %339 = vmatprep.subr.mxu0 0.0
  %340 = vmatpush1.msra.mxu0 0.0
  %341 = vmatprep.subr.mxu0 0.0
  %342 = vmatpush1.msra.mxu0 0.0
  %343 = vmatprep.subr.mxu0 0.0
  %344 = vmatpush1.msra.mxu0 0.0
  %345 = vmatprep.subr.mxu0 0.0
  %346 = vmatpush1.msra.mxu0 0.0
  %347 = vmatprep.subr.mxu0 0.0
  %348 = vmatpush1.msra.mxu0 0.0
  %349 = vmatprep.subr.mxu0 0.0
  %350 = vmatpush1.msra.mxu0 0.0
  %351 = vmatprep.subr.mxu0 0.0
  %352 = vmatpush1.msra.mxu0 0.0
  %353 = vmatprep.subr.mxu0 0.0
  %354 = vmatpush1.msra.mxu0 0.0
  %355 = vmatprep.subr.mxu0 0.0
  %356 = vmatpush1.msra.mxu0 0.0
  %357 = vmatprep.subr.mxu0 0.0
  %358 = vmatpush1.msra.mxu0 0.0
  %359 = vmatprep.subr.mxu0 0.0
  %360 = vmatpush1.msra.mxu0 0.0
  %361 = vmatprep.subr.mxu0 0.0
  %362 = vmatpush1.msra.mxu0 0.0
  %363 = vmatprep.subr.mxu0 0.0
  %364 = vmatpush1.msra.mxu0 0.0
  %365 = vmatprep.subr.mxu0 0.0
  %366 = vmatpush1.msra.mxu0 0.0
  %367 = vmatprep.subr.mxu0 0.0
  %368 = vmatpush1.msra.mxu0 0.0
  %369 = vmatprep.subr.mxu0 0.0
  %370 = vmatpush1.msra.mxu0 0.0
  %371 = vmatprep.mubr.f32.mxu0 0.0
  %372 = vmatmul.mubr.f32.gmra.mrb[0].mxu0 %v134
  %v373 = vpop.f32.mrb[0].mxu0
  %v374 = vadd.f32 %v306, %v373
  %v375 = vpop.f32.mrb[0].mxu0
  %376 = vmatprep.mubr.f32.mxu0 0.0
  %377 = vmatmul.mubr.f32.gmra.mrb[0].mxu0 %v137
  %v378 = vpop.f32.mrb[0].mxu0
  %v379 = vadd.f32 %v306, %v378
  %v380 = vpop.f32.mrb[0].mxu0
  %381 = vdwg.mxu0
  %v383 = vsel %vm41, %v29, 0
  %v386 = vsel %vm41, %v30, 0
  %v389 = vsel %vm41, %v31, 0
  %v392 = vsel %vm41, %v32, 0
  %v395 = vsel %vm41, %v33, 0
  %v398 = vsel %vm41, %v34, 0
  %v401 = vsel %vm41, %v35, 0
  %v404 = vsel %vm41, %v36, 0
  %406 = vmatprep.subr.mxu0 0.0
  %407 = vmatpush1.msra.mxu0 %v290
  %408 = vmatprep.subr.mxu0 0.0
  %409 = vmatpush1.msra.mxu0 %v295
  %410 = vmatprep.subr.mxu0 0.0
  %411 = vmatpush1.msra.mxu0 0.0
  %412 = vmatprep.subr.mxu0 0.0
  %413 = vmatpush1.msra.mxu0 0.0
  %414 = vmatprep.subr.mxu0 0.0
  %415 = vmatpush1.msra.mxu0 0.0
  %416 = vmatprep.subr.mxu0 0.0
  %417 = vmatpush1.msra.mxu0 0.0
  %418 = vmatprep.subr.mxu0 0.0
  %419 = vmatpush1.msra.mxu0 0.0
  %420 = vmatprep.subr.mxu0 0.0
  %421 = vmatpush1.msra.mxu0 0.0
  %422 = vmatprep.subr.mxu0 0.0
  %423 = vmatpush1.msra.mxu0 0.0
  %424 = vmatprep.subr.mxu0 0.0
  %425 = vmatpush1.msra.mxu0 0.0
  %426 = vmatprep.subr.mxu0 0.0
  %427 = vmatpush1.msra.mxu0 0.0
  %428 = vmatprep.subr.mxu0 0.0
  %429 = vmatpush1.msra.mxu0 0.0
  %430 = vmatprep.subr.mxu0 0.0
  %431 = vmatpush1.msra.mxu0 0.0
  %432 = vmatprep.subr.mxu0 0.0
  %433 = vmatpush1.msra.mxu0 0.0
  %434 = vmatprep.subr.mxu0 0.0
  %435 = vmatpush1.msra.mxu0 0.0
  %436 = vmatprep.subr.mxu0 0.0
  %437 = vmatpush1.msra.mxu0 0.0
  %438 = vmatprep.subr.mxu0 0.0
  %439 = vmatpush1.msra.mxu0 0.0
  %440 = vmatprep.subr.mxu0 0.0
  %441 = vmatpush1.msra.mxu0 0.0
  %442 = vmatprep.subr.mxu0 0.0
  %443 = vmatpush1.msra.mxu0 0.0
  %444 = vmatprep.subr.mxu0 0.0
  %445 = vmatpush1.msra.mxu0 0.0
  %446 = vmatprep.subr.mxu0 0.0
  %447 = vmatpush1.msra.mxu0 0.0
  %448 = vmatprep.subr.mxu0 0.0
  %449 = vmatpush1.msra.mxu0 0.0
  %450 = vmatprep.subr.mxu0 0.0
  %451 = vmatpush1.msra.mxu0 0.0
  %452 = vmatprep.subr.mxu0 0.0
  %453 = vmatpush1.msra.mxu0 0.0
  %454 = vmatprep.subr.mxu0 0.0
  %455 = vmatpush1.msra.mxu0 0.0
  %456 = vmatprep.subr.mxu0 0.0
  %457 = vmatpush1.msra.mxu0 0.0
  %458 = vmatprep.subr.mxu0 0.0
  %459 = vmatpush1.msra.mxu0 0.0
  %460 = vmatprep.subr.mxu0 0.0
  %461 = vmatpush1.msra.mxu0 0.0
  %462 = vmatprep.subr.mxu0 0.0
  %463 = vmatpush1.msra.mxu0 0.0
  %464 = vmatprep.subr.mxu0 0.0
  %465 = vmatpush1.msra.mxu0 0.0
  %466 = vmatprep.subr.mxu0 0.0
  %467 = vmatpush1.msra.mxu0 0.0
  %468 = vmatprep.subr.mxu0 0.0
  %469 = vmatpush1.msra.mxu0 0.0
  %470 = vmatprep.mubr.f32.mxu0 0.0
  %471 = vmatmul.mubr.f32.gmra.mrb[0].mxu0 %v383
  %v472 = vpop.f32.mrb[0].mxu0
  %v473 = vadd.f32 0.0, %v472
  %v474 = vpop.f32.mrb[0].mxu0
  %475 = vmatprep.mubr.f32.mxu0 0.0
  %476 = vmatmul.mubr.f32.gmra.mrb[0].mxu0 %v386
  %v477 = vpop.f32.mrb[0].mxu0
  %v478 = vadd.f32 0.0, %v477
  %v479 = vpop.f32.mrb[0].mxu0
  %480 = vmatprep.mubr.f32.mxu0 0.0
  %481 = vmatmul.mubr.f32.gmra.mrb[0].mxu0 %v389
  %v482 = vpop.f32.mrb[0].mxu0
  %v483 = vadd.f32 0.0, %v482
  %v484 = vpop.f32.mrb[0].mxu0
  %485 = vmatprep.mubr.f32.mxu0 0.0
  %486 = vmatmul.mubr.f32.gmra.mrb[0].mxu0 %v392
  %v487 = vpop.f32.mrb[0].mxu0
  %v488 = vadd.f32 0.0, %v487
  %v489 = vpop.f32.mrb[0].mxu0
  %490 = vmatprep.mubr.f32.mxu0 0.0
  %491 = vmatmul.mubr.f32.gmra.mrb[0].mxu0 %v395
  %v492 = vpop.f32.mrb[0].mxu0
  %v493 = vadd.f32 0.0, %v492
  %v494 = vpop.f32.mrb[0].mxu0
  %495 = vmatprep.mubr.f32.mxu0 0.0
  %496 = vmatmul.mubr.f32.gmra.mrb[0].mxu0 %v398
  %v497 = vpop.f32.mrb[0].mxu0
  %v498 = vadd.f32 0.0, %v497
  %v499 = vpop.f32.mrb[0].mxu0
  %500 = vmatprep.mubr.f32.mxu0 0.0
  %501 = vmatmul.mubr.f32.gmra.mrb[0].mxu0 %v401
  %v502 = vpop.f32.mrb[0].mxu0
  %v503 = vadd.f32 0.0, %v502
  %v504 = vpop.f32.mrb[0].mxu0
  %505 = vmatprep.mubr.f32.mxu0 0.0
  %506 = vmatmul.mubr.f32.gmra.mrb[0].mxu0 %v404
  %v507 = vpop.f32.mrb[0].mxu0
  %v508 = vadd.f32 0.0, %v507
  %v509 = vpop.f32.mrb[0].mxu0
  %510 = vdwg.mxu0
  %v511 = vmul.f32 %v473, %v21
  %v512 = vmul.f32 %v478, %v22
  %v513 = vmul.f32 %v483, %v23
  %v514 = vmul.f32 %v488, %v24
  %v515 = vmul.f32 %v493, %v25
  %v516 = vmul.f32 %v498, %v26
  %v517 = vmul.f32 %v503, %v27
  %v518 = vmul.f32 %v508, %v28
  %519 = vmatprep.subr.mxu0 0.0
  %520 = vmatpush1.msra.mxu0 %v374
  %521 = vmatprep.subr.mxu0 0.0
  %522 = vmatpush1.msra.mxu0 %v379
  %523 = vmatprep.subr.mxu0 0.0
  %524 = vmatpush1.msra.mxu0 0.0
  %525 = vmatprep.subr.mxu0 0.0
  %526 = vmatpush1.msra.mxu0 0.0
  %527 = vmatprep.subr.mxu0 0.0
  %528 = vmatpush1.msra.mxu0 0.0
  %529 = vmatprep.subr.mxu0 0.0
  %530 = vmatpush1.msra.mxu0 0.0
  %531 = vmatprep.subr.mxu0 0.0
  %532 = vmatpush1.msra.mxu0 0.0
  %533 = vmatprep.subr.mxu0 0.0
  %534 = vmatpush1.msra.mxu0 0.0
  %535 = vmatprep.subr.mxu0 0.0
  %536 = vmatpush1.msra.mxu0 0.0
  %537 = vmatprep.subr.mxu0 0.0
  %538 = vmatpush1.msra.mxu0 0.0
  %539 = vmatprep.subr.mxu0 0.0
  %540 = vmatpush1.msra.mxu0 0.0
  %541 = vmatprep.subr.mxu0 0.0
  %542 = vmatpush1.msra.mxu0 0.0
  %543 = vmatprep.subr.mxu0 0.0
  %544 = vmatpush1.msra.mxu0 0.0
  %545 = vmatprep.subr.mxu0 0.0
  %546 = vmatpush1.msra.mxu0 0.0
  %547 = vmatprep.subr.mxu0 0.0
  %548 = vmatpush1.msra.mxu0 0.0
  %549 = vmatprep.subr.mxu0 0.0
  %550 = vmatpush1.msra.mxu0 0.0
  %551 = vmatprep.subr.mxu0 0.0
  %552 = vmatpush1.msra.mxu0 0.0
  %553 = vmatprep.subr.mxu0 0.0
  %554 = vmatpush1.msra.mxu0 0.0
  %555 = vmatprep.subr.mxu0 0.0
  %556 = vmatpush1.msra.mxu0 0.0
  %557 = vmatprep.subr.mxu0 0.0
  %558 = vmatpush1.msra.mxu0 0.0
  %559 = vmatprep.subr.mxu0 0.0
  %560 = vmatpush1.msra.mxu0 0.0
  %561 = vmatprep.subr.mxu0 0.0
  %562 = vmatpush1.msra.mxu0 0.0
  %563 = vmatprep.subr.mxu0 0.0
  %564 = vmatpush1.msra.mxu0 0.0
  %565 = vmatprep.subr.mxu0 0.0
  %566 = vmatpush1.msra.mxu0 0.0
  %567 = vmatprep.subr.mxu0 0.0
  %568 = vmatpush1.msra.mxu0 0.0
  %569 = vmatprep.subr.mxu0 0.0
  %570 = vmatpush1.msra.mxu0 0.0
  %571 = vmatprep.subr.mxu0 0.0
  %572 = vmatpush1.msra.mxu0 0.0
  %573 = vmatprep.subr.mxu0 0.0
  %574 = vmatpush1.msra.mxu0 0.0
  %575 = vmatprep.subr.mxu0 0.0
  %576 = vmatpush1.msra.mxu0 0.0
  %577 = vmatprep.subr.mxu0 0.0
  %578 = vmatpush1.msra.mxu0 0.0
  %579 = vmatprep.subr.mxu0 0.0
  %580 = vmatpush1.msra.mxu0 0.0
  %581 = vmatprep.subr.mxu0 0.0
  %582 = vmatpush1.msra.mxu0 0.0
  %583 = vmatprep.mubr.f32.mxu0 0.0
  %584 = vmatmul.mubr.f32.gmra.mrb[0].mxu0 %v383
  %v585 = vpop.f32.mrb[0].mxu0
  %v586 = vadd.f32 0.0, %v585
  %v587 = vpop.f32.mrb[0].mxu0
  %588 = vmatprep.mubr.f32.mxu0 0.0
  %589 = vmatmul.mubr.f32.gmra.mrb[0].mxu0 %v386
  %v590 = vpop.f32.mrb[0].mxu0
  %v591 = vadd.f32 0.0, %v590
  %v592 = vpop.f32.mrb[0].mxu0
  %593 = vmatprep.mubr.f32.mxu0 0.0
  %594 = vmatmul.mubr.f32.gmra.mrb[0].mxu0 %v389
  %v595 = vpop.f32.mrb[0].mxu0
  %v596 = vadd.f32 0.0, %v595
  %v597 = vpop.f32.mrb[0].mxu0
  %598 = vmatprep.mubr.f32.mxu0 0.0
  %599 = vmatmul.mubr.f32.gmra.mrb[0].mxu0 %v392
  %v600 = vpop.f32.mrb[0].mxu0
  %v601 = vadd.f32 0.0, %v600
  %v602 = vpop.f32.mrb[0].mxu0
  %603 = vmatprep.mubr.f32.mxu0 0.0
  %604 = vmatmul.mubr.f32.gmra.mrb[0].mxu0 %v395
  %v605 = vpop.f32.mrb[0].mxu0
  %v606 = vadd.f32 0.0, %v605
  %v607 = vpop.f32.mrb[0].mxu0
  %608 = vmatprep.mubr.f32.mxu0 0.0
  %609 = vmatmul.mubr.f32.gmra.mrb[0].mxu0 %v398
  %v610 = vpop.f32.mrb[0].mxu0
  %v611 = vadd.f32 0.0, %v610
  %v612 = vpop.f32.mrb[0].mxu0
  %613 = vmatprep.mubr.f32.mxu0 0.0
  %614 = vmatmul.mubr.f32.gmra.mrb[0].mxu0 %v401
  %v615 = vpop.f32.mrb[0].mxu0
  %v616 = vadd.f32 0.0, %v615
  %v617 = vpop.f32.mrb[0].mxu0
  %618 = vmatprep.mubr.f32.mxu0 0.0
  %619 = vmatmul.mubr.f32.gmra.mrb[0].mxu0 %v404
  %v620 = vpop.f32.mrb[0].mxu0
  %v621 = vadd.f32 0.0, %v620
  %v622 = vpop.f32.mrb[0].mxu0
  %623 = vdwg.mxu0
  %v624 = vmul.f32 %v586, %v21
  %v625 = vmul.f32 %v591, %v22
  %v626 = vmul.f32 %v596, %v23
  %v627 = vmul.f32 %v601, %v24
  %v628 = vmul.f32 %v606, %v25
  %v629 = vmul.f32 %v611, %v26
  %v630 = vmul.f32 %v616, %v27
  %v631 = vmul.f32 %v621, %v28
  %v633 = vsel %vm132, %v206, 0
  %v636 = vsel %vm132, %v211, 0
  %v639 = vsel %vm132, %v511, 0
  %v642 = vsel %vm132, %v512, 0
  %v645 = vsel %vm132, %v513, 0
  %v648 = vsel %vm132, %v514, 0
  %v651 = vsel %vm132, %v515, 0
  %v654 = vsel %vm132, %v516, 0
  %v657 = vsel %vm132, %v517, 0
  %v660 = vsel %vm132, %v518, 0
  %662 = vmatprep.subr.mxu0 0.0
  %663 = vmatpush1.xpose.msra.mxu0 %v639
  %664 = vmatprep.subr.mxu0 0.0
  %665 = vmatpush1.xpose.msra.mxu0 %v642
  %666 = vmatprep.subr.mxu0 0.0
  %667 = vmatpush1.xpose.msra.mxu0 %v645
  %668 = vmatprep.subr.mxu0 0.0
  %669 = vmatpush1.xpose.msra.mxu0 %v648
  %670 = vmatprep.subr.mxu0 0.0
  %671 = vmatpush1.xpose.msra.mxu0 %v651
  %672 = vmatprep.subr.mxu0 0.0
  %673 = vmatpush1.xpose.msra.mxu0 %v654
  %674 = vmatprep.subr.mxu0 0.0
  %675 = vmatpush1.xpose.msra.mxu0 %v657
  %676 = vmatprep.subr.mxu0 0.0
  %677 = vmatpush1.xpose.msra.mxu0 %v660
  %678 = vmatprep.subr.mxu0 0.0
  %679 = vmatpush1.xpose.msra.mxu0 0.0
  %680 = vmatprep.subr.mxu0 0.0
  %681 = vmatpush1.xpose.msra.mxu0 0.0
  %682 = vmatprep.subr.mxu0 0.0
  %683 = vmatpush1.xpose.msra.mxu0 0.0
  %684 = vmatprep.subr.mxu0 0.0
  %685 = vmatpush1.xpose.msra.mxu0 0.0
  %686 = vmatprep.subr.mxu0 0.0
  %687 = vmatpush1.xpose.msra.mxu0 0.0
  %688 = vmatprep.subr.mxu0 0.0
  %689 = vmatpush1.xpose.msra.mxu0 0.0
  %690 = vmatprep.subr.mxu0 0.0
  %691 = vmatpush1.xpose.msra.mxu0 0.0
  %692 = vmatprep.subr.mxu0 0.0
  %693 = vmatpush1.xpose.msra.mxu0 0.0
  %694 = vmatprep.subr.mxu0 0.0
  %695 = vmatpush1.xpose.msra.mxu0 0.0
  %696 = vmatprep.subr.mxu0 0.0
  %697 = vmatpush1.xpose.msra.mxu0 0.0
  %698 = vmatprep.subr.mxu0 0.0
  %699 = vmatpush1.xpose.msra.mxu0 0.0
  %700 = vmatprep.subr.mxu0 0.0
  %701 = vmatpush1.xpose.msra.mxu0 0.0
  %702 = vmatprep.subr.mxu0 0.0
  %703 = vmatpush1.xpose.msra.mxu0 0.0
  %704 = vmatprep.subr.mxu0 0.0
  %705 = vmatpush1.xpose.msra.mxu0 0.0
  %706 = vmatprep.subr.mxu0 0.0
  %707 = vmatpush1.xpose.msra.mxu0 0.0
  %708 = vmatprep.subr.mxu0 0.0
  %709 = vmatpush1.xpose.msra.mxu0 0.0
  %710 = vmatprep.subr.mxu0 0.0
  %711 = vmatpush1.xpose.msra.mxu0 0.0
  %712 = vmatprep.subr.mxu0 0.0
  %713 = vmatpush1.xpose.msra.mxu0 0.0
  %714 = vmatprep.subr.mxu0 0.0
  %715 = vmatpush1.xpose.msra.mxu0 0.0
  %716 = vmatprep.subr.mxu0 0.0
  %717 = vmatpush1.xpose.msra.mxu0 0.0
  %718 = vmatprep.subr.mxu0 0.0
  %719 = vmatpush1.xpose.msra.mxu0 0.0
  %720 = vmatprep.subr.mxu0 0.0
  %721 = vmatpush1.xpose.msra.mxu0 0.0
  %722 = vmatprep.subr.mxu0 0.0
  %723 = vmatpush1.xpose.msra.mxu0 0.0
  %724 = vmatprep.subr.mxu0 0.0
  %725 = vmatpush1.xpose.msra.mxu0 0.0
  %726 = vmatprep.mubr.f32.mxu0 0.0
  %727 = vmatmul.mubr.f32.gmra.mrb[0].mxu0 %v633
  %v728 = vpop.f32.mrb[0].mxu0
  %v729 = vadd.f32 0.0, %v728
  %v730 = vpop.f32.mrb[0].mxu0
  %731 = vmatprep.mubr.f32.mxu0 0.0
  %732 = vmatmul.mubr.f32.gmra.mrb[0].mxu0 %v636
  %v733 = vpop.f32.mrb[0].mxu0
  %v734 = vadd.f32 0.0, %v733
  %v735 = vpop.f32.mrb[0].mxu0
  %736 = vdwg.mxu0
  %v737 = vmul.f32 %v729, 0.35355338
  %v738 = vmul.f32 %v734, 0.35355338
  %v739 = vadd.f32 %v737, %v19
  %v740 = vadd.f32 %v738, %v20
  %vm741 = vcmask 523264
  %v742 = vsel %vm741, %v739, -inf
  %743 = vmax.xlane.f32.xlu0 %v742
  %v744 = vpop.xlane.xlu0 %743
  %v745 = vsel %vm741, %v740, -inf
  %746 = vmax.xlane.f32.xlu0 %v745
  %v747 = vpop.xlane.xlu0 %746
  %v748 = vsub.f32 %v739, %v744
  %v749 = vsub.f32 %v740, %v747
  %v750 = vmul.f32 %v748, 1.442695
  %v751 = vpow.pop %v750
  %v752 = vmul.f32 %v749, 1.442695
  %v753 = vpow.pop %v752
  %v755 = vsel %vm741, %v751, 0
  %v758 = vsel %vm741, %v753, 0
  %760 = vmatprep.subr.mxu0 0.0
  %761 = vmatpush1.msra.mxu0 %v624
  %762 = vmatprep.subr.mxu0 0.0
  %763 = vmatpush1.msra.mxu0 %v625
  %764 = vmatprep.subr.mxu0 0.0
  %765 = vmatpush1.msra.mxu0 %v626
  %766 = vmatprep.subr.mxu0 0.0
  %767 = vmatpush1.msra.mxu0 %v627
  %768 = vmatprep.subr.mxu0 0.0
  %769 = vmatpush1.msra.mxu0 %v628
  %770 = vmatprep.subr.mxu0 0.0
  %771 = vmatpush1.msra.mxu0 %v629
  %772 = vmatprep.subr.mxu0 0.0
  %773 = vmatpush1.msra.mxu0 %v630
  %774 = vmatprep.subr.mxu0 0.0
  %775 = vmatpush1.msra.mxu0 %v631
  %776 = vmatprep.subr.mxu0 0.0
  %777 = vmatpush1.msra.mxu0 0.0
  %778 = vmatprep.subr.mxu0 0.0
  %779 = vmatpush1.msra.mxu0 0.0
  %780 = vmatprep.subr.mxu0 0.0
  %781 = vmatpush1.msra.mxu0 0.0
  %782 = vmatprep.subr.mxu0 0.0
  %783 = vmatpush1.msra.mxu0 0.0
  %784 = vmatprep.subr.mxu0 0.0
  %785 = vmatpush1.msra.mxu0 0.0
  %786 = vmatprep.subr.mxu0 0.0
  %787 = vmatpush1.msra.mxu0 0.0
  %788 = vmatprep.subr.mxu0 0.0
  %789 = vmatpush1.msra.mxu0 0.0
  %790 = vmatprep.subr.mxu0 0.0
  %791 = vmatpush1.msra.mxu0 0.0
  %792 = vmatprep.subr.mxu0 0.0
  %793 = vmatpush1.msra.mxu0 0.0
  %794 = vmatprep.subr.mxu0 0.0
  %795 = vmatpush1.msra.mxu0 0.0
  %796 = vmatprep.subr.mxu0 0.0
  %797 = vmatpush1.msra.mxu0 0.0
  %798 = vmatprep.subr.mxu0 0.0
  %799 = vmatpush1.msra.mxu0 0.0
  %800 = vmatprep.subr.mxu0 0.0
  %801 = vmatpush1.msra.mxu0 0.0
  %802 = vmatprep.subr.mxu0 0.0
  %803 = vmatpush1.msra.mxu0 0.0
  %804 = vmatprep.subr.mxu0 0.0
  %805 = vmatpush1.msra.mxu0 0.0
  %806 = vmatprep.subr.mxu0 0.0
  %807 = vmatpush1.msra.mxu0 0.0
  %808 = vmatprep.subr.mxu0 0.0
  %809 = vmatpush1.msra.mxu0 0.0
  %810 = vmatprep.subr.mxu0 0.0
  %811 = vmatpush1.msra.mxu0 0.0
  %812 = vmatprep.subr.mxu0 0.0
  %813 = vmatpush1.msra.mxu0 0.0
  %814 = vmatprep.subr.mxu0 0.0
  %815 = vmatpush1.msra.mxu0 0.0
  %816 = vmatprep.subr.mxu0 0.0
  %817 = vmatpush1.msra.mxu0 0.0
  %818 = vmatprep.subr.mxu0 0.0
  %819 = vmatpush1.msra.mxu0 0.0
  %820 = vmatprep.subr.mxu0 0.0
  %821 = vmatpush1.msra.mxu0 0.0
  %822 = vmatprep.subr.mxu0 0.0
  %823 = vmatpush1.msra.mxu0 0.0
  %824 = vmatprep.mubr.f32.mxu0 0.0
  %825 = vmatmul.mubr.f32.gmra.mrb[0].mxu0 %v755
  %v826 = vpop.f32.mrb[0].mxu0
  %v827 = vadd.f32 0.0, %v826
  %v828 = vpop.f32.mrb[0].mxu0
  %829 = vmatprep.mubr.f32.mxu0 0.0
  %830 = vmatmul.mubr.f32.gmra.mrb[0].mxu0 %v758
  %v831 = vpop.f32.mrb[0].mxu0
  %v832 = vadd.f32 0.0, %v831
  %v833 = vpop.f32.mrb[0].mxu0
  %834 = vdwg.mxu0
  %835 = vmatprep.subr.mxu0 0.0
  %836 = vmatpush1.msra.mxu0 %v21
  %837 = vmatprep.subr.mxu0 0.0
  %838 = vmatpush1.msra.mxu0 %v22
  %839 = vmatprep.subr.mxu0 0.0
  %840 = vmatpush1.msra.mxu0 %v23
  %841 = vmatprep.subr.mxu0 0.0
  %842 = vmatpush1.msra.mxu0 %v24
  %843 = vmatprep.subr.mxu0 0.0
  %844 = vmatpush1.msra.mxu0 %v25
  %845 = vmatprep.subr.mxu0 0.0
  %846 = vmatpush1.msra.mxu0 %v26
  %847 = vmatprep.subr.mxu0 0.0
  %848 = vmatpush1.msra.mxu0 %v27
  %849 = vmatprep.subr.mxu0 0.0
  %850 = vmatpush1.msra.mxu0 %v28
  %851 = vmatprep.subr.mxu0 0.0
  %852 = vmatpush1.msra.mxu0 0.0
  %853 = vmatprep.subr.mxu0 0.0
  %854 = vmatpush1.msra.mxu0 0.0
  %855 = vmatprep.subr.mxu0 0.0
  %856 = vmatpush1.msra.mxu0 0.0
  %857 = vmatprep.subr.mxu0 0.0
  %858 = vmatpush1.msra.mxu0 0.0
  %859 = vmatprep.subr.mxu0 0.0
  %860 = vmatpush1.msra.mxu0 0.0
  %861 = vmatprep.subr.mxu0 0.0
  %862 = vmatpush1.msra.mxu0 0.0
  %863 = vmatprep.subr.mxu0 0.0
  %864 = vmatpush1.msra.mxu0 0.0
  %865 = vmatprep.subr.mxu0 0.0
  %866 = vmatpush1.msra.mxu0 0.0
  %867 = vmatprep.subr.mxu0 0.0
  %868 = vmatpush1.msra.mxu0 0.0
  %869 = vmatprep.subr.mxu0 0.0
  %870 = vmatpush1.msra.mxu0 0.0
  %871 = vmatprep.subr.mxu0 0.0
  %872 = vmatpush1.msra.mxu0 0.0
  %873 = vmatprep.subr.mxu0 0.0
  %874 = vmatpush1.msra.mxu0 0.0
  %875 = vmatprep.subr.mxu0 0.0
  %876 = vmatpush1.msra.mxu0 0.0
  %877 = vmatprep.subr.mxu0 0.0
  %878 = vmatpush1.msra.mxu0 0.0
  %879 = vmatprep.subr.mxu0 0.0
  %880 = vmatpush1.msra.mxu0 0.0
  %881 = vmatprep.subr.mxu0 0.0
  %882 = vmatpush1.msra.mxu0 0.0
  %883 = vmatprep.subr.mxu0 0.0
  %884 = vmatpush1.msra.mxu0 0.0
  %885 = vmatprep.subr.mxu0 0.0
  %886 = vmatpush1.msra.mxu0 0.0
  %887 = vmatprep.subr.mxu0 0.0
  %888 = vmatpush1.msra.mxu0 0.0
  %889 = vmatprep.subr.mxu0 0.0
  %890 = vmatpush1.msra.mxu0 0.0
  %891 = vmatprep.subr.mxu0 0.0
  %892 = vmatpush1.msra.mxu0 0.0
  %893 = vmatprep.subr.mxu0 0.0
  %894 = vmatpush1.msra.mxu0 0.0
  %895 = vmatprep.subr.mxu0 0.0
  %896 = vmatpush1.msra.mxu0 0.0
  %897 = vmatprep.subr.mxu0 0.0
  %898 = vmatpush1.msra.mxu0 0.0
  %899 = vmatprep.mubr.f32.mxu0 0.0
  %900 = vmatmul.mubr.f32.gmra.mrb[0].mxu0 %v755
  %v901 = vpop.f32.mrb[0].mxu0
  %v902 = vadd.f32 0.0, %v901
  %v903 = vpop.f32.mrb[0].mxu0
  %904 = vmatprep.mubr.f32.mxu0 0.0
  %905 = vmatmul.mubr.f32.gmra.mrb[0].mxu0 %v758
  %v906 = vpop.f32.mrb[0].mxu0
  %v907 = vadd.f32 0.0, %v906
  %v908 = vpop.f32.mrb[0].mxu0
  %909 = vdwg.mxu0
  %v910 = vrcp.pop %v902
  %v911 = vmul.f32 %v827, %v910
  %v912 = vrcp.pop %v907
  %v913 = vmul.f32 %v832, %v912
  %v914 = vld [vmem:[%s2 + $0x60] sm:$0xff]
  %v915 = vld [vmem:[%s2 + $0x68] sm:$0xff]
  %v916 = vld [vmem:[%s2 + $0x70] sm:$0xff]
  %v917 = vld [vmem:[%s2 + $0x78] sm:$0xff]
  %v918 = vld [vmem:[%s3 + $0x3] sm:$0x1]
  %v919 = vlaneseq
  %v920 = vshrl.u32 %v919, 7
  %v921 = vsub.s32 0, %v920
  %v922 = vrot.slane %v918, %v921
  %v924 = vsel %vm132, %v911, 0
  %v927 = vsel %vm132, %v913, 0
  %929 = vmatprep.subr.mxu0 0.0
  %930 = vmatpush1.msra.mxu0 %v914
  %931 = vmatprep.subr.mxu0 0.0
  %932 = vmatpush1.msra.mxu0 %v915
  %933 = vmatprep.subr.mxu0 0.0
  %934 = vmatpush1.msra.mxu0 %v916
  %935 = vmatprep.subr.mxu0 0.0
  %936 = vmatpush1.msra.mxu0 %v917
  %937 = vmatprep.subr.mxu0 0.0
  %938 = vmatpush1.msra.mxu0 0.0
  %939 = vmatprep.subr.mxu0 0.0
  %940 = vmatpush1.msra.mxu0 0.0
  %941 = vmatprep.subr.mxu0 0.0
  %942 = vmatpush1.msra.mxu0 0.0
  %943 = vmatprep.subr.mxu0 0.0
  %944 = vmatpush1.msra.mxu0 0.0
  %945 = vmatprep.subr.mxu0 0.0
  %946 = vmatpush1.msra.mxu0 0.0
  %947 = vmatprep.subr.mxu0 0.0
  %948 = vmatpush1.msra.mxu0 0.0
  %949 = vmatprep.subr.mxu0 0.0
  %950 = vmatpush1.msra.mxu0 0.0
  %951 = vmatprep.subr.mxu0 0.0
  %952 = vmatpush1.msra.mxu0 0.0
  %953 = vmatprep.subr.mxu0 0.0
  %954 = vmatpush1.msra.mxu0 0.0
  %955 = vmatprep.subr.mxu0 0.0
  %956 = vmatpush1.msra.mxu0 0.0
  %957 = vmatprep.subr.mxu0 0.0
  %958 = vmatpush1.msra.mxu0 0.0
  %959 = vmatprep.subr.mxu0 0.0
  %960 = vmatpush1.msra.mxu0 0.0
  %961 = vmatprep.subr.mxu0 0.0
  %962 = vmatpush1.msra.mxu0 0.0
  %963 = vmatprep.subr.mxu0 0.0
  %964 = vmatpush1.msra.mxu0 0.0
  %965 = vmatprep.subr.mxu0 0.0
  %966 = vmatpush1.msra.mxu0 0.0
  %967 = vmatprep.subr.mxu0 0.0
  %968 = vmatpush1.msra.mxu0 0.0
  %969 = vmatprep.subr.mxu0 0.0
  %970 = vmatpush1.msra.mxu0 0.0
  %971 = vmatprep.subr.mxu0 0.0
  %972 = vmatpush1.msra.mxu0 0.0
  %973 = vmatprep.subr.mxu0 0.0
  %974 = vmatpush1.msra.mxu0 0.0
  %975 = vmatprep.subr.mxu0 0.0
  %976 = vmatpush1.msra.mxu0 0.0
  %977 = vmatprep.subr.mxu0 0.0
  %978 = vmatpush1.msra.mxu0 0.0
  %979 = vmatprep.subr.mxu0 0.0
  %980 = vmatpush1.msra.mxu0 0.0
  %981 = vmatprep.subr.mxu0 0.0
  %982 = vmatpush1.msra.mxu0 0.0
  %983 = vmatprep.subr.mxu0 0.0
  %984 = vmatpush1.msra.mxu0 0.0
  %985 = vmatprep.subr.mxu0 0.0
  %986 = vmatpush1.msra.mxu0 0.0
  %987 = vmatprep.subr.mxu0 0.0
  %988 = vmatpush1.msra.mxu0 0.0
  %989 = vmatprep.subr.mxu0 0.0
  %990 = vmatpush1.msra.mxu0 0.0
  %991 = vmatprep.subr.mxu0 0.0
  %992 = vmatpush1.msra.mxu0 0.0
  %993 = vmatprep.mubr.f32.mxu0 0.0
  %994 = vmatmul.mubr.f32.gmra.mrb[0].mxu0 %v924
  %v995 = vpop.f32.mrb[0].mxu0
  %v996 = vadd.f32 %v922, %v995
  %v997 = vpop.f32.mrb[0].mxu0
  %998 = vmatprep.mubr.f32.mxu0 0.0
  %999 = vmatmul.mubr.f32.gmra.mrb[0].mxu0 %v927
  %v1000 = vpop.f32.mrb[0].mxu0
  %v1001 = vadd.f32 %v922, %v1000
  %v1002 = vpop.f32.mrb[0].mxu0
  %1003 = vdwg.mxu0
  %v1004 = vadd.f32 %v115, %v996
  %v1005 = vadd.f32 %v120, %v1001
  %v1006 = vld [vmem:[%s3 + $0x6] sm:$0x1]
  %v1007 = vld [vmem:[%s3 + $0x7] sm:$0x1]
  %v1008 = vsel %vm132, %v1004, 0.0
  %1009 = vadd.xlane.f32.xlu0 %v1008
  %v1010 = vpop.xlane.xlu0 %1009
  %v1011 = vsel %vm132, %v1005, 0.0
  %1012 = vadd.xlane.f32.xlu0 %v1011
  %v1013 = vpop.xlane.xlu0 %1012
  %v1014 = vrcp.pop 32.0
  %v1015 = vmul.f32 %v1010, %v1014
  %v1016 = vmul.f32 %v1013, %v1014
  %v1017 = vsub.f32 %v1004, %v1015
  %v1018 = vsub.f32 %v1005, %v1016
  %v1019 = vmul.f32 %v1017, %v1017
  %v1020 = vmul.f32 %v1018, %v1018
  %v1021 = vsel %vm132, %v1019, 0.0
  %1022 = vadd.xlane.f32.xlu0 %v1021
  %v1023 = vpop.xlane.xlu0 %1022
  %v1024 = vsel %vm132, %v1020, 0.0
  %1025 = vadd.xlane.f32.xlu0 %v1024
  %v1026 = vpop.xlane.xlu0 %1025
  %v1027 = vmul.f32 %v1023, %v1014
  %v1028 = vmul.f32 %v1026, %v1014
  %v1029 = vadd.f32 %v1027, 1e-05
  %v1030 = vadd.f32 %v1028, 1e-05
  %v1031 = vrsqrt.pop %v1029
  %v1032 = vrsqrt.pop %v1030
  %v1033 = vmul.f32 %v1017, %v1031
  %v1034 = vmul.f32 %v1018, %v1032
  %v1035 = vlaneseq
  %v1036 = vshrl.u32 %v1035, 7
  %v1037 = vsub.s32 0, %v1036
  %v1038 = vrot.slane %v1006, %v1037
  %v1039 = vmul.f32 %v1033, %v1038
  %v1040 = vmul.f32 %v1034, %v1038
  %v1041 = vlaneseq
  %v1042 = vshrl.u32 %v1041, 7
  %v1043 = vsub.s32 0, %v1042
  %v1044 = vrot.slane %v1007, %v1043
  %v1045 = vadd.f32 %v1039, %v1044
  %v1046 = vadd.f32 %v1040, %v1044
  %v1047 = vld [vmem:[%s2 + $0x80] sm:$0xff]
  %v1048 = vld [vmem:[%s2 + $0x88] sm:$0xff]
  %v1049 = vld [vmem:[%s2 + $0x90] sm:$0xff]
  %v1050 = vld [vmem:[%s2 + $0x98] sm:$0xff]
  %v1051 = vld [vmem:[%s3 + $0x4] sm:$0x1]
  %v1052 = vlaneseq
  %v1053 = vshrl.u32 %v1052, 7
  %v1054 = vsub.s32 0, %v1053
  %v1055 = vrot.slane %v1051, %v1054
  %v1057 = vsel %vm132, %v1045, 0
  %v1060 = vsel %vm132, %v1046, 0
  %1062 = vmatprep.subr.mxu0 0.0
  %1063 = vmatpush1.msra.mxu0 %v1047
  %1064 = vmatprep.subr.mxu0 0.0
  %1065 = vmatpush1.msra.mxu0 %v1048
  %1066 = vmatprep.subr.mxu0 0.0
  %1067 = vmatpush1.msra.mxu0 %v1049
  %1068 = vmatprep.subr.mxu0 0.0
  %1069 = vmatpush1.msra.mxu0 %v1050
  %1070 = vmatprep.subr.mxu0 0.0
  %1071 = vmatpush1.msra.mxu0 0.0
  %1072 = vmatprep.subr.mxu0 0.0
  %1073 = vmatpush1.msra.mxu0 0.0
  %1074 = vmatprep.subr.mxu0 0.0
  %1075 = vmatpush1.msra.mxu0 0.0
  %1076 = vmatprep.subr.mxu0 0.0
  %1077 = vmatpush1.msra.mxu0 0.0
  %1078 = vmatprep.subr.mxu0 0.0
  %1079 = vmatpush1.msra.mxu0 0.0
  %1080 = vmatprep.subr.mxu0 0.0
  %1081 = vmatpush1.msra.mxu0 0.0
  %1082 = vmatprep.subr.mxu0 0.0
  %1083 = vmatpush1.msra.mxu0 0.0
  %1084 = vmatprep.subr.mxu0 0.0
  %1085 = vmatpush1.msra.mxu0 0.0
  %1086 = vmatprep.subr.mxu0 0.0
  %1087 = vmatpush1.msra.mxu0 0.0
  %1088 = vmatprep.subr.mxu0 0.0
  %1089 = vmatpush1.msra.mxu0 0.0
  %1090 = vmatprep.subr.mxu0 0.0
  %1091 = vmatpush1.msra.mxu0 0.0
  %1092 = vmatprep.subr.mxu0 0.0
  %1093 = vmatpush1.msra.mxu0 0.0
  %1094 = vmatprep.subr.mxu0 0.0
  %1095 = vmatpush1.msra.mxu0 0.0
  %1096 = vmatprep.subr.mxu0 0.0
  %1097 = vmatpush1.msra.mxu0 0.0
  %1098 = vmatprep.subr.mxu0 0.0
  %1099 = vmatpush1.msra.mxu0 0.0
  %1100 = vmatprep.subr.mxu0 0.0
  %1101 = vmatpush1.msra.mxu0 0.0
  %1102 = vmatprep.subr.mxu0 0.0
  %1103 = vmatpush1.msra.mxu0 0.0
  %1104 = vmatprep.subr.mxu0 0.0
  %1105 = vmatpush1.msra.mxu0 0.0
  %1106 = vmatprep.subr.mxu0 0.0
  %1107 = vmatpush1.msra.mxu0 0.0
  %1108 = vmatprep.subr.mxu0 0.0
  %1109 = vmatpush1.msra.mxu0 0.0
  %1110 = vmatprep.subr.mxu0 0.0
  %1111 = vmatpush1.msra.mxu0 0.0
  %1112 = vmatprep.subr.mxu0 0.0
  %1113 = vmatpush1.msra.mxu0 0.0
  %1114 = vmatprep.subr.mxu0 0.0
  %1115 = vmatpush1.msra.mxu0 0.0
  %1116 = vmatprep.subr.mxu0 0.0
  %1117 = vmatpush1.msra.mxu0 0.0
  %1118 = vmatprep.subr.mxu0 0.0
  %1119 = vmatpush1.msra.mxu0 0.0
  %1120 = vmatprep.subr.mxu0 0.0
  %1121 = vmatpush1.msra.mxu0 0.0
  %1122 = vmatprep.subr.mxu0 0.0
  %1123 = vmatpush1.msra.mxu0 0.0
  %1124 = vmatprep.subr.mxu0 0.0
  %1125 = vmatpush1.msra.mxu0 0.0
  %1126 = vmatprep.mubr.f32.mxu0 0.0
  %1127 = vmatmul.mubr.f32.gmra.mrb[0].mxu0 %v1057
  %v1128 = vpop.f32.mrb[0].mxu0
  %v1129 = vadd.f32 %v1055, %v1128
  %v1130 = vpop.f32.mrb[0].mxu0
  %1131 = vmatprep.mubr.f32.mxu0 0.0
  %1132 = vmatmul.mubr.f32.gmra.mrb[0].mxu0 %v1060
  %v1133 = vpop.f32.mrb[0].mxu0
  %v1134 = vadd.f32 %v1055, %v1133
  %v1135 = vpop.f32.mrb[0].mxu0
  %1136 = vdwg.mxu0
  %v1137 = vmax.f32 %v1129, 0.0
  %v1138 = vmax.f32 %v1134, 0.0
  %v1139 = vld [vmem:[%s2 + $0xa0] sm:$0xff]
  %v1140 = vld [vmem:[%s2 + $0xa8] sm:$0xff]
  %v1141 = vld [vmem:[%s2 + $0xb0] sm:$0xff]
  %v1142 = vld [vmem:[%s2 + $0xb8] sm:$0xff]
  %v1143 = vld [vmem:[%s2 + $0xc0] sm:$0xff]
  %v1144 = vld [vmem:[%s2 + $0xc8] sm:$0xff]
  %v1145 = vld [vmem:[%s2 + $0xd0] sm:$0xff]
  %v1146 = vld [vmem:[%s2 + $0xd8] sm:$0xff]
  %v1147 = vld [vmem:[%s3 + $0x5] sm:$0x1]
  %v1148 = vlaneseq
  %v1149 = vshrl.u32 %v1148, 7
  %v1150 = vsub.s32 0, %v1149
  %v1151 = vrot.slane %v1147, %v1150
  %v1153 = vsel %vm741, %v1137, 0
  %v1156 = vsel %vm741, %v1138, 0
  %1158 = vmatprep.subr.mxu0 0.0
  %1159 = vmatpush1.msra.mxu0 %v1139
  %1160 = vmatprep.subr.mxu0 0.0
  %1161 = vmatpush1.msra.mxu0 %v1140
  %1162 = vmatprep.subr.mxu0 0.0
  %1163 = vmatpush1.msra.mxu0 %v1141
  %1164 = vmatprep.subr.mxu0 0.0
  %1165 = vmatpush1.msra.mxu0 %v1142
  %1166 = vmatprep.subr.mxu0 0.0
  %1167 = vmatpush1.msra.mxu0 %v1143
  %1168 = vmatprep.subr.mxu0 0.0
  %1169 = vmatpush1.msra.mxu0 %v1144
  %1170 = vmatprep.subr.mxu0 0.0
  %1171 = vmatpush1.msra.mxu0 %v1145
  %1172 = vmatprep.subr.mxu0 0.0
  %1173 = vmatpush1.msra.mxu0 %v1146
  %1174 = vmatprep.subr.mxu0 0.0
  %1175 = vmatpush1.msra.mxu0 0.0
  %1176 = vmatprep.subr.mxu0 0.0
  %1177 = vmatpush1.msra.mxu0 0.0
  %1178 = vmatprep.subr.mxu0 0.0
  %1179 = vmatpush1.msra.mxu0 0.0
  %1180 = vmatprep.subr.mxu0 0.0
  %1181 = vmatpush1.msra.mxu0 0.0
  %1182 = vmatprep.subr.mxu0 0.0
  %1183 = vmatpush1.msra.mxu0 0.0
  %1184 = vmatprep.subr.mxu0 0.0
  %1185 = vmatpush1.msra.mxu0 0.0
  %1186 = vmatprep.subr.mxu0 0.0
  %1187 = vmatpush1.msra.mxu0 0.0
  %1188 = vmatprep.subr.mxu0 0.0
  %1189 = vmatpush1.msra.mxu0 0.0
  %1190 = vmatprep.subr.mxu0 0.0
  %1191 = vmatpush1.msra.mxu0 0.0
  %1192 = vmatprep.subr.mxu0 0.0
  %1193 = vmatpush1.msra.mxu0 0.0
  %1194 = vmatprep.subr.mxu0 0.0
  %1195 = vmatpush1.msra.mxu0 0.0
  %1196 = vmatprep.subr.mxu0 0.0
  %1197 = vmatpush1.msra.mxu0 0.0
  %1198 = vmatprep.subr.mxu0 0.0
  %1199 = vmatpush1.msra.mxu0 0.0
  %1200 = vmatprep.subr.mxu0 0.0
  %1201 = vmatpush1.msra.mxu0 0.0
  %1202 = vmatprep.subr.mxu0 0.0
  %1203 = vmatpush1.msra.mxu0 0.0
  %1204 = vmatprep.subr.mxu0 0.0
  %1205 = vmatpush1.msra.mxu0 0.0
  %1206 = vmatprep.subr.mxu0 0.0
  %1207 = vmatpush1.msra.mxu0 0.0
  %1208 = vmatprep.subr.mxu0 0.0
  %1209 = vmatpush1.msra.mxu0 0.0
  %1210 = vmatprep.subr.mxu0 0.0
  %1211 = vmatpush1.msra.mxu0 0.0
  %1212 = vmatprep.subr.mxu0 0.0
  %1213 = vmatpush1.msra.mxu0 0.0
  %1214 = vmatprep.subr.mxu0 0.0
  %1215 = vmatpush1.msra.mxu0 0.0
  %1216 = vmatprep.subr.mxu0 0.0
  %1217 = vmatpush1.msra.mxu0 0.0
  %1218 = vmatprep.subr.mxu0 0.0
  %1219 = vmatpush1.msra.mxu0 0.0
  %1220 = vmatprep.subr.mxu0 0.0
  %1221 = vmatpush1.msra.mxu0 0.0
  %1222 = vmatprep.mubr.f32.mxu0 0.0
  %1223 = vmatmul.mubr.f32.gmra.mrb[0].mxu0 %v1153
  %v1224 = vpop.f32.mrb[0].mxu0
  %v1225 = vadd.f32 %v1151, %v1224
  %v1226 = vpop.f32.mrb[0].mxu0
  %1227 = vmatprep.mubr.f32.mxu0 0.0
  %1228 = vmatmul.mubr.f32.gmra.mrb[0].mxu0 %v1156
  %v1229 = vpop.f32.mrb[0].mxu0
  %v1230 = vadd.f32 %v1151, %v1229
  %v1231 = vpop.f32.mrb[0].mxu0
  %1232 = vdwg.mxu0
  %v1233 = vadd.f32 %v1045, %v1225
  %v1234 = vadd.f32 %v1046, %v1230
  %v1235 = vld [vmem:[%s3 + $0x8] sm:$0x1]
  %v1236 = vld [vmem:[%s3 + $0x9] sm:$0x1]
  %v1237 = vsel %vm132, %v1233, 0.0
  %1238 = vadd.xlane.f32.xlu0 %v1237
  %v1239 = vpop.xlane.xlu0 %1238
  %v1240 = vsel %vm132, %v1234, 0.0
  %1241 = vadd.xlane.f32.xlu0 %v1240
  %v1242 = vpop.xlane.xlu0 %1241
  %v1243 = vmul.f32 %v1239, %v1014
  %v1244 = vmul.f32 %v1242, %v1014
  %v1245 = vsub.f32 %v1233, %v1243
  %v1246 = vsub.f32 %v1234, %v1244
  %v1247 = vmul.f32 %v1245, %v1245
  %v1248 = vmul.f32 %v1246, %v1246
  %v1249 = vsel %vm132, %v1247, 0.0
  %1250 = vadd.xlane.f32.xlu0 %v1249
  %v1251 = vpop.xlane.xlu0 %1250
  %v1252 = vsel %vm132, %v1248, 0.0
  %1253 = vadd.xlane.f32.xlu0 %v1252
  %v1254 = vpop.xlane.xlu0 %1253
  %v1255 = vmul.f32 %v1251, %v1014
  %v1256 = vmul.f32 %v1254, %v1014
  %v1257 = vadd.f32 %v1255, 1e-05
  %v1258 = vadd.f32 %v1256, 1e-05
  %v1259 = vrsqrt.pop %v1257
  %v1260 = vrsqrt.pop %v1258
  %v1261 = vmul.f32 %v1245, %v1259
  %v1262 = vmul.f32 %v1246, %v1260
  %v1263 = vlaneseq
  %v1264 = vshrl.u32 %v1263, 7
  %v1265 = vsub.s32 0, %v1264
  %v1266 = vrot.slane %v1235, %v1265
  %v1267 = vmul.f32 %v1261, %v1266
  %v1268 = vmul.f32 %v1262, %v1266
  %v1269 = vlaneseq
  %v1270 = vshrl.u32 %v1269, 7
  %v1271 = vsub.s32 0, %v1270
  %v1272 = vrot.slane %v1236, %v1271
  %v1273 = vadd.f32 %v1267, %v1272
  %v1274 = vadd.f32 %v1268, %v1272
  %s1275 = scalar_lea.vmem %s2, 224
  %v1276 = vld [vmem:[%s1275] sm:$0xff]
  %v1277 = vld [vmem:[%s1275 + $0x8] sm:$0xff]
  %v1278 = vld [vmem:[%s1275 + $0x10] sm:$0xff]
  %v1279 = vld [vmem:[%s1275 + $0x18] sm:$0xff]
  %v1280 = vld [vmem:[%s3 + $0xa] sm:$0x1]
  %v1281 = vlaneseq
  %v1282 = vshrl.u32 %v1281, 7
  %v1283 = vsub.s32 0, %v1282
  %v1284 = vrot.slane %v1280, %v1283
  %v1286 = vsel %vm132, %v1273, 0
  %v1289 = vsel %vm132, %v1274, 0
  %1291 = vmatprep.subr.mxu0 0.0
  %1292 = vmatpush1.msra.mxu0 %v1276
  %1293 = vmatprep.subr.mxu0 0.0
  %1294 = vmatpush1.msra.mxu0 %v1277
  %1295 = vmatprep.subr.mxu0 0.0
  %1296 = vmatpush1.msra.mxu0 %v1278
  %1297 = vmatprep.subr.mxu0 0.0
  %1298 = vmatpush1.msra.mxu0 %v1279
  %1299 = vmatprep.subr.mxu0 0.0
  %1300 = vmatpush1.msra.mxu0 0.0
  %1301 = vmatprep.subr.mxu0 0.0
  %1302 = vmatpush1.msra.mxu0 0.0
  %1303 = vmatprep.subr.mxu0 0.0
  %1304 = vmatpush1.msra.mxu0 0.0
  %1305 = vmatprep.subr.mxu0 0.0
  %1306 = vmatpush1.msra.mxu0 0.0
  %1307 = vmatprep.subr.mxu0 0.0
  %1308 = vmatpush1.msra.mxu0 0.0
  %1309 = vmatprep.subr.mxu0 0.0
  %1310 = vmatpush1.msra.mxu0 0.0
  %1311 = vmatprep.subr.mxu0 0.0
  %1312 = vmatpush1.msra.mxu0 0.0
  %1313 = vmatprep.subr.mxu0 0.0
  %1314 = vmatpush1.msra.mxu0 0.0
  %1315 = vmatprep.subr.mxu0 0.0
  %1316 = vmatpush1.msra.mxu0 0.0
  %1317 = vmatprep.subr.mxu0 0.0
  %1318 = vmatpush1.msra.mxu0 0.0
  %1319 = vmatprep.subr.mxu0 0.0
  %1320 = vmatpush1.msra.mxu0 0.0
  %1321 = vmatprep.subr.mxu0 0.0
  %1322 = vmatpush1.msra.mxu0 0.0
  %1323 = vmatprep.subr.mxu0 0.0
  %1324 = vmatpush1.msra.mxu0 0.0
  %1325 = vmatprep.subr.mxu0 0.0
  %1326 = vmatpush1.msra.mxu0 0.0
  %1327 = vmatprep.subr.mxu0 0.0
  %1328 = vmatpush1.msra.mxu0 0.0
  %1329 = vmatprep.subr.mxu0 0.0
  %1330 = vmatpush1.msra.mxu0 0.0
  %1331 = vmatprep.subr.mxu0 0.0
  %1332 = vmatpush1.msra.mxu0 0.0
  %1333 = vmatprep.subr.mxu0 0.0
  %1334 = vmatpush1.msra.mxu0 0.0
  %1335 = vmatprep.subr.mxu0 0.0
  %1336 = vmatpush1.msra.mxu0 0.0
  %1337 = vmatprep.subr.mxu0 0.0
  %1338 = vmatpush1.msra.mxu0 0.0
  %1339 = vmatprep.subr.mxu0 0.0
  %1340 = vmatpush1.msra.mxu0 0.0
  %1341 = vmatprep.subr.mxu0 0.0
  %1342 = vmatpush1.msra.mxu0 0.0
  %1343 = vmatprep.subr.mxu0 0.0
  %1344 = vmatpush1.msra.mxu0 0.0
  %1345 = vmatprep.subr.mxu0 0.0
  %1346 = vmatpush1.msra.mxu0 0.0
  %1347 = vmatprep.subr.mxu0 0.0
  %1348 = vmatpush1.msra.mxu0 0.0
  %1349 = vmatprep.subr.mxu0 0.0
  %1350 = vmatpush1.msra.mxu0 0.0
  %1351 = vmatprep.subr.mxu0 0.0
  %1352 = vmatpush1.msra.mxu0 0.0
  %1353 = vmatprep.subr.mxu0 0.0
  %1354 = vmatpush1.msra.mxu0 0.0
  %1355 = vmatprep.mubr.f32.mxu0 0.0
  %1356 = vmatmul.mubr.f32.gmra.mrb[0].mxu0 %v1286
  %v1357 = vpop.f32.mrb[0].mxu0
  %v1358 = vadd.f32 %v1284, %v1357
  %v1359 = vpop.f32.mrb[0].mxu0
  %1360 = vmatprep.mubr.f32.mxu0 0.0
  %1361 = vmatmul.mubr.f32.gmra.mrb[0].mxu0 %v1289
  %v1362 = vpop.f32.mrb[0].mxu0
  %v1363 = vadd.f32 %v1284, %v1362
  %v1364 = vpop.f32.mrb[0].mxu0
  %1365 = vdwg.mxu0
  %v1366 = vld [vmem:[%s1275 + $0x20] sm:$0xff]
  %v1367 = vld [vmem:[%s1275 + $0x28] sm:$0xff]
  %v1368 = vld [vmem:[%s1275 + $0x30] sm:$0xff]
  %v1369 = vld [vmem:[%s1275 + $0x38] sm:$0xff]
  %v1370 = vld [vmem:[%s3 + $0xb] sm:$0x1]
  %v1371 = vlaneseq
  %v1372 = vshrl.u32 %v1371, 7
  %v1373 = vsub.s32 0, %v1372
  %v1374 = vrot.slane %v1370, %v1373
  %1375 = vmatprep.subr.mxu0 0.0
  %1376 = vmatpush1.msra.mxu0 %v1366
  %1377 = vmatprep.subr.mxu0 0.0
  %1378 = vmatpush1.msra.mxu0 %v1367
  %1379 = vmatprep.subr.mxu0 0.0
  %1380 = vmatpush1.msra.mxu0 %v1368
  %1381 = vmatprep.subr.mxu0 0.0
  %1382 = vmatpush1.msra.mxu0 %v1369
  %1383 = vmatprep.subr.mxu0 0.0
  %1384 = vmatpush1.msra.mxu0 0.0
  %1385 = vmatprep.subr.mxu0 0.0
  %1386 = vmatpush1.msra.mxu0 0.0
  %1387 = vmatprep.subr.mxu0 0.0
  %1388 = vmatpush1.msra.mxu0 0.0
  %1389 = vmatprep.subr.mxu0 0.0
  %1390 = vmatpush1.msra.mxu0 0.0
  %1391 = vmatprep.subr.mxu0 0.0
  %1392 = vmatpush1.msra.mxu0 0.0
  %1393 = vmatprep.subr.mxu0 0.0
  %1394 = vmatpush1.msra.mxu0 0.0
  %1395 = vmatprep.subr.mxu0 0.0
  %1396 = vmatpush1.msra.mxu0 0.0
  %1397 = vmatprep.subr.mxu0 0.0
  %1398 = vmatpush1.msra.mxu0 0.0
  %1399 = vmatprep.subr.mxu0 0.0
  %1400 = vmatpush1.msra.mxu0 0.0
  %1401 = vmatprep.subr.mxu0 0.0
  %1402 = vmatpush1.msra.mxu0 0.0
  %1403 = vmatprep.subr.mxu0 0.0
  %1404 = vmatpush1.msra.mxu0 0.0
  %1405 = vmatprep.subr.mxu0 0.0
  %1406 = vmatpush1.msra.mxu0 0.0
  %1407 = vmatprep.subr.mxu0 0.0
  %1408 = vmatpush1.msra.mxu0 0.0
  %1409 = vmatprep.subr.mxu0 0.0
  %1410 = vmatpush1.msra.mxu0 0.0
  %1411 = vmatprep.subr.mxu0 0.0
  %1412 = vmatpush1.msra.mxu0 0.0
  %1413 = vmatprep.subr.mxu0 0.0
  %1414 = vmatpush1.msra.mxu0 0.0
  %1415 = vmatprep.subr.mxu0 0.0
  %1416 = vmatpush1.msra.mxu0 0.0
  %1417 = vmatprep.subr.mxu0 0.0
  %1418 = vmatpush1.msra.mxu0 0.0
  %1419 = vmatprep.subr.mxu0 0.0
  %1420 = vmatpush1.msra.mxu0 0.0
  %1421 = vmatprep.subr.mxu0 0.0
  %1422 = vmatpush1.msra.mxu0 0.0
  %1423 = vmatprep.subr.mxu0 0.0
  %1424 = vmatpush1.msra.mxu0 0.0
  %1425 = vmatprep.subr.mxu0 0.0
  %1426 = vmatpush1.msra.mxu0 0.0
  %1427 = vmatprep.subr.mxu0 0.0
  %1428 = vmatpush1.msra.mxu0 0.0
  %1429 = vmatprep.subr.mxu0 0.0
  %1430 = vmatpush1.msra.mxu0 0.0
  %1431 = vmatprep.subr.mxu0 0.0
  %1432 = vmatpush1.msra.mxu0 0.0
  %1433 = vmatprep.subr.mxu0 0.0
  %1434 = vmatpush1.msra.mxu0 0.0
  %1435 = vmatprep.subr.mxu0 0.0
  %1436 = vmatpush1.msra.mxu0 0.0
  %1437 = vmatprep.subr.mxu0 0.0
  %1438 = vmatpush1.msra.mxu0 0.0
  %1439 = vmatprep.mubr.f32.mxu0 0.0
  %1440 = vmatmul.mubr.f32.gmra.mrb[0].mxu0 %v1286
  %v1441 = vpop.f32.mrb[0].mxu0
  %v1442 = vadd.f32 %v1374, %v1441
  %v1443 = vpop.f32.mrb[0].mxu0
  %1444 = vmatprep.mubr.f32.mxu0 0.0
  %1445 = vmatmul.mubr.f32.gmra.mrb[0].mxu0 %v1289
  %v1446 = vpop.f32.mrb[0].mxu0
  %v1447 = vadd.f32 %v1374, %v1446
  %v1448 = vpop.f32.mrb[0].mxu0
  %1449 = vdwg.mxu0
  %v1450 = vld [vmem:[%s1275 + $0x40] sm:$0xff]
  %v1451 = vld [vmem:[%s1275 + $0x48] sm:$0xff]
  %v1452 = vld [vmem:[%s1275 + $0x50] sm:$0xff]
  %v1453 = vld [vmem:[%s1275 + $0x58] sm:$0xff]
  %v1454 = vld [vmem:[%s3 + $0xc] sm:$0x1]
  %v1455 = vlaneseq
  %v1456 = vshrl.u32 %v1455, 7
  %v1457 = vsub.s32 0, %v1456
  %v1458 = vrot.slane %v1454, %v1457
  %1459 = vmatprep.subr.mxu0 0.0
  %1460 = vmatpush1.msra.mxu0 %v1450
  %1461 = vmatprep.subr.mxu0 0.0
  %1462 = vmatpush1.msra.mxu0 %v1451
  %1463 = vmatprep.subr.mxu0 0.0
  %1464 = vmatpush1.msra.mxu0 %v1452
  %1465 = vmatprep.subr.mxu0 0.0
  %1466 = vmatpush1.msra.mxu0 %v1453
  %1467 = vmatprep.subr.mxu0 0.0
  %1468 = vmatpush1.msra.mxu0 0.0
  %1469 = vmatprep.subr.mxu0 0.0
  %1470 = vmatpush1.msra.mxu0 0.0
  %1471 = vmatprep.subr.mxu0 0.0
  %1472 = vmatpush1.msra.mxu0 0.0
  %1473 = vmatprep.subr.mxu0 0.0
  %1474 = vmatpush1.msra.mxu0 0.0
  %1475 = vmatprep.subr.mxu0 0.0
  %1476 = vmatpush1.msra.mxu0 0.0
  %1477 = vmatprep.subr.mxu0 0.0
  %1478 = vmatpush1.msra.mxu0 0.0
  %1479 = vmatprep.subr.mxu0 0.0
  %1480 = vmatpush1.msra.mxu0 0.0
  %1481 = vmatprep.subr.mxu0 0.0
  %1482 = vmatpush1.msra.mxu0 0.0
  %1483 = vmatprep.subr.mxu0 0.0
  %1484 = vmatpush1.msra.mxu0 0.0
  %1485 = vmatprep.subr.mxu0 0.0
  %1486 = vmatpush1.msra.mxu0 0.0
  %1487 = vmatprep.subr.mxu0 0.0
  %1488 = vmatpush1.msra.mxu0 0.0
  %1489 = vmatprep.subr.mxu0 0.0
  %1490 = vmatpush1.msra.mxu0 0.0
  %1491 = vmatprep.subr.mxu0 0.0
  %1492 = vmatpush1.msra.mxu0 0.0
  %1493 = vmatprep.subr.mxu0 0.0
  %1494 = vmatpush1.msra.mxu0 0.0
  %1495 = vmatprep.subr.mxu0 0.0
  %1496 = vmatpush1.msra.mxu0 0.0
  %1497 = vmatprep.subr.mxu0 0.0
  %1498 = vmatpush1.msra.mxu0 0.0
  %1499 = vmatprep.subr.mxu0 0.0
  %1500 = vmatpush1.msra.mxu0 0.0
  %1501 = vmatprep.subr.mxu0 0.0
  %1502 = vmatpush1.msra.mxu0 0.0
  %1503 = vmatprep.subr.mxu0 0.0
  %1504 = vmatpush1.msra.mxu0 0.0
  %1505 = vmatprep.subr.mxu0 0.0
  %1506 = vmatpush1.msra.mxu0 0.0
  %1507 = vmatprep.subr.mxu0 0.0
  %1508 = vmatpush1.msra.mxu0 0.0
  %1509 = vmatprep.subr.mxu0 0.0
  %1510 = vmatpush1.msra.mxu0 0.0
  %1511 = vmatprep.subr.mxu0 0.0
  %1512 = vmatpush1.msra.mxu0 0.0
  %1513 = vmatprep.subr.mxu0 0.0
  %1514 = vmatpush1.msra.mxu0 0.0
  %1515 = vmatprep.subr.mxu0 0.0
  %1516 = vmatpush1.msra.mxu0 0.0
  %1517 = vmatprep.subr.mxu0 0.0
  %1518 = vmatpush1.msra.mxu0 0.0
  %1519 = vmatprep.subr.mxu0 0.0
  %1520 = vmatpush1.msra.mxu0 0.0
  %1521 = vmatprep.subr.mxu0 0.0
  %1522 = vmatpush1.msra.mxu0 0.0
  %1523 = vmatprep.mubr.f32.mxu0 0.0
  %1524 = vmatmul.mubr.f32.gmra.mrb[0].mxu0 %v1286
  %v1525 = vpop.f32.mrb[0].mxu0
  %v1526 = vadd.f32 %v1458, %v1525
  %v1527 = vpop.f32.mrb[0].mxu0
  %1528 = vmatprep.mubr.f32.mxu0 0.0
  %1529 = vmatmul.mubr.f32.gmra.mrb[0].mxu0 %v1289
  %v1530 = vpop.f32.mrb[0].mxu0
  %v1531 = vadd.f32 %v1458, %v1530
  %v1532 = vpop.f32.mrb[0].mxu0
  %1533 = vdwg.mxu0
  %1534 = vmatprep.subr.mxu0 0.0
  %1535 = vmatpush1.msra.mxu0 %v1442
  %1536 = vmatprep.subr.mxu0 0.0
  %1537 = vmatpush1.msra.mxu0 %v1447
  %1538 = vmatprep.subr.mxu0 0.0
  %1539 = vmatpush1.msra.mxu0 0.0
  %1540 = vmatprep.subr.mxu0 0.0
  %1541 = vmatpush1.msra.mxu0 0.0
  %1542 = vmatprep.subr.mxu0 0.0
  %1543 = vmatpush1.msra.mxu0 0.0
  %1544 = vmatprep.subr.mxu0 0.0
  %1545 = vmatpush1.msra.mxu0 0.0
  %1546 = vmatprep.subr.mxu0 0.0
  %1547 = vmatpush1.msra.mxu0 0.0
  %1548 = vmatprep.subr.mxu0 0.0
  %1549 = vmatpush1.msra.mxu0 0.0
  %1550 = vmatprep.subr.mxu0 0.0
  %1551 = vmatpush1.msra.mxu0 0.0
  %1552 = vmatprep.subr.mxu0 0.0
  %1553 = vmatpush1.msra.mxu0 0.0
  %1554 = vmatprep.subr.mxu0 0.0
  %1555 = vmatpush1.msra.mxu0 0.0
  %1556 = vmatprep.subr.mxu0 0.0
  %1557 = vmatpush1.msra.mxu0 0.0
  %1558 = vmatprep.subr.mxu0 0.0
  %1559 = vmatpush1.msra.mxu0 0.0
  %1560 = vmatprep.subr.mxu0 0.0
  %1561 = vmatpush1.msra.mxu0 0.0
  %1562 = vmatprep.subr.mxu0 0.0
  %1563 = vmatpush1.msra.mxu0 0.0
  %1564 = vmatprep.subr.mxu0 0.0
  %1565 = vmatpush1.msra.mxu0 0.0
  %1566 = vmatprep.subr.mxu0 0.0
  %1567 = vmatpush1.msra.mxu0 0.0
  %1568 = vmatprep.subr.mxu0 0.0
  %1569 = vmatpush1.msra.mxu0 0.0
  %1570 = vmatprep.subr.mxu0 0.0
  %1571 = vmatpush1.msra.mxu0 0.0
  %1572 = vmatprep.subr.mxu0 0.0
  %1573 = vmatpush1.msra.mxu0 0.0
  %1574 = vmatprep.subr.mxu0 0.0
  %1575 = vmatpush1.msra.mxu0 0.0
  %1576 = vmatprep.subr.mxu0 0.0
  %1577 = vmatpush1.msra.mxu0 0.0
  %1578 = vmatprep.subr.mxu0 0.0
  %1579 = vmatpush1.msra.mxu0 0.0
  %1580 = vmatprep.subr.mxu0 0.0
  %1581 = vmatpush1.msra.mxu0 0.0
  %1582 = vmatprep.subr.mxu0 0.0
  %1583 = vmatpush1.msra.mxu0 0.0
  %1584 = vmatprep.subr.mxu0 0.0
  %1585 = vmatpush1.msra.mxu0 0.0
  %1586 = vmatprep.subr.mxu0 0.0
  %1587 = vmatpush1.msra.mxu0 0.0
  %1588 = vmatprep.subr.mxu0 0.0
  %1589 = vmatpush1.msra.mxu0 0.0
  %1590 = vmatprep.subr.mxu0 0.0
  %1591 = vmatpush1.msra.mxu0 0.0
  %1592 = vmatprep.subr.mxu0 0.0
  %1593 = vmatpush1.msra.mxu0 0.0
  %1594 = vmatprep.subr.mxu0 0.0
  %1595 = vmatpush1.msra.mxu0 0.0
  %1596 = vmatprep.subr.mxu0 0.0
  %1597 = vmatpush1.msra.mxu0 0.0
  %1598 = vmatprep.mubr.f32.mxu0 0.0
  %1599 = vmatmul.mubr.f32.gmra.mrb[0].mxu0 %v383
  %v1600 = vpop.f32.mrb[0].mxu0
  %v1601 = vadd.f32 0.0, %v1600
  %v1602 = vpop.f32.mrb[0].mxu0
  %1603 = vmatprep.mubr.f32.mxu0 0.0
  %1604 = vmatmul.mubr.f32.gmra.mrb[0].mxu0 %v386
  %v1605 = vpop.f32.mrb[0].mxu0
  %v1606 = vadd.f32 0.0, %v1605
  %v1607 = vpop.f32.mrb[0].mxu0
  %1608 = vmatprep.mubr.f32.mxu0 0.0
  %1609 = vmatmul.mubr.f32.gmra.mrb[0].mxu0 %v389
  %v1610 = vpop.f32.mrb[0].mxu0
  %v1611 = vadd.f32 0.0, %v1610
  %v1612 = vpop.f32.mrb[0].mxu0
  %1613 = vmatprep.mubr.f32.mxu0 0.0
  %1614 = vmatmul.mubr.f32.gmra.mrb[0].mxu0 %v392
  %v1615 = vpop.f32.mrb[0].mxu0
  %v1616 = vadd.f32 0.0, %v1615
  %v1617 = vpop.f32.mrb[0].mxu0
  %1618 = vmatprep.mubr.f32.mxu0 0.0
  %1619 = vmatmul.mubr.f32.gmra.mrb[0].mxu0 %v395
  %v1620 = vpop.f32.mrb[0].mxu0
  %v1621 = vadd.f32 0.0, %v1620
  %v1622 = vpop.f32.mrb[0].mxu0
  %1623 = vmatprep.mubr.f32.mxu0 0.0
  %1624 = vmatmul.mubr.f32.gmra.mrb[0].mxu0 %v398
  %v1625 = vpop.f32.mrb[0].mxu0
  %v1626 = vadd.f32 0.0, %v1625
  %v1627 = vpop.f32.mrb[0].mxu0
  %1628 = vmatprep.mubr.f32.mxu0 0.0
  %1629 = vmatmul.mubr.f32.gmra.mrb[0].mxu0 %v401
  %v1630 = vpop.f32.mrb[0].mxu0
  %v1631 = vadd.f32 0.0, %v1630
  %v1632 = vpop.f32.mrb[0].mxu0
  %1633 = vmatprep.mubr.f32.mxu0 0.0
  %1634 = vmatmul.mubr.f32.gmra.mrb[0].mxu0 %v404
  %v1635 = vpop.f32.mrb[0].mxu0
  %v1636 = vadd.f32 0.0, %v1635
  %v1637 = vpop.f32.mrb[0].mxu0
  %1638 = vdwg.mxu0
  %v1639 = vmul.f32 %v1601, %v21
  %v1640 = vmul.f32 %v1606, %v22
  %v1641 = vmul.f32 %v1611, %v23
  %v1642 = vmul.f32 %v1616, %v24
  %v1643 = vmul.f32 %v1621, %v25
  %v1644 = vmul.f32 %v1626, %v26
  %v1645 = vmul.f32 %v1631, %v27
  %v1646 = vmul.f32 %v1636, %v28
  %1647 = vmatprep.subr.mxu0 0.0
  %1648 = vmatpush1.msra.mxu0 %v1526
  %1649 = vmatprep.subr.mxu0 0.0
  %1650 = vmatpush1.msra.mxu0 %v1531
  %1651 = vmatprep.subr.mxu0 0.0
  %1652 = vmatpush1.msra.mxu0 0.0
  %1653 = vmatprep.subr.mxu0 0.0
  %1654 = vmatpush1.msra.mxu0 0.0
  %1655 = vmatprep.subr.mxu0 0.0
  %1656 = vmatpush1.msra.mxu0 0.0
  %1657 = vmatprep.subr.mxu0 0.0
  %1658 = vmatpush1.msra.mxu0 0.0
  %1659 = vmatprep.subr.mxu0 0.0
  %1660 = vmatpush1.msra.mxu0 0.0
  %1661 = vmatprep.subr.mxu0 0.0
  %1662 = vmatpush1.msra.mxu0 0.0
  %1663 = vmatprep.subr.mxu0 0.0
  %1664 = vmatpush1.msra.mxu0 0.0
  %1665 = vmatprep.subr.mxu0 0.0
  %1666 = vmatpush1.msra.mxu0 0.0
  %1667 = vmatprep.subr.mxu0 0.0
  %1668 = vmatpush1.msra.mxu0 0.0
  %1669 = vmatprep.subr.mxu0 0.0
  %1670 = vmatpush1.msra.mxu0 0.0
  %1671 = vmatprep.subr.mxu0 0.0
  %1672 = vmatpush1.msra.mxu0 0.0
  %1673 = vmatprep.subr.mxu0 0.0
  %1674 = vmatpush1.msra.mxu0 0.0
  %1675 = vmatprep.subr.mxu0 0.0
  %1676 = vmatpush1.msra.mxu0 0.0
  %1677 = vmatprep.subr.mxu0 0.0
  %1678 = vmatpush1.msra.mxu0 0.0
  %1679 = vmatprep.subr.mxu0 0.0
  %1680 = vmatpush1.msra.mxu0 0.0
  %1681 = vmatprep.subr.mxu0 0.0
  %1682 = vmatpush1.msra.mxu0 0.0
  %1683 = vmatprep.subr.mxu0 0.0
  %1684 = vmatpush1.msra.mxu0 0.0
  %1685 = vmatprep.subr.mxu0 0.0
  %1686 = vmatpush1.msra.mxu0 0.0
  %1687 = vmatprep.subr.mxu0 0.0
  %1688 = vmatpush1.msra.mxu0 0.0
  %1689 = vmatprep.subr.mxu0 0.0
  %1690 = vmatpush1.msra.mxu0 0.0
  %1691 = vmatprep.subr.mxu0 0.0
  %1692 = vmatpush1.msra.mxu0 0.0
  %1693 = vmatprep.subr.mxu0 0.0
  %1694 = vmatpush1.msra.mxu0 0.0
  %1695 = vmatprep.subr.mxu0 0.0
  %1696 = vmatpush1.msra.mxu0 0.0
  %1697 = vmatprep.subr.mxu0 0.0
  %1698 = vmatpush1.msra.mxu0 0.0
  %1699 = vmatprep.subr.mxu0 0.0
  %1700 = vmatpush1.msra.mxu0 0.0
  %1701 = vmatprep.subr.mxu0 0.0
  %1702 = vmatpush1.msra.mxu0 0.0
  %1703 = vmatprep.subr.mxu0 0.0
  %1704 = vmatpush1.msra.mxu0 0.0
  %1705 = vmatprep.subr.mxu0 0.0
  %1706 = vmatpush1.msra.mxu0 0.0
  %1707 = vmatprep.subr.mxu0 0.0
  %1708 = vmatpush1.msra.mxu0 0.0
  %1709 = vmatprep.subr.mxu0 0.0
  %1710 = vmatpush1.msra.mxu0 0.0
  %1711 = vmatprep.mubr.f32.mxu0 0.0
  %1712 = vmatmul.mubr.f32.gmra.mrb[0].mxu0 %v383
  %v1713 = vpop.f32.mrb[0].mxu0
  %v1714 = vadd.f32 0.0, %v1713
  %v1715 = vpop.f32.mrb[0].mxu0
  %1716 = vmatprep.mubr.f32.mxu0 0.0
  %1717 = vmatmul.mubr.f32.gmra.mrb[0].mxu0 %v386
  %v1718 = vpop.f32.mrb[0].mxu0
  %v1719 = vadd.f32 0.0, %v1718
  %v1720 = vpop.f32.mrb[0].mxu0
  %1721 = vmatprep.mubr.f32.mxu0 0.0
  %1722 = vmatmul.mubr.f32.gmra.mrb[0].mxu0 %v389
  %v1723 = vpop.f32.mrb[0].mxu0
  %v1724 = vadd.f32 0.0, %v1723
  %v1725 = vpop.f32.mrb[0].mxu0
  %1726 = vmatprep.mubr.f32.mxu0 0.0
  %1727 = vmatmul.mubr.f32.gmra.mrb[0].mxu0 %v392
  %v1728 = vpop.f32.mrb[0].mxu0
  %v1729 = vadd.f32 0.0, %v1728
  %v1730 = vpop.f32.mrb[0].mxu0
  %1731 = vmatprep.mubr.f32.mxu0 0.0
  %1732 = vmatmul.mubr.f32.gmra.mrb[0].mxu0 %v395
  %v1733 = vpop.f32.mrb[0].mxu0
  %v1734 = vadd.f32 0.0, %v1733
  %v1735 = vpop.f32.mrb[0].mxu0
  %1736 = vmatprep.mubr.f32.mxu0 0.0
  %1737 = vmatmul.mubr.f32.gmra.mrb[0].mxu0 %v398
  %v1738 = vpop.f32.mrb[0].mxu0
  %v1739 = vadd.f32 0.0, %v1738
  %v1740 = vpop.f32.mrb[0].mxu0
  %1741 = vmatprep.mubr.f32.mxu0 0.0
  %1742 = vmatmul.mubr.f32.gmra.mrb[0].mxu0 %v401
  %v1743 = vpop.f32.mrb[0].mxu0
  %v1744 = vadd.f32 0.0, %v1743
  %v1745 = vpop.f32.mrb[0].mxu0
  %1746 = vmatprep.mubr.f32.mxu0 0.0
  %1747 = vmatmul.mubr.f32.gmra.mrb[0].mxu0 %v404
  %v1748 = vpop.f32.mrb[0].mxu0
  %v1749 = vadd.f32 0.0, %v1748
  %v1750 = vpop.f32.mrb[0].mxu0
  %1751 = vdwg.mxu0
  %v1752 = vmul.f32 %v1714, %v21
  %v1753 = vmul.f32 %v1719, %v22
  %v1754 = vmul.f32 %v1724, %v23
  %v1755 = vmul.f32 %v1729, %v24
  %v1756 = vmul.f32 %v1734, %v25
  %v1757 = vmul.f32 %v1739, %v26
  %v1758 = vmul.f32 %v1744, %v27
  %v1759 = vmul.f32 %v1749, %v28
  %v1761 = vsel %vm132, %v1358, 0
  %v1764 = vsel %vm132, %v1363, 0
  %v1767 = vsel %vm132, %v1639, 0
  %v1770 = vsel %vm132, %v1640, 0
  %v1773 = vsel %vm132, %v1641, 0
  %v1776 = vsel %vm132, %v1642, 0
  %v1779 = vsel %vm132, %v1643, 0
  %v1782 = vsel %vm132, %v1644, 0
  %v1785 = vsel %vm132, %v1645, 0
  %v1788 = vsel %vm132, %v1646, 0
  %1790 = vmatprep.subr.mxu0 0.0
  %1791 = vmatpush1.xpose.msra.mxu0 %v1767
  %1792 = vmatprep.subr.mxu0 0.0
  %1793 = vmatpush1.xpose.msra.mxu0 %v1770
  %1794 = vmatprep.subr.mxu0 0.0
  %1795 = vmatpush1.xpose.msra.mxu0 %v1773
  %1796 = vmatprep.subr.mxu0 0.0
  %1797 = vmatpush1.xpose.msra.mxu0 %v1776
  %1798 = vmatprep.subr.mxu0 0.0
  %1799 = vmatpush1.xpose.msra.mxu0 %v1779
  %1800 = vmatprep.subr.mxu0 0.0
  %1801 = vmatpush1.xpose.msra.mxu0 %v1782
  %1802 = vmatprep.subr.mxu0 0.0
  %1803 = vmatpush1.xpose.msra.mxu0 %v1785
  %1804 = vmatprep.subr.mxu0 0.0
  %1805 = vmatpush1.xpose.msra.mxu0 %v1788
  %1806 = vmatprep.subr.mxu0 0.0
  %1807 = vmatpush1.xpose.msra.mxu0 0.0
  %1808 = vmatprep.subr.mxu0 0.0
  %1809 = vmatpush1.xpose.msra.mxu0 0.0
  %1810 = vmatprep.subr.mxu0 0.0
  %1811 = vmatpush1.xpose.msra.mxu0 0.0
  %1812 = vmatprep.subr.mxu0 0.0
  %1813 = vmatpush1.xpose.msra.mxu0 0.0
  %1814 = vmatprep.subr.mxu0 0.0
  %1815 = vmatpush1.xpose.msra.mxu0 0.0
  %1816 = vmatprep.subr.mxu0 0.0
  %1817 = vmatpush1.xpose.msra.mxu0 0.0
  %1818 = vmatprep.subr.mxu0 0.0
  %1819 = vmatpush1.xpose.msra.mxu0 0.0
  %1820 = vmatprep.subr.mxu0 0.0
  %1821 = vmatpush1.xpose.msra.mxu0 0.0
  %1822 = vmatprep.subr.mxu0 0.0
  %1823 = vmatpush1.xpose.msra.mxu0 0.0
  %1824 = vmatprep.subr.mxu0 0.0
  %1825 = vmatpush1.xpose.msra.mxu0 0.0
  %1826 = vmatprep.subr.mxu0 0.0
  %1827 = vmatpush1.xpose.msra.mxu0 0.0
  %1828 = vmatprep.subr.mxu0 0.0
  %1829 = vmatpush1.xpose.msra.mxu0 0.0
  %1830 = vmatprep.subr.mxu0 0.0
  %1831 = vmatpush1.xpose.msra.mxu0 0.0
  %1832 = vmatprep.subr.mxu0 0.0
  %1833 = vmatpush1.xpose.msra.mxu0 0.0
  %1834 = vmatprep.subr.mxu0 0.0
  %1835 = vmatpush1.xpose.msra.mxu0 0.0
  %1836 = vmatprep.subr.mxu0 0.0
  %1837 = vmatpush1.xpose.msra.mxu0 0.0
  %1838 = vmatprep.subr.mxu0 0.0
  %1839 = vmatpush1.xpose.msra.mxu0 0.0
  %1840 = vmatprep.subr.mxu0 0.0
  %1841 = vmatpush1.xpose.msra.mxu0 0.0
  %1842 = vmatprep.subr.mxu0 0.0
  %1843 = vmatpush1.xpose.msra.mxu0 0.0
  %1844 = vmatprep.subr.mxu0 0.0
  %1845 = vmatpush1.xpose.msra.mxu0 0.0
  %1846 = vmatprep.subr.mxu0 0.0
  %1847 = vmatpush1.xpose.msra.mxu0 0.0
  %1848 = vmatprep.subr.mxu0 0.0
  %1849 = vmatpush1.xpose.msra.mxu0 0.0
  %1850 = vmatprep.subr.mxu0 0.0
  %1851 = vmatpush1.xpose.msra.mxu0 0.0
  %1852 = vmatprep.subr.mxu0 0.0
  %1853 = vmatpush1.xpose.msra.mxu0 0.0
  %1854 = vmatprep.mubr.f32.mxu0 0.0
  %1855 = vmatmul.mubr.f32.gmra.mrb[0].mxu0 %v1761
  %v1856 = vpop.f32.mrb[0].mxu0
  %v1857 = vadd.f32 0.0, %v1856
  %v1858 = vpop.f32.mrb[0].mxu0
  %1859 = vmatprep.mubr.f32.mxu0 0.0
  %1860 = vmatmul.mubr.f32.gmra.mrb[0].mxu0 %v1764
  %v1861 = vpop.f32.mrb[0].mxu0
  %v1862 = vadd.f32 0.0, %v1861
  %v1863 = vpop.f32.mrb[0].mxu0
  %1864 = vdwg.mxu0
  %v1865 = vmul.f32 %v1857, 0.35355338
  %v1866 = vmul.f32 %v1862, 0.35355338
  %v1867 = vadd.f32 %v1865, %v19
  %v1868 = vadd.f32 %v1866, %v20
  %v1869 = vsel %vm741, %v1867, -inf
  %1870 = vmax.xlane.f32.xlu0 %v1869
  %v1871 = vpop.xlane.xlu0 %1870
  %v1872 = vsel %vm741, %v1868, -inf
  %1873 = vmax.xlane.f32.xlu0 %v1872
  %v1874 = vpop.xlane.xlu0 %1873
  %v1875 = vsub.f32 %v1867, %v1871
  %v1876 = vsub.f32 %v1868, %v1874
  %v1877 = vmul.f32 %v1875, 1.442695
  %v1878 = vpow.pop %v1877
  %v1879 = vmul.f32 %v1876, 1.442695
  %v1880 = vpow.pop %v1879
  %v1882 = vsel %vm741, %v1878, 0
  %v1885 = vsel %vm741, %v1880, 0
  %1887 = vmatprep.subr.mxu0 0.0
  %1888 = vmatpush1.msra.mxu0 %v1752
  %1889 = vmatprep.subr.mxu0 0.0
  %1890 = vmatpush1.msra.mxu0 %v1753
  %1891 = vmatprep.subr.mxu0 0.0
  %1892 = vmatpush1.msra.mxu0 %v1754
  %1893 = vmatprep.subr.mxu0 0.0
  %1894 = vmatpush1.msra.mxu0 %v1755
  %1895 = vmatprep.subr.mxu0 0.0
  %1896 = vmatpush1.msra.mxu0 %v1756
  %1897 = vmatprep.subr.mxu0 0.0
  %1898 = vmatpush1.msra.mxu0 %v1757
  %1899 = vmatprep.subr.mxu0 0.0
  %1900 = vmatpush1.msra.mxu0 %v1758
  %1901 = vmatprep.subr.mxu0 0.0
  %1902 = vmatpush1.msra.mxu0 %v1759
  %1903 = vmatprep.subr.mxu0 0.0
  %1904 = vmatpush1.msra.mxu0 0.0
  %1905 = vmatprep.subr.mxu0 0.0
  %1906 = vmatpush1.msra.mxu0 0.0
  %1907 = vmatprep.subr.mxu0 0.0
  %1908 = vmatpush1.msra.mxu0 0.0
  %1909 = vmatprep.subr.mxu0 0.0
  %1910 = vmatpush1.msra.mxu0 0.0
  %1911 = vmatprep.subr.mxu0 0.0
  %1912 = vmatpush1.msra.mxu0 0.0
  %1913 = vmatprep.subr.mxu0 0.0
  %1914 = vmatpush1.msra.mxu0 0.0
  %1915 = vmatprep.subr.mxu0 0.0
  %1916 = vmatpush1.msra.mxu0 0.0
  %1917 = vmatprep.subr.mxu0 0.0
  %1918 = vmatpush1.msra.mxu0 0.0
  %1919 = vmatprep.subr.mxu0 0.0
  %1920 = vmatpush1.msra.mxu0 0.0
  %1921 = vmatprep.subr.mxu0 0.0
  %1922 = vmatpush1.msra.mxu0 0.0
  %1923 = vmatprep.subr.mxu0 0.0
  %1924 = vmatpush1.msra.mxu0 0.0
  %1925 = vmatprep.subr.mxu0 0.0
  %1926 = vmatpush1.msra.mxu0 0.0
  %1927 = vmatprep.subr.mxu0 0.0
  %1928 = vmatpush1.msra.mxu0 0.0
  %1929 = vmatprep.subr.mxu0 0.0
  %1930 = vmatpush1.msra.mxu0 0.0
  %1931 = vmatprep.subr.mxu0 0.0
  %1932 = vmatpush1.msra.mxu0 0.0
  %1933 = vmatprep.subr.mxu0 0.0
  %1934 = vmatpush1.msra.mxu0 0.0
  %1935 = vmatprep.subr.mxu0 0.0
  %1936 = vmatpush1.msra.mxu0 0.0
  %1937 = vmatprep.subr.mxu0 0.0
  %1938 = vmatpush1.msra.mxu0 0.0
  %1939 = vmatprep.subr.mxu0 0.0
  %1940 = vmatpush1.msra.mxu0 0.0
  %1941 = vmatprep.subr.mxu0 0.0
  %1942 = vmatpush1.msra.mxu0 0.0
  %1943 = vmatprep.subr.mxu0 0.0
  %1944 = vmatpush1.msra.mxu0 0.0
  %1945 = vmatprep.subr.mxu0 0.0
  %1946 = vmatpush1.msra.mxu0 0.0
  %1947 = vmatprep.subr.mxu0 0.0
  %1948 = vmatpush1.msra.mxu0 0.0
  %1949 = vmatprep.subr.mxu0 0.0
  %1950 = vmatpush1.msra.mxu0 0.0
  %1951 = vmatprep.mubr.f32.mxu0 0.0
  %1952 = vmatmul.mubr.f32.gmra.mrb[0].mxu0 %v1882
  %v1953 = vpop.f32.mrb[0].mxu0
  %v1954 = vadd.f32 0.0, %v1953
  %v1955 = vpop.f32.mrb[0].mxu0
  %1956 = vmatprep.mubr.f32.mxu0 0.0
  %1957 = vmatmul.mubr.f32.gmra.mrb[0].mxu0 %v1885
  %v1958 = vpop.f32.mrb[0].mxu0
  %v1959 = vadd.f32 0.0, %v1958
  %v1960 = vpop.f32.mrb[0].mxu0
  %1961 = vdwg.mxu0
  %1962 = vmatprep.subr.mxu0 0.0
  %1963 = vmatpush1.msra.mxu0 %v21
  %1964 = vmatprep.subr.mxu0 0.0
  %1965 = vmatpush1.msra.mxu0 %v22
  %1966 = vmatprep.subr.mxu0 0.0
  %1967 = vmatpush1.msra.mxu0 %v23
  %1968 = vmatprep.subr.mxu0 0.0
  %1969 = vmatpush1.msra.mxu0 %v24
  %1970 = vmatprep.subr.mxu0 0.0
  %1971 = vmatpush1.msra.mxu0 %v25
  %1972 = vmatprep.subr.mxu0 0.0
  %1973 = vmatpush1.msra.mxu0 %v26
  %1974 = vmatprep.subr.mxu0 0.0
  %1975 = vmatpush1.msra.mxu0 %v27
  %1976 = vmatprep.subr.mxu0 0.0
  %1977 = vmatpush1.msra.mxu0 %v28
  %1978 = vmatprep.subr.mxu0 0.0
  %1979 = vmatpush1.msra.mxu0 0.0
  %1980 = vmatprep.subr.mxu0 0.0
  %1981 = vmatpush1.msra.mxu0 0.0
  %1982 = vmatprep.subr.mxu0 0.0
  %1983 = vmatpush1.msra.mxu0 0.0
  %1984 = vmatprep.subr.mxu0 0.0
  %1985 = vmatpush1.msra.mxu0 0.0
  %1986 = vmatprep.subr.mxu0 0.0
  %1987 = vmatpush1.msra.mxu0 0.0
  %1988 = vmatprep.subr.mxu0 0.0
  %1989 = vmatpush1.msra.mxu0 0.0
  %1990 = vmatprep.subr.mxu0 0.0
  %1991 = vmatpush1.msra.mxu0 0.0
  %1992 = vmatprep.subr.mxu0 0.0
  %1993 = vmatpush1.msra.mxu0 0.0
  %1994 = vmatprep.subr.mxu0 0.0
  %1995 = vmatpush1.msra.mxu0 0.0
  %1996 = vmatprep.subr.mxu0 0.0
  %1997 = vmatpush1.msra.mxu0 0.0
  %1998 = vmatprep.subr.mxu0 0.0
  %1999 = vmatpush1.msra.mxu0 0.0
  %2000 = vmatprep.subr.mxu0 0.0
  %2001 = vmatpush1.msra.mxu0 0.0
  %2002 = vmatprep.subr.mxu0 0.0
  %2003 = vmatpush1.msra.mxu0 0.0
  %2004 = vmatprep.subr.mxu0 0.0
  %2005 = vmatpush1.msra.mxu0 0.0
  %2006 = vmatprep.subr.mxu0 0.0
  %2007 = vmatpush1.msra.mxu0 0.0
  %2008 = vmatprep.subr.mxu0 0.0
  %2009 = vmatpush1.msra.mxu0 0.0
  %2010 = vmatprep.subr.mxu0 0.0
  %2011 = vmatpush1.msra.mxu0 0.0
  %2012 = vmatprep.subr.mxu0 0.0
  %2013 = vmatpush1.msra.mxu0 0.0
  %2014 = vmatprep.subr.mxu0 0.0
  %2015 = vmatpush1.msra.mxu0 0.0
  %2016 = vmatprep.subr.mxu0 0.0
  %2017 = vmatpush1.msra.mxu0 0.0
  %2018 = vmatprep.subr.mxu0 0.0
  %2019 = vmatpush1.msra.mxu0 0.0
  %2020 = vmatprep.subr.mxu0 0.0
  %2021 = vmatpush1.msra.mxu0 0.0
  %2022 = vmatprep.subr.mxu0 0.0
  %2023 = vmatpush1.msra.mxu0 0.0
  %2024 = vmatprep.subr.mxu0 0.0
  %2025 = vmatpush1.msra.mxu0 0.0
  %2026 = vmatprep.mubr.f32.mxu0 0.0
  %2027 = vmatmul.mubr.f32.gmra.mrb[0].mxu0 %v1882
  %v2028 = vpop.f32.mrb[0].mxu0
  %v2029 = vadd.f32 0.0, %v2028
  %v2030 = vpop.f32.mrb[0].mxu0
  %2031 = vmatprep.mubr.f32.mxu0 0.0
  %2032 = vmatmul.mubr.f32.gmra.mrb[0].mxu0 %v1885
  %v2033 = vpop.f32.mrb[0].mxu0
  %v2034 = vadd.f32 0.0, %v2033
  %v2035 = vpop.f32.mrb[0].mxu0
  %2036 = vdwg.mxu0
  %v2037 = vrcp.pop %v2029
  %v2038 = vmul.f32 %v1954, %v2037
  %v2039 = vrcp.pop %v2034
  %v2040 = vmul.f32 %v1959, %v2039
  %v2041 = vld [vmem:[%s1275 + $0x60] sm:$0xff]
  %v2042 = vld [vmem:[%s1275 + $0x68] sm:$0xff]
  %v2043 = vld [vmem:[%s1275 + $0x70] sm:$0xff]
  %v2044 = vld [vmem:[%s1275 + $0x78] sm:$0xff]
  %v2045 = vld [vmem:[%s3 + $0xd] sm:$0x1]
  %v2046 = vlaneseq
  %v2047 = vshrl.u32 %v2046, 7
  %v2048 = vsub.s32 0, %v2047
  %v2049 = vrot.slane %v2045, %v2048
  %v2051 = vsel %vm132, %v2038, 0
  %v2054 = vsel %vm132, %v2040, 0
  %2056 = vmatprep.subr.mxu0 0.0
  %2057 = vmatpush1.msra.mxu0 %v2041
  %2058 = vmatprep.subr.mxu0 0.0
  %2059 = vmatpush1.msra.mxu0 %v2042
  %2060 = vmatprep.subr.mxu0 0.0
  %2061 = vmatpush1.msra.mxu0 %v2043
  %2062 = vmatprep.subr.mxu0 0.0
  %2063 = vmatpush1.msra.mxu0 %v2044
  %2064 = vmatprep.subr.mxu0 0.0
  %2065 = vmatpush1.msra.mxu0 0.0
  %2066 = vmatprep.subr.mxu0 0.0
  %2067 = vmatpush1.msra.mxu0 0.0
  %2068 = vmatprep.subr.mxu0 0.0
  %2069 = vmatpush1.msra.mxu0 0.0
  %2070 = vmatprep.subr.mxu0 0.0
  %2071 = vmatpush1.msra.mxu0 0.0
  %2072 = vmatprep.subr.mxu0 0.0
  %2073 = vmatpush1.msra.mxu0 0.0
  %2074 = vmatprep.subr.mxu0 0.0
  %2075 = vmatpush1.msra.mxu0 0.0
  %2076 = vmatprep.subr.mxu0 0.0
  %2077 = vmatpush1.msra.mxu0 0.0
  %2078 = vmatprep.subr.mxu0 0.0
  %2079 = vmatpush1.msra.mxu0 0.0
  %2080 = vmatprep.subr.mxu0 0.0
  %2081 = vmatpush1.msra.mxu0 0.0
  %2082 = vmatprep.subr.mxu0 0.0
  %2083 = vmatpush1.msra.mxu0 0.0
  %2084 = vmatprep.subr.mxu0 0.0
  %2085 = vmatpush1.msra.mxu0 0.0
  %2086 = vmatprep.subr.mxu0 0.0
  %2087 = vmatpush1.msra.mxu0 0.0
  %2088 = vmatprep.subr.mxu0 0.0
  %2089 = vmatpush1.msra.mxu0 0.0
  %2090 = vmatprep.subr.mxu0 0.0
  %2091 = vmatpush1.msra.mxu0 0.0
  %2092 = vmatprep.subr.mxu0 0.0
  %2093 = vmatpush1.msra.mxu0 0.0
  %2094 = vmatprep.subr.mxu0 0.0
  %2095 = vmatpush1.msra.mxu0 0.0
  %2096 = vmatprep.subr.mxu0 0.0
  %2097 = vmatpush1.msra.mxu0 0.0
  %2098 = vmatprep.subr.mxu0 0.0
  %2099 = vmatpush1.msra.mxu0 0.0
  %2100 = vmatprep.subr.mxu0 0.0
  %2101 = vmatpush1.msra.mxu0 0.0
  %2102 = vmatprep.subr.mxu0 0.0
  %2103 = vmatpush1.msra.mxu0 0.0
  %2104 = vmatprep.subr.mxu0 0.0
  %2105 = vmatpush1.msra.mxu0 0.0
  %2106 = vmatprep.subr.mxu0 0.0
  %2107 = vmatpush1.msra.mxu0 0.0
  %2108 = vmatprep.subr.mxu0 0.0
  %2109 = vmatpush1.msra.mxu0 0.0
  %2110 = vmatprep.subr.mxu0 0.0
  %2111 = vmatpush1.msra.mxu0 0.0
  %2112 = vmatprep.subr.mxu0 0.0
  %2113 = vmatpush1.msra.mxu0 0.0
  %2114 = vmatprep.subr.mxu0 0.0
  %2115 = vmatpush1.msra.mxu0 0.0
  %2116 = vmatprep.subr.mxu0 0.0
  %2117 = vmatpush1.msra.mxu0 0.0
  %2118 = vmatprep.subr.mxu0 0.0
  %2119 = vmatpush1.msra.mxu0 0.0
  %2120 = vmatprep.mubr.f32.mxu0 0.0
  %2121 = vmatmul.mubr.f32.gmra.mrb[0].mxu0 %v2051
  %v2122 = vpop.f32.mrb[0].mxu0
  %v2123 = vadd.f32 %v2049, %v2122
  %v2124 = vpop.f32.mrb[0].mxu0
  %2125 = vmatprep.mubr.f32.mxu0 0.0
  %2126 = vmatmul.mubr.f32.gmra.mrb[0].mxu0 %v2054
  %v2127 = vpop.f32.mrb[0].mxu0
  %v2128 = vadd.f32 %v2049, %v2127
  %v2129 = vpop.f32.mrb[0].mxu0
  %2130 = vdwg.mxu0
  %v2131 = vadd.f32 %v1273, %v2123
  %v2132 = vadd.f32 %v1274, %v2128
  %v2133 = vld [vmem:[%s3 + $0x10] sm:$0x1]
  %v2134 = vld [vmem:[%s3 + $0x11] sm:$0x1]
  %v2135 = vsel %vm132, %v2131, 0.0
  %2136 = vadd.xlane.f32.xlu0 %v2135
  %v2137 = vpop.xlane.xlu0 %2136
  %v2138 = vsel %vm132, %v2132, 0.0
  %2139 = vadd.xlane.f32.xlu0 %v2138
  %v2140 = vpop.xlane.xlu0 %2139
  %v2141 = vmul.f32 %v2137, %v1014
  %v2142 = vmul.f32 %v2140, %v1014
  %v2143 = vsub.f32 %v2131, %v2141
  %v2144 = vsub.f32 %v2132, %v2142
  %v2145 = vmul.f32 %v2143, %v2143
  %v2146 = vmul.f32 %v2144, %v2144
  %v2147 = vsel %vm132, %v2145, 0.0
  %2148 = vadd.xlane.f32.xlu0 %v2147
  %v2149 = vpop.xlane.xlu0 %2148
  %v2150 = vsel %vm132, %v2146, 0.0
  %2151 = vadd.xlane.f32.xlu0 %v2150
  %v2152 = vpop.xlane.xlu0 %2151
  %v2153 = vmul.f32 %v2149, %v1014
  %v2154 = vmul.f32 %v2152, %v1014
  %v2155 = vadd.f32 %v2153, 1e-05
  %v2156 = vadd.f32 %v2154, 1e-05
  %v2157 = vrsqrt.pop %v2155
  %v2158 = vrsqrt.pop %v2156
  %v2159 = vmul.f32 %v2143, %v2157
  %v2160 = vmul.f32 %v2144, %v2158
  %v2161 = vlaneseq
  %v2162 = vshrl.u32 %v2161, 7
  %v2163 = vsub.s32 0, %v2162
  %v2164 = vrot.slane %v2133, %v2163
  %v2165 = vmul.f32 %v2159, %v2164
  %v2166 = vmul.f32 %v2160, %v2164
  %v2167 = vlaneseq
  %v2168 = vshrl.u32 %v2167, 7
  %v2169 = vsub.s32 0, %v2168
  %v2170 = vrot.slane %v2134, %v2169
  %v2171 = vadd.f32 %v2165, %v2170
  %v2172 = vadd.f32 %v2166, %v2170
  %v2173 = vld [vmem:[%s1275 + $0x80] sm:$0xff]
  %v2174 = vld [vmem:[%s1275 + $0x88] sm:$0xff]
  %v2175 = vld [vmem:[%s1275 + $0x90] sm:$0xff]
  %v2176 = vld [vmem:[%s1275 + $0x98] sm:$0xff]
  %v2177 = vld [vmem:[%s3 + $0xe] sm:$0x1]
  %v2178 = vlaneseq
  %v2179 = vshrl.u32 %v2178, 7
  %v2180 = vsub.s32 0, %v2179
  %v2181 = vrot.slane %v2177, %v2180
  %v2183 = vsel %vm132, %v2171, 0
  %v2186 = vsel %vm132, %v2172, 0
  %2188 = vmatprep.subr.mxu0 0.0
  %2189 = vmatpush1.msra.mxu0 %v2173
  %2190 = vmatprep.subr.mxu0 0.0
  %2191 = vmatpush1.msra.mxu0 %v2174
  %2192 = vmatprep.subr.mxu0 0.0
  %2193 = vmatpush1.msra.mxu0 %v2175
  %2194 = vmatprep.subr.mxu0 0.0
  %2195 = vmatpush1.msra.mxu0 %v2176
  %2196 = vmatprep.subr.mxu0 0.0
  %2197 = vmatpush1.msra.mxu0 0.0
  %2198 = vmatprep.subr.mxu0 0.0
  %2199 = vmatpush1.msra.mxu0 0.0
  %2200 = vmatprep.subr.mxu0 0.0
  %2201 = vmatpush1.msra.mxu0 0.0
  %2202 = vmatprep.subr.mxu0 0.0
  %2203 = vmatpush1.msra.mxu0 0.0
  %2204 = vmatprep.subr.mxu0 0.0
  %2205 = vmatpush1.msra.mxu0 0.0
  %2206 = vmatprep.subr.mxu0 0.0
  %2207 = vmatpush1.msra.mxu0 0.0
  %2208 = vmatprep.subr.mxu0 0.0
  %2209 = vmatpush1.msra.mxu0 0.0
  %2210 = vmatprep.subr.mxu0 0.0
  %2211 = vmatpush1.msra.mxu0 0.0
  %2212 = vmatprep.subr.mxu0 0.0
  %2213 = vmatpush1.msra.mxu0 0.0
  %2214 = vmatprep.subr.mxu0 0.0
  %2215 = vmatpush1.msra.mxu0 0.0
  %2216 = vmatprep.subr.mxu0 0.0
  %2217 = vmatpush1.msra.mxu0 0.0
  %2218 = vmatprep.subr.mxu0 0.0
  %2219 = vmatpush1.msra.mxu0 0.0
  %2220 = vmatprep.subr.mxu0 0.0
  %2221 = vmatpush1.msra.mxu0 0.0
  %2222 = vmatprep.subr.mxu0 0.0
  %2223 = vmatpush1.msra.mxu0 0.0
  %2224 = vmatprep.subr.mxu0 0.0
  %2225 = vmatpush1.msra.mxu0 0.0
  %2226 = vmatprep.subr.mxu0 0.0
  %2227 = vmatpush1.msra.mxu0 0.0
  %2228 = vmatprep.subr.mxu0 0.0
  %2229 = vmatpush1.msra.mxu0 0.0
  %2230 = vmatprep.subr.mxu0 0.0
  %2231 = vmatpush1.msra.mxu0 0.0
  %2232 = vmatprep.subr.mxu0 0.0
  %2233 = vmatpush1.msra.mxu0 0.0
  %2234 = vmatprep.subr.mxu0 0.0
  %2235 = vmatpush1.msra.mxu0 0.0
  %2236 = vmatprep.subr.mxu0 0.0
  %2237 = vmatpush1.msra.mxu0 0.0
  %2238 = vmatprep.subr.mxu0 0.0
  %2239 = vmatpush1.msra.mxu0 0.0
  %2240 = vmatprep.subr.mxu0 0.0
  %2241 = vmatpush1.msra.mxu0 0.0
  %2242 = vmatprep.subr.mxu0 0.0
  %2243 = vmatpush1.msra.mxu0 0.0
  %2244 = vmatprep.subr.mxu0 0.0
  %2245 = vmatpush1.msra.mxu0 0.0
  %2246 = vmatprep.subr.mxu0 0.0
  %2247 = vmatpush1.msra.mxu0 0.0
  %2248 = vmatprep.subr.mxu0 0.0
  %2249 = vmatpush1.msra.mxu0 0.0
  %2250 = vmatprep.subr.mxu0 0.0
  %2251 = vmatpush1.msra.mxu0 0.0
  %2252 = vmatprep.mubr.f32.mxu0 0.0
  %2253 = vmatmul.mubr.f32.gmra.mrb[0].mxu0 %v2183
  %v2254 = vpop.f32.mrb[0].mxu0
  %v2255 = vadd.f32 %v2181, %v2254
  %v2256 = vpop.f32.mrb[0].mxu0
  %2257 = vmatprep.mubr.f32.mxu0 0.0
  %2258 = vmatmul.mubr.f32.gmra.mrb[0].mxu0 %v2186
  %v2259 = vpop.f32.mrb[0].mxu0
  %v2260 = vadd.f32 %v2181, %v2259
  %v2261 = vpop.f32.mrb[0].mxu0
  %2262 = vdwg.mxu0
  %v2263 = vmax.f32 %v2255, 0.0
  %v2264 = vmax.f32 %v2260, 0.0
  %v2265 = vld [vmem:[%s1275 + $0xa0] sm:$0xff]
  %v2266 = vld [vmem:[%s1275 + $0xa8] sm:$0xff]
  %v2267 = vld [vmem:[%s1275 + $0xb0] sm:$0xff]
  %v2268 = vld [vmem:[%s1275 + $0xb8] sm:$0xff]
  %v2269 = vld [vmem:[%s1275 + $0xc0] sm:$0xff]
  %v2270 = vld [vmem:[%s1275 + $0xc8] sm:$0xff]
  %v2271 = vld [vmem:[%s1275 + $0xd0] sm:$0xff]
  %v2272 = vld [vmem:[%s1275 + $0xd8] sm:$0xff]
  %v2273 = vld [vmem:[%s3 + $0xf] sm:$0x1]
  %v2274 = vlaneseq
  %v2275 = vshrl.u32 %v2274, 7
  %v2276 = vsub.s32 0, %v2275
  %v2277 = vrot.slane %v2273, %v2276
  %v2279 = vsel %vm741, %v2263, 0
  %v2282 = vsel %vm741, %v2264, 0
  %2284 = vmatprep.subr.mxu0 0.0
  %2285 = vmatpush1.msra.mxu0 %v2265
  %2286 = vmatprep.subr.mxu0 0.0
  %2287 = vmatpush1.msra.mxu0 %v2266
  %2288 = vmatprep.subr.mxu0 0.0
  %2289 = vmatpush1.msra.mxu0 %v2267
  %2290 = vmatprep.subr.mxu0 0.0
  %2291 = vmatpush1.msra.mxu0 %v2268
  %2292 = vmatprep.subr.mxu0 0.0
  %2293 = vmatpush1.msra.mxu0 %v2269
  %2294 = vmatprep.subr.mxu0 0.0
  %2295 = vmatpush1.msra.mxu0 %v2270
  %2296 = vmatprep.subr.mxu0 0.0
  %2297 = vmatpush1.msra.mxu0 %v2271
  %2298 = vmatprep.subr.mxu0 0.0
  %2299 = vmatpush1.msra.mxu0 %v2272
  %2300 = vmatprep.subr.mxu0 0.0
  %2301 = vmatpush1.msra.mxu0 0.0
  %2302 = vmatprep.subr.mxu0 0.0
  %2303 = vmatpush1.msra.mxu0 0.0
  %2304 = vmatprep.subr.mxu0 0.0
  %2305 = vmatpush1.msra.mxu0 0.0
  %2306 = vmatprep.subr.mxu0 0.0
  %2307 = vmatpush1.msra.mxu0 0.0
  %2308 = vmatprep.subr.mxu0 0.0
  %2309 = vmatpush1.msra.mxu0 0.0
  %2310 = vmatprep.subr.mxu0 0.0
  %2311 = vmatpush1.msra.mxu0 0.0
  %2312 = vmatprep.subr.mxu0 0.0
  %2313 = vmatpush1.msra.mxu0 0.0
  %2314 = vmatprep.subr.mxu0 0.0
  %2315 = vmatpush1.msra.mxu0 0.0
  %2316 = vmatprep.subr.mxu0 0.0
  %2317 = vmatpush1.msra.mxu0 0.0
  %2318 = vmatprep.subr.mxu0 0.0
  %2319 = vmatpush1.msra.mxu0 0.0
  %2320 = vmatprep.subr.mxu0 0.0
  %2321 = vmatpush1.msra.mxu0 0.0
  %2322 = vmatprep.subr.mxu0 0.0
  %2323 = vmatpush1.msra.mxu0 0.0
  %2324 = vmatprep.subr.mxu0 0.0
  %2325 = vmatpush1.msra.mxu0 0.0
  %2326 = vmatprep.subr.mxu0 0.0
  %2327 = vmatpush1.msra.mxu0 0.0
  %2328 = vmatprep.subr.mxu0 0.0
  %2329 = vmatpush1.msra.mxu0 0.0
  %2330 = vmatprep.subr.mxu0 0.0
  %2331 = vmatpush1.msra.mxu0 0.0
  %2332 = vmatprep.subr.mxu0 0.0
  %2333 = vmatpush1.msra.mxu0 0.0
  %2334 = vmatprep.subr.mxu0 0.0
  %2335 = vmatpush1.msra.mxu0 0.0
  %2336 = vmatprep.subr.mxu0 0.0
  %2337 = vmatpush1.msra.mxu0 0.0
  %2338 = vmatprep.subr.mxu0 0.0
  %2339 = vmatpush1.msra.mxu0 0.0
  %2340 = vmatprep.subr.mxu0 0.0
  %2341 = vmatpush1.msra.mxu0 0.0
  %2342 = vmatprep.subr.mxu0 0.0
  %2343 = vmatpush1.msra.mxu0 0.0
  %2344 = vmatprep.subr.mxu0 0.0
  %2345 = vmatpush1.msra.mxu0 0.0
  %2346 = vmatprep.subr.mxu0 0.0
  %2347 = vmatpush1.msra.mxu0 0.0
  %2348 = vmatprep.mubr.f32.mxu0 0.0
  %2349 = vmatmul.mubr.f32.gmra.mrb[0].mxu0 %v2279
  %v2350 = vpop.f32.mrb[0].mxu0
  %v2351 = vadd.f32 %v2277, %v2350
  %v2352 = vpop.f32.mrb[0].mxu0
  %2353 = vmatprep.mubr.f32.mxu0 0.0
  %2354 = vmatmul.mubr.f32.gmra.mrb[0].mxu0 %v2282
  %v2355 = vpop.f32.mrb[0].mxu0
  %v2356 = vadd.f32 %v2277, %v2355
  %v2357 = vpop.f32.mrb[0].mxu0
  %2358 = vdwg.mxu0
  %v2359 = vadd.f32 %v2171, %v2351
  %v2360 = vadd.f32 %v2172, %v2356
  %v2361 = vld [vmem:[%s3 + $0x12] sm:$0x1]
  %v2362 = vld [vmem:[%s3 + $0x13] sm:$0x1]
  %v2363 = vsel %vm132, %v2359, 0.0
  %2364 = vadd.xlane.f32.xlu0 %v2363
  %v2365 = vpop.xlane.xlu0 %2364
  %v2366 = vsel %vm132, %v2360, 0.0
  %2367 = vadd.xlane.f32.xlu0 %v2366
  %v2368 = vpop.xlane.xlu0 %2367
  %v2369 = vmul.f32 %v2365, %v1014
  %v2370 = vmul.f32 %v2368, %v1014
  %v2371 = vsub.f32 %v2359, %v2369
  %v2372 = vsub.f32 %v2360, %v2370
  %v2373 = vmul.f32 %v2371, %v2371
  %v2374 = vmul.f32 %v2372, %v2372
  %v2375 = vsel %vm132, %v2373, 0.0
  %2376 = vadd.xlane.f32.xlu0 %v2375
  %v2377 = vpop.xlane.xlu0 %2376
  %v2378 = vsel %vm132, %v2374, 0.0
  %2379 = vadd.xlane.f32.xlu0 %v2378
  %v2380 = vpop.xlane.xlu0 %2379
  %v2381 = vmul.f32 %v2377, %v1014
  %v2382 = vmul.f32 %v2380, %v1014
  %v2383 = vadd.f32 %v2381, 1e-05
  %v2384 = vadd.f32 %v2382, 1e-05
  %v2385 = vrsqrt.pop %v2383
  %v2386 = vrsqrt.pop %v2384
  %v2387 = vmul.f32 %v2371, %v2385
  %v2388 = vmul.f32 %v2372, %v2386
  %v2389 = vlaneseq
  %v2390 = vshrl.u32 %v2389, 7
  %v2391 = vsub.s32 0, %v2390
  %v2392 = vrot.slane %v2361, %v2391
  %v2393 = vmul.f32 %v2387, %v2392
  %v2394 = vmul.f32 %v2388, %v2392
  %v2395 = vlaneseq
  %v2396 = vshrl.u32 %v2395, 7
  %v2397 = vsub.s32 0, %v2396
  %v2398 = vrot.slane %v2362, %v2397
  %v2399 = vadd.f32 %v2393, %v2398
  %v2400 = vadd.f32 %v2394, %v2398
  %v2401 = vld [vmem:[%s1 + $0x150] sm:$0x3]
  %v2402 = vld [vmem:[%s1 + $0xb0] sm:$0xff]
  %v2403 = vld [vmem:[%s1 + $0xb8] sm:$0xff]
  %v2404 = vld [vmem:[%s1 + $0xc0] sm:$0xff]
  %v2405 = vld [vmem:[%s1 + $0xc8] sm:$0xff]
  %v2406 = vld [vmem:[%s1 + $0xd0] sm:$0xff]
  %v2407 = vld [vmem:[%s1 + $0xd8] sm:$0xff]
  %v2408 = vld [vmem:[%s1 + $0xe0] sm:$0xff]
  %v2409 = vld [vmem:[%s1 + $0xe8] sm:$0xff]
  %v2410 = vld [vmem:[%s1 + $0xf0] sm:$0xff]
  %v2411 = vld [vmem:[%s1 + $0xf8] sm:$0xff]
  %v2412 = vld [vmem:[%s1 + $0x100] sm:$0xff]
  %v2413 = vld [vmem:[%s1 + $0x108] sm:$0xff]
  %v2414 = vld [vmem:[%s1 + $0x110] sm:$0xff]
  %v2415 = vld [vmem:[%s1 + $0x118] sm:$0xff]
  %v2416 = vld [vmem:[%s1 + $0x120] sm:$0xff]
  %v2417 = vld [vmem:[%s1 + $0x128] sm:$0xff]
  %v2418 = vld [vmem:[%s1 + $0x130] sm:$0xff]
  %v2419 = vld [vmem:[%s1 + $0x138] sm:$0xff]
  %v2420 = vld [vmem:[%s1 + $0x140] sm:$0xff]
  %v2421 = vld [vmem:[%s1 + $0x148] sm:$0xff]
  %v2422 = vld [vmem:[%s3 + $0x14] sm:$0x1]
  %v2423 = vld [vmem:[%s3 + $0x15] sm:$0x1]
  %v2425 = vsel %vm41, %v2401, 0
  %2427 = vmatprep.subr.mxu0 0.0
  %2428 = vmatpush1.msra.mxu0 %v2399
  %2429 = vmatprep.subr.mxu0 0.0
  %2430 = vmatpush1.msra.mxu0 %v2400
  %2431 = vmatprep.subr.mxu0 0.0
  %2432 = vmatpush1.msra.mxu0 0.0
  %2433 = vmatprep.subr.mxu0 0.0
  %2434 = vmatpush1.msra.mxu0 0.0
  %2435 = vmatprep.subr.mxu0 0.0
  %2436 = vmatpush1.msra.mxu0 0.0
  %2437 = vmatprep.subr.mxu0 0.0
  %2438 = vmatpush1.msra.mxu0 0.0
  %2439 = vmatprep.subr.mxu0 0.0
  %2440 = vmatpush1.msra.mxu0 0.0
  %2441 = vmatprep.subr.mxu0 0.0
  %2442 = vmatpush1.msra.mxu0 0.0
  %2443 = vmatprep.subr.mxu0 0.0
  %2444 = vmatpush1.msra.mxu0 0.0
  %2445 = vmatprep.subr.mxu0 0.0
  %2446 = vmatpush1.msra.mxu0 0.0
  %2447 = vmatprep.subr.mxu0 0.0
  %2448 = vmatpush1.msra.mxu0 0.0
  %2449 = vmatprep.subr.mxu0 0.0
  %2450 = vmatpush1.msra.mxu0 0.0
  %2451 = vmatprep.subr.mxu0 0.0
  %2452 = vmatpush1.msra.mxu0 0.0
  %2453 = vmatprep.subr.mxu0 0.0
  %2454 = vmatpush1.msra.mxu0 0.0
  %2455 = vmatprep.subr.mxu0 0.0
  %2456 = vmatpush1.msra.mxu0 0.0
  %2457 = vmatprep.subr.mxu0 0.0
  %2458 = vmatpush1.msra.mxu0 0.0
  %2459 = vmatprep.subr.mxu0 0.0
  %2460 = vmatpush1.msra.mxu0 0.0
  %2461 = vmatprep.subr.mxu0 0.0
  %2462 = vmatpush1.msra.mxu0 0.0
  %2463 = vmatprep.subr.mxu0 0.0
  %2464 = vmatpush1.msra.mxu0 0.0
  %2465 = vmatprep.subr.mxu0 0.0
  %2466 = vmatpush1.msra.mxu0 0.0
  %2467 = vmatprep.subr.mxu0 0.0
  %2468 = vmatpush1.msra.mxu0 0.0
  %2469 = vmatprep.subr.mxu0 0.0
  %2470 = vmatpush1.msra.mxu0 0.0
  %2471 = vmatprep.subr.mxu0 0.0
  %2472 = vmatpush1.msra.mxu0 0.0
  %2473 = vmatprep.subr.mxu0 0.0
  %2474 = vmatpush1.msra.mxu0 0.0
  %2475 = vmatprep.subr.mxu0 0.0
  %2476 = vmatpush1.msra.mxu0 0.0
  %2477 = vmatprep.subr.mxu0 0.0
  %2478 = vmatpush1.msra.mxu0 0.0
  %2479 = vmatprep.subr.mxu0 0.0
  %2480 = vmatpush1.msra.mxu0 0.0
  %2481 = vmatprep.subr.mxu0 0.0
  %2482 = vmatpush1.msra.mxu0 0.0
  %2483 = vmatprep.subr.mxu0 0.0
  %2484 = vmatpush1.msra.mxu0 0.0
  %2485 = vmatprep.subr.mxu0 0.0
  %2486 = vmatpush1.msra.mxu0 0.0
  %2487 = vmatprep.subr.mxu0 0.0
  %2488 = vmatpush1.msra.mxu0 0.0
  %2489 = vmatprep.subr.mxu0 0.0
  %2490 = vmatpush1.msra.mxu0 0.0
  %2491 = vmatprep.mubr.f32.mxu0 0.0
  %2492 = vmatmul.mubr.f32.gmra.mrb[0].mxu0 %v2425
  %v2493 = vpop.f32.mrb[0].mxu0
  %v2494 = vadd.f32 0.0, %v2493
  %v2495 = vpop.f32.mrb[0].mxu0
  %2496 = vdwg.mxu0
  %v2497 = vlaneseq
  %v2498 = vshrl.u32 %v2497, 7
  %v2499 = vsub.s32 0, %v2498
  %v2500 = vrot.slane %v2422, %v2499
  %v2502 = vsel %vm132, %v2494, 0
  %2504 = vmatprep.subr.mxu0 0.0
  %2505 = vmatpush1.msra.mxu0 %v2402
  %2506 = vmatprep.subr.mxu0 0.0
  %2507 = vmatpush1.msra.mxu0 %v2403
  %2508 = vmatprep.subr.mxu0 0.0
  %2509 = vmatpush1.msra.mxu0 %v2404
  %2510 = vmatprep.subr.mxu0 0.0
  %2511 = vmatpush1.msra.mxu0 %v2405
  %2512 = vmatprep.subr.mxu0 0.0
  %2513 = vmatpush1.msra.mxu0 0.0
  %2514 = vmatprep.subr.mxu0 0.0
  %2515 = vmatpush1.msra.mxu0 0.0
  %2516 = vmatprep.subr.mxu0 0.0
  %2517 = vmatpush1.msra.mxu0 0.0
  %2518 = vmatprep.subr.mxu0 0.0
  %2519 = vmatpush1.msra.mxu0 0.0
  %2520 = vmatprep.subr.mxu0 0.0
  %2521 = vmatpush1.msra.mxu0 0.0
  %2522 = vmatprep.subr.mxu0 0.0
  %2523 = vmatpush1.msra.mxu0 0.0
  %2524 = vmatprep.subr.mxu0 0.0
  %2525 = vmatpush1.msra.mxu0 0.0
  %2526 = vmatprep.subr.mxu0 0.0
  %2527 = vmatpush1.msra.mxu0 0.0
  %2528 = vmatprep.subr.mxu0 0.0
  %2529 = vmatpush1.msra.mxu0 0.0
  %2530 = vmatprep.subr.mxu0 0.0
  %2531 = vmatpush1.msra.mxu0 0.0
  %2532 = vmatprep.subr.mxu0 0.0
  %2533 = vmatpush1.msra.mxu0 0.0
  %2534 = vmatprep.subr.mxu0 0.0
  %2535 = vmatpush1.msra.mxu0 0.0
  %2536 = vmatprep.subr.mxu0 0.0
  %2537 = vmatpush1.msra.mxu0 0.0
  %2538 = vmatprep.subr.mxu0 0.0
  %2539 = vmatpush1.msra.mxu0 0.0
  %2540 = vmatprep.subr.mxu0 0.0
  %2541 = vmatpush1.msra.mxu0 0.0
  %2542 = vmatprep.subr.mxu0 0.0
  %2543 = vmatpush1.msra.mxu0 0.0
  %2544 = vmatprep.subr.mxu0 0.0
  %2545 = vmatpush1.msra.mxu0 0.0
  %2546 = vmatprep.subr.mxu0 0.0
  %2547 = vmatpush1.msra.mxu0 0.0
  %2548 = vmatprep.subr.mxu0 0.0
  %2549 = vmatpush1.msra.mxu0 0.0
  %2550 = vmatprep.subr.mxu0 0.0
  %2551 = vmatpush1.msra.mxu0 0.0
  %2552 = vmatprep.subr.mxu0 0.0
  %2553 = vmatpush1.msra.mxu0 0.0
  %2554 = vmatprep.subr.mxu0 0.0
  %2555 = vmatpush1.msra.mxu0 0.0
  %2556 = vmatprep.subr.mxu0 0.0
  %2557 = vmatpush1.msra.mxu0 0.0
  %2558 = vmatprep.subr.mxu0 0.0
  %2559 = vmatpush1.msra.mxu0 0.0
  %2560 = vmatprep.subr.mxu0 0.0
  %2561 = vmatpush1.msra.mxu0 0.0
  %2562 = vmatprep.subr.mxu0 0.0
  %2563 = vmatpush1.msra.mxu0 0.0
  %2564 = vmatprep.subr.mxu0 0.0
  %2565 = vmatpush1.msra.mxu0 0.0
  %2566 = vmatprep.subr.mxu0 0.0
  %2567 = vmatpush1.msra.mxu0 0.0
  %2568 = vmatprep.mubr.f32.mxu0 0.0
  %2569 = vmatmul.mubr.f32.gmra.mrb[0].mxu0 %v2502
  %v2570 = vpop.f32.mrb[0].mxu0
  %v2571 = vadd.f32 %v2500, %v2570
  %v2572 = vpop.f32.mrb[0].mxu0
  %2573 = vdwg.mxu0
  %v2574 = vmax.f32 %v2571, 0.0
  %v2575 = vlaneseq
  %v2576 = vshrl.u32 %v2575, 7
  %v2577 = vsub.s32 0, %v2576
  %v2578 = vrot.slane %v2423, %v2577
  %2579 = vmatprep.subr.mxu0 0.0
  %2580 = vmatpush1.msra.mxu0 %v2406
  %2581 = vmatprep.subr.mxu0 0.0
  %2582 = vmatpush1.msra.mxu0 %v2407
  %2583 = vmatprep.subr.mxu0 0.0
  %2584 = vmatpush1.msra.mxu0 %v2408
  %2585 = vmatprep.subr.mxu0 0.0
  %2586 = vmatpush1.msra.mxu0 %v2409
  %2587 = vmatprep.subr.mxu0 0.0
  %2588 = vmatpush1.msra.mxu0 %v2410
  %2589 = vmatprep.subr.mxu0 0.0
  %2590 = vmatpush1.msra.mxu0 %v2411
  %2591 = vmatprep.subr.mxu0 0.0
  %2592 = vmatpush1.msra.mxu0 %v2412
  %2593 = vmatprep.subr.mxu0 0.0
  %2594 = vmatpush1.msra.mxu0 %v2413
  %2595 = vmatprep.subr.mxu0 0.0
  %2596 = vmatpush1.msra.mxu0 %v2414
  %2597 = vmatprep.subr.mxu0 0.0
  %2598 = vmatpush1.msra.mxu0 %v2415
  %2599 = vmatprep.subr.mxu0 0.0
  %2600 = vmatpush1.msra.mxu0 %v2416
  %2601 = vmatprep.subr.mxu0 0.0
  %2602 = vmatpush1.msra.mxu0 %v2417
  %2603 = vmatprep.subr.mxu0 0.0
  %2604 = vmatpush1.msra.mxu0 %v2418
  %2605 = vmatprep.subr.mxu0 0.0
  %2606 = vmatpush1.msra.mxu0 %v2419
  %2607 = vmatprep.subr.mxu0 0.0
  %2608 = vmatpush1.msra.mxu0 %v2420
  %2609 = vmatprep.subr.mxu0 0.0
  %2610 = vmatpush1.msra.mxu0 %v2421
  %2611 = vmatprep.subr.mxu0 0.0
  %2612 = vmatpush1.msra.mxu0 0.0
  %2613 = vmatprep.subr.mxu0 0.0
  %2614 = vmatpush1.msra.mxu0 0.0
  %2615 = vmatprep.subr.mxu0 0.0
  %2616 = vmatpush1.msra.mxu0 0.0
  %2617 = vmatprep.subr.mxu0 0.0
  %2618 = vmatpush1.msra.mxu0 0.0
  %2619 = vmatprep.subr.mxu0 0.0
  %2620 = vmatpush1.msra.mxu0 0.0
  %2621 = vmatprep.subr.mxu0 0.0
  %2622 = vmatpush1.msra.mxu0 0.0
  %2623 = vmatprep.subr.mxu0 0.0
  %2624 = vmatpush1.msra.mxu0 0.0
  %2625 = vmatprep.subr.mxu0 0.0
  %2626 = vmatpush1.msra.mxu0 0.0
  %2627 = vmatprep.subr.mxu0 0.0
  %2628 = vmatpush1.msra.mxu0 0.0
  %2629 = vmatprep.subr.mxu0 0.0
  %2630 = vmatpush1.msra.mxu0 0.0
  %2631 = vmatprep.subr.mxu0 0.0
  %2632 = vmatpush1.msra.mxu0 0.0
  %2633 = vmatprep.subr.mxu0 0.0
  %2634 = vmatpush1.msra.mxu0 0.0
  %2635 = vmatprep.subr.mxu0 0.0
  %2636 = vmatpush1.msra.mxu0 0.0
  %2637 = vmatprep.subr.mxu0 0.0
  %2638 = vmatpush1.msra.mxu0 0.0
  %2639 = vmatprep.subr.mxu0 0.0
  %2640 = vmatpush1.msra.mxu0 0.0
  %2641 = vmatprep.subr.mxu0 0.0
  %2642 = vmatpush1.msra.mxu0 0.0
  %2643 = vmatprep.mubr.f32.mxu0 0.0
  %2644 = vmatmul.mubr.f32.gmra.mrb[0].mxu0 %v2574
  %v2645 = vpop.f32.mrb[0].mxu0
  %v2646 = vadd.f32 %v2578, %v2645
  %v2647 = vpop.f32.mrb[0].mxu0
  %2648 = vdwg.mxu0
  %v2649 = vlaneseq
  %v2650 = vand.u32 %v2649, 127
  %v2651 = vmax.f32 %v2646, -1000000.0
  %v2652 = vmin.f32 %v2651, 1000000.0
  %v2653 = vsub.f32 0.0, %v2646
  %v2654 = vmul.f32 %v2653, 1.442695
  %v2655 = vpow.pop %v2654
  %v2656 = vadd.f32 %v2655, 1.0
  %v2657 = vrcp.pop %v2656
  %v2658 = vmul.f32 1.0, %v2657
  %v2659 = vmax.f32 %v2658, 0.0
  %v2660 = vmin.f32 %v2659, 1.0
  %vm2661 = vcmp.eq.s32.totalorder %v2650, 0
  %v2662 = vsel %vm2661, %v2652, %v2660
  %vm2663 = vcmask 9216
  %2664 = vst.msk [vmem:[%s4] sm:$0x3] %vm2663, %v2662
  // Predicated region
  $region18: #{vehicle_transformer.1} parent=0 // pred_check
    _
  $region19: #{vehicle_transformer.1} parent=0 // pred_check_branch
    %2666 = sbr.rel (0) target = $region21
  $region20: #{vehicle_transformer.1} parent=0 // pred_region
    _
  $region21: #{vehicle_transformer.1} parent=0 // pred_fallthru
    _
  // Predicated region
  $region22: #{vehicle_transformer.1} parent=0 // pred_check
    _
  $region23: #{vehicle_transformer.1} parent=0 // pred_check_branch
    %2668 = sbr.rel (0) target = $region25
  $region24: #{vehicle_transformer.1} parent=0 // pred_region
    _
  $region25: #{vehicle_transformer.1} parent=0 // pred_fallthru
    _

</llo_original>
